<compile_context>
chip_gen: v7x
topology: tpu7x:2x2x1
jax: 0.10.0
libtpu: 0.0.40
codegen_flags: <defaults>
</compile_context>

<pallas_src>
import functools

import jax
import jax.numpy as jnp
import numpy as np
from jax.experimental import pallas as pl
from jax.experimental.pallas import tpu as pltpu

# ------------------------- config (small, deterministic) --------------------
BATCH = 2
SEQ = 8          # query/key length T
ADAPTER_LEN = 8  # adapter length A
EMBED = 32       # hidden_size E
NUM_HEADS = 4    # num_attention_heads H
HEAD_DIM = EMBED // NUM_HEADS
MASKED_BIAS = -10000.0


# ------------------------------ fused Pallas kernel --------------------------
def _fused_attention_kernel(adapter_per_batch, B, T, A, E, H, hd,
                            hid_ref, adp_ref, caw_ref, cab_ref,
                            cpw_ref, cpb_ref, gate_ref,
                            o_ref, merged_ref):
    """Whole GPT2Attention_w_Adapter forward in one VMEM-resident kernel.

    hid_ref:   (B*T, E)        hidden states, rows = batch-major
    adp_ref:   (A, E) or (B*A, E) adapter tokens
    caw_ref:   (E, 3E)  cab_ref: (1, 3E)   c_attn weight / bias
    cpw_ref:   (E, E)   cpb_ref: (1, E)    c_proj weight / bias
    gate_ref:  (1, E)   tanh(gate) repeated head_dim times per head
    o_ref:     (B*T, E) output (lane-dense, heads already merged)
    merged_ref:(B*T, E) VMEM scratch holding the merged attention output
    """
    # ---- c_attn on hidden states and adapter: two clean MXU matmuls ----
    w_attn = caw_ref[...]
    b_attn = cab_ref[...]
    qkv_i = jnp.dot(hid_ref[...], w_attn,
                    preferred_element_type=jnp.float32) + b_attn   # (B*T, 3E)
    qkv_a = jnp.dot(adp_ref[...], w_attn,
                    preferred_element_type=jnp.float32) + b_attn   # (A*, 3E)

    scale = jnp.float32(1.0 / (float(hd) ** 0.5))

    # Causal mask, shared across all (batch, head) pairs.
    row = jax.lax.broadcasted_iota(jnp.int32, (T, T), 0)
    col = jax.lax.broadcasted_iota(jnp.int32, (T, T), 1)
    causal = col <= row

    gate_row = gate_ref[...]                                       # (1, E)

    # Statically unrolled per-(batch, head) work — all inside one kernel
    # invocation, so the LLO scheduler can interleave it freely and there is
    # zero grid / launch overhead.
    for b in range(B):
        r0 = b * T
        a0 = b * A if adapter_per_batch else 0
        for h in range(H):
            c0 = h * hd
            q = qkv_i[r0:r0 + T, c0:c0 + hd]                       # (T, hd)
            k = qkv_i[r0:r0 + T, E + c0:E + c0 + hd]               # (T, hd)
            v = qkv_i[r0:r0 + T, 2 * E + c0:2 * E + c0 + hd]       # (T, hd)
            ka = qkv_a[a0:a0 + A, E + c0:E + c0 + hd]              # (A, hd)
            va = qkv_a[a0:a0 + A, 2 * E + c0:2 * E + c0 + hd]      # (A, hd)

            # ---- causal self-attention (_attn) ----
            s = jnp.dot(q, k.T, preferred_element_type=jnp.float32) * scale
            s = jnp.where(causal, s, jnp.float32(MASKED_BIAS))
            s = s - jnp.max(s, axis=-1, keepdims=True)
            e = jnp.exp(s)
            p = e * pl.reciprocal(jnp.sum(e, axis=-1, keepdims=True),
                                  approx=True)
            out_main = jnp.dot(p, v, preferred_element_type=jnp.float32)

            # ---- adapter attention (_attn_adapter, no causal mask) ----
            sa = jnp.dot(q, ka.T, preferred_element_type=jnp.float32) * scale
            sa = sa - jnp.max(sa, axis=-1, keepdims=True)
            ea = jnp.exp(sa)
            pa = ea * pl.reciprocal(jnp.sum(ea, axis=-1, keepdims=True),
                                    approx=True)
            out_adpt = jnp.dot(pa, va, preferred_element_type=jnp.float32)

            # tanh(gate) was precomputed in the wrapper; broadcast multiply.
            merged_ref[r0:r0 + T, c0:c0 + hd] = (
                out_main + out_adpt * gate_row[:, c0:c0 + hd])

    # ---- c_proj on the merged heads: one MXU matmul, lane-dense store ----
    out = jnp.dot(merged_ref[...], cpw_ref[...],
                  preferred_element_type=jnp.float32) + cpb_ref[...]
    o_ref[...] = out.astype(o_ref.dtype)


# ------------------------------ module wrapper --------------------------------
def gpt2_attention_w_adapter_forward(hidden_states, adapter, params):
    """Forward pass of GPT2Attention_w_Adapter (self-attention, eval mode)."""
    B, T, E = hidden_states.shape
    H, hd = NUM_HEADS, HEAD_DIM

    adapter_per_batch = adapter.ndim == 3
    if adapter_per_batch:
        A = adapter.shape[1]
        adp2d = adapter.reshape(B * A, E)
    else:                      # adapter.unsqueeze(0).repeat(bsz, 1, 1): shared
        A = adapter.shape[0]
        adp2d = adapter

    hid2d = hidden_states.reshape(B * T, E)

    # Hoist tanh(gate) out of the kernel; lay it out per output column so the
    # kernel only does a vector broadcast multiply (no scalar extraction).
    gate_row = jnp.repeat(jnp.tanh(params["gate"].reshape(H)).astype(jnp.float32),
                          hd)[None, :]                              # (1, E)

    kernel = functools.partial(_fused_attention_kernel, adapter_per_batch,
                               B, T, A, E, H, hd)
    vmem = pl.BlockSpec(memory_space=pltpu.MemorySpace.VMEM)

    out2d = pl.pallas_call(
        kernel,
        out_shape=jax.ShapeDtypeStruct((B * T, E), hidden_states.dtype),
        in_specs=[vmem] * 7,
        out_specs=vmem,
        scratch_shapes=[pltpu.VMEM((B * T, E), jnp.float32)],
    )(hid2d, adp2d,
      params["c_attn_w"], params["c_attn_b"].reshape(1, 3 * E),
      params["c_proj_w"], params["c_proj_b"].reshape(1, E),
      gate_row)

    present = None  # use_cache=False
    return out2d.reshape(B, T, E), present


# ------------------------------ pure-JAX reference ----------------------------
def _split_heads(x, num_heads, head_dim):
    b, t, _ = x.shape
    return x.reshape(b, t, num_heads, head_dim).transpose(0, 2, 1, 3)


def _reference_forward(hidden_states, adapter, params):
    B, T, E = hidden_states.shape
    H, hd = NUM_HEADS, HEAD_DIM
    if adapter.ndim == 2:
        adapter = jnp.broadcast_to(adapter[None], (B,) + adapter.shape)

    def conv1d(x, w, b):
        return x @ w + b

    qkv_i = conv1d(hidden_states, params["c_attn_w"], params["c_attn_b"])
    qkv_a = conv1d(adapter, params["c_attn_w"], params["c_attn_b"])
    q_i, k_i, v_i = jnp.split(qkv_i, 3, axis=2)
    _, k_a, v_a = jnp.split(qkv_a, 3, axis=2)

    q = _split_heads(q_i, H, hd)
    k = _split_heads(k_i, H, hd)
    v = _split_heads(v_i, H, hd)
    ka = _split_heads(k_a, H, hd)
    va = _split_heads(v_a, H, hd)

    scale = 1.0 / (float(hd) ** 0.5)
    s = jnp.einsum("bhqd,bhkd->bhqk", q, k) * scale
    causal = jnp.tril(jnp.ones((T, T), dtype=bool))
    s = jnp.where(causal[None, None], s, jnp.float32(MASKED_BIAS))
    p = jax.nn.softmax(s, axis=-1)
    out_main = jnp.einsum("bhqk,bhkd->bhqd", p, v)

    sa = jnp.einsum("bhqd,bhkd->bhqk", q, ka) * scale
    pa = jax.nn.softmax(sa, axis=-1)
    out_adpt = jnp.einsum("bhqk,bhkd->bhqd", pa, va)

    gate = params["gate"]  # (1, H, 1, 1)
    attn_out = out_main + out_adpt * jnp.tanh(gate)
    merged = attn_out.transpose(0, 2, 1, 3).reshape(B, T, E)
    return merged @ params["c_proj_w"] + params["c_proj_b"]


# ------------------------------------ main ------------------------------------
if __name__ == "__main__":
    key = jax.random.PRNGKey(0)
    ks = jax.random.split(key, 7)

    # Deterministic synthetic parameters (shapes from __init__):
    #   c_attn: Conv1D(3E, E) -> weight (E, 3E), bias (3E,)
    #   c_proj: Conv1D(E, E)  -> weight (E, E),  bias (E,)
    #   gate:   (1, H, 1, 1)
    params = {
        "c_attn_w": 0.02 * jax.random.normal(ks[0], (EMBED, 3 * EMBED), jnp.float32),
        "c_attn_b": 0.02 * jax.random.normal(ks[1], (3 * EMBED,), jnp.float32),
        "c_proj_w": 0.02 * jax.random.normal(ks[2], (EMBED, EMBED), jnp.float32),
        "c_proj_b": 0.02 * jax.random.normal(ks[3], (EMBED,), jnp.float32),
        # module inits gate to zeros; use small random values so the adapter
        # path is actually exercised (tanh(0)=0 would mask bugs).
        "gate": 0.1 * jax.random.normal(ks[4], (1, NUM_HEADS, 1, 1), jnp.float32),
    }

    hidden_states = jax.random.normal(ks[5], (BATCH, SEQ, EMBED), jnp.float32)
    adapter = jax.random.normal(ks[6], (ADAPTER_LEN, EMBED), jnp.float32)  # 2-D branch

    out, present = gpt2_attention_w_adapter_forward(hidden_states, adapter, params)
    out = jax.block_until_ready(out)

    ref = _reference_forward(hidden_states, adapter, params)
    # Tolerance relaxed vs f32-exact because the kernel uses the EUP approximate
    # reciprocal (pl.reciprocal(approx=True)) for the softmax normalizations.
    np.testing.assert_allclose(np.asarray(out), np.asarray(ref),
                               rtol=2e-3, atol=1e-3)

    # TODO(synk): layer_past / use_cache / cross-attention / output_attentions /
    # dropout-train paths are not exercised; dropouts are identity in eval mode.
    print("KERNEL_OK")
</pallas_src>

<mosaic_0001>
module attributes {stable_mosaic.version = 11 : i64} {
  func.func @_fused_attention_kernel(%arg0: memref<16x32xf32, #tpu.memory_space<vmem>>, %arg1: memref<8x32xf32, #tpu.memory_space<vmem>>, %arg2: memref<32x96xf32, #tpu.memory_space<vmem>>, %arg3: memref<1x96xf32, #tpu.memory_space<vmem>>, %arg4: memref<32x32xf32, #tpu.memory_space<vmem>>, %arg5: memref<1x32xf32, #tpu.memory_space<vmem>>, %arg6: memref<1x32xf32, #tpu.memory_space<vmem>>, %arg7: memref<16x32xf32, #tpu.memory_space<vmem>>, %arg8: memref<16x32xf32, #tpu.memory_space<vmem>>) attributes {dimension_semantics = [], scalar_prefetch = 0 : i64, scratch_operands = 1 : i64, tpu.core_type = #tpu.core_type<tc>} {
    %c0 = arith.constant 0 : index
    %c0_0 = arith.constant 0 : index
    %0 = vector.load %arg2[%c0, %c0_0] : memref<32x96xf32, #tpu.memory_space<vmem>>, vector<32x96xf32>
    %c0_1 = arith.constant 0 : index
    %c0_2 = arith.constant 0 : index
    %1 = vector.load %arg3[%c0_1, %c0_2] : memref<1x96xf32, #tpu.memory_space<vmem>>, vector<1x96xf32>
    %c0_3 = arith.constant 0 : index
    %c0_4 = arith.constant 0 : index
    %2 = vector.load %arg0[%c0_3, %c0_4] : memref<16x32xf32, #tpu.memory_space<vmem>>, vector<16x32xf32>
    %cst = arith.constant dense<0.000000e+00> : vector<16x96xf32>
    %3 = tpu.matmul %2, %0, %cst {dimension_numbers = #tpu.dot_dimension_numbers<[1], [0], [0], [1], [0, 0, 1, 1], [], []>} : vector<16x32xf32>, vector<32x96xf32>, vector<16x96xf32> -> vector<16x96xf32>
    %4 = vector.broadcast %1 : vector<1x96xf32> to vector<16x96xf32>
    %5 = arith.addf %3, %4 : vector<16x96xf32>
    %c0_5 = arith.constant 0 : index
    %c0_6 = arith.constant 0 : index
    %6 = vector.load %arg1[%c0_5, %c0_6] : memref<8x32xf32, #tpu.memory_space<vmem>>, vector<8x32xf32>
    %cst_7 = arith.constant dense<0.000000e+00> : vector<8x96xf32>
    %7 = tpu.matmul %6, %0, %cst_7 {dimension_numbers = #tpu.dot_dimension_numbers<[1], [0], [0], [1], [0, 0, 1, 1], [], []>} : vector<8x32xf32>, vector<32x96xf32>, vector<8x96xf32> -> vector<8x96xf32>
    %8 = vector.broadcast %1 : vector<1x96xf32> to vector<8x96xf32>
    %9 = arith.addf %7, %8 : vector<8x96xf32>
    %10 = tpu.iota {dimensions = array<i32: 0>} : vector<8x8xi32>
    %11 = tpu.iota {dimensions = array<i32: 1>} : vector<8x8xi32>
    %12 = arith.cmpi sle, %11, %10 : vector<8x8xi32>
    %c0_8 = arith.constant 0 : index
    %c0_9 = arith.constant 0 : index
    %13 = vector.load %arg6[%c0_8, %c0_9] : memref<1x32xf32, #tpu.memory_space<vmem>>, vector<1x32xf32>
    %14 = vector.extract_strided_slice %5 {offsets = [0, 0], sizes = [8, 8], strides = [1, 1]} : vector<16x96xf32> to vector<8x8xf32>
    %15 = vector.extract_strided_slice %5 {offsets = [0, 32], sizes = [8, 8], strides = [1, 1]} : vector<16x96xf32> to vector<8x8xf32>
    %16 = vector.extract_strided_slice %5 {offsets = [0, 64], sizes = [8, 8], strides = [1, 1]} : vector<16x96xf32> to vector<8x8xf32>
    %17 = vector.extract_strided_slice %9 {offsets = [0, 32], sizes = [8, 8], strides = [1, 1]} : vector<8x96xf32> to vector<8x8xf32>
    %18 = vector.extract_strided_slice %9 {offsets = [0, 64], sizes = [8, 8], strides = [1, 1]} : vector<8x96xf32> to vector<8x8xf32>
    %19 = tpu.transpose %15, [1, 0] : vector<8x8xf32> -> vector<8x8xf32>
    %cst_10 = arith.constant dense<0.000000e+00> : vector<8x8xf32>
    %20 = tpu.matmul %14, %19, %cst_10 {dimension_numbers = #tpu.dot_dimension_numbers<[1], [0], [0], [1], [0, 0, 1, 1], [], []>} : vector<8x8xf32>, vector<8x8xf32>, vector<8x8xf32> -> vector<8x8xf32>
    %cst_11 = arith.constant 0.353553385 : f32
    %21 = vector.broadcast %cst_11 : f32 to vector<8x8xf32>
    %22 = arith.mulf %20, %21 : vector<8x8xf32>
    %cst_12 = arith.constant -1.000000e+04 : f32
    %23 = vector.broadcast %cst_12 : f32 to vector<8x8xf32>
    %24 = arith.select %12, %22, %23 : vector<8x8xi1>, vector<8x8xf32>
    %cst_13 = arith.constant dense<0xFF800000> : vector<8xf32>
    %25 = vector.multi_reduction <maximumf>, %24, %cst_13 [1] : vector<8x8xf32> to vector<8xf32>
    %26 = vector.shape_cast %25 : vector<8xf32> to vector<8x1xf32>
    %27 = vector.broadcast %26 : vector<8x1xf32> to vector<8x8xf32>
    %28 = arith.subf %24, %27 : vector<8x8xf32>
    %29 = math.exp %28 : vector<8x8xf32>
    %cst_14 = arith.constant dense<0.000000e+00> : vector<8xf32>
    %30 = vector.multi_reduction <add>, %29, %cst_14 [1] : vector<8x8xf32> to vector<8xf32>
    %31 = vector.shape_cast %30 : vector<8xf32> to vector<8x1xf32>
    %32 = tpu.reciprocal %31 {approx = true} : vector<8x1xf32> -> vector<8x1xf32>
    %33 = vector.broadcast %32 : vector<8x1xf32> to vector<8x8xf32>
    %34 = arith.mulf %29, %33 : vector<8x8xf32>
    %cst_15 = arith.constant dense<0.000000e+00> : vector<8x8xf32>
    %35 = tpu.matmul %34, %16, %cst_15 {dimension_numbers = #tpu.dot_dimension_numbers<[1], [0], [0], [1], [0, 0, 1, 1], [], []>} : vector<8x8xf32>, vector<8x8xf32>, vector<8x8xf32> -> vector<8x8xf32>
    %36 = tpu.transpose %17, [1, 0] : vector<8x8xf32> -> vector<8x8xf32>
    %cst_16 = arith.constant dense<0.000000e+00> : vector<8x8xf32>
    %37 = tpu.matmul %14, %36, %cst_16 {dimension_numbers = #tpu.dot_dimension_numbers<[1], [0], [0], [1], [0, 0, 1, 1], [], []>} : vector<8x8xf32>, vector<8x8xf32>, vector<8x8xf32> -> vector<8x8xf32>
    %cst_17 = arith.constant 0.353553385 : f32
    %38 = vector.broadcast %cst_17 : f32 to vector<8x8xf32>
    %39 = arith.mulf %37, %38 : vector<8x8xf32>
    %cst_18 = arith.constant dense<0xFF800000> : vector<8xf32>
    %40 = vector.multi_reduction <maximumf>, %39, %cst_18 [1] : vector<8x8xf32> to vector<8xf32>
    %41 = vector.shape_cast %40 : vector<8xf32> to vector<8x1xf32>
    %42 = vector.broadcast %41 : vector<8x1xf32> to vector<8x8xf32>
    %43 = arith.subf %39, %42 : vector<8x8xf32>
    %44 = math.exp %43 : vector<8x8xf32>
    %cst_19 = arith.constant dense<0.000000e+00> : vector<8xf32>
    %45 = vector.multi_reduction <add>, %44, %cst_19 [1] : vector<8x8xf32> to vector<8xf32>
    %46 = vector.shape_cast %45 : vector<8xf32> to vector<8x1xf32>
    %47 = tpu.reciprocal %46 {approx = true} : vector<8x1xf32> -> vector<8x1xf32>
    %48 = vector.broadcast %47 : vector<8x1xf32> to vector<8x8xf32>
    %49 = arith.mulf %44, %48 : vector<8x8xf32>
    %cst_20 = arith.constant dense<0.000000e+00> : vector<8x8xf32>
    %50 = tpu.matmul %49, %18, %cst_20 {dimension_numbers = #tpu.dot_dimension_numbers<[1], [0], [0], [1], [0, 0, 1, 1], [], []>} : vector<8x8xf32>, vector<8x8xf32>, vector<8x8xf32> -> vector<8x8xf32>
    %51 = vector.extract_strided_slice %13 {offsets = [0, 0], sizes = [1, 8], strides = [1, 1]} : vector<1x32xf32> to vector<1x8xf32>
    %52 = vector.broadcast %51 : vector<1x8xf32> to vector<8x8xf32>
    %53 = arith.mulf %50, %52 : vector<8x8xf32>
    %54 = arith.addf %35, %53 : vector<8x8xf32>
    %c0_21 = arith.constant 0 : index
    %c0_22 = arith.constant 0 : index
    %55 = vector.load %arg8[%c0_21, %c0_22] : memref<16x32xf32, #tpu.memory_space<vmem>>, vector<8x8xf32>
    tpu.vector_store %arg8[%c0_21, %c0_22], %54 {strides = array<i32>} : memref<16x32xf32, #tpu.memory_space<vmem>>, vector<8x8xf32>,
    %56 = vector.extract_strided_slice %5 {offsets = [0, 8], sizes = [8, 8], strides = [1, 1]} : vector<16x96xf32> to vector<8x8xf32>
    %57 = vector.extract_strided_slice %5 {offsets = [0, 40], sizes = [8, 8], strides = [1, 1]} : vector<16x96xf32> to vector<8x8xf32>
    %58 = vector.extract_strided_slice %5 {offsets = [0, 72], sizes = [8, 8], strides = [1, 1]} : vector<16x96xf32> to vector<8x8xf32>
    %59 = vector.extract_strided_slice %9 {offsets = [0, 40], sizes = [8, 8], strides = [1, 1]} : vector<8x96xf32> to vector<8x8xf32>
    %60 = vector.extract_strided_slice %9 {offsets = [0, 72], sizes = [8, 8], strides = [1, 1]} : vector<8x96xf32> to vector<8x8xf32>
    %61 = tpu.transpose %57, [1, 0] : vector<8x8xf32> -> vector<8x8xf32>
    %cst_23 = arith.constant dense<0.000000e+00> : vector<8x8xf32>
    %62 = tpu.matmul %56, %61, %cst_23 {dimension_numbers = #tpu.dot_dimension_numbers<[1], [0], [0], [1], [0, 0, 1, 1], [], []>} : vector<8x8xf32>, vector<8x8xf32>, vector<8x8xf32> -> vector<8x8xf32>
    %cst_24 = arith.constant 0.353553385 : f32
    %63 = vector.broadcast %cst_24 : f32 to vector<8x8xf32>
    %64 = arith.mulf %62, %63 : vector<8x8xf32>
    %cst_25 = arith.constant -1.000000e+04 : f32
    %65 = vector.broadcast %cst_25 : f32 to vector<8x8xf32>
    %66 = arith.select %12, %64, %65 : vector<8x8xi1>, vector<8x8xf32>
    %cst_26 = arith.constant dense<0xFF800000> : vector<8xf32>
    %67 = vector.multi_reduction <maximumf>, %66, %cst_26 [1] : vector<8x8xf32> to vector<8xf32>
    %68 = vector.shape_cast %67 : vector<8xf32> to vector<8x1xf32>
    %69 = vector.broadcast %68 : vector<8x1xf32> to vector<8x8xf32>
    %70 = arith.subf %66, %69 : vector<8x8xf32>
    %71 = math.exp %70 : vector<8x8xf32>
    %cst_27 = arith.constant dense<0.000000e+00> : vector<8xf32>
    %72 = vector.multi_reduction <add>, %71, %cst_27 [1] : vector<8x8xf32> to vector<8xf32>
    %73 = vector.shape_cast %72 : vector<8xf32> to vector<8x1xf32>
    %74 = tpu.reciprocal %73 {approx = true} : vector<8x1xf32> -> vector<8x1xf32>
    %75 = vector.broadcast %74 : vector<8x1xf32> to vector<8x8xf32>
    %76 = arith.mulf %71, %75 : vector<8x8xf32>
    %cst_28 = arith.constant dense<0.000000e+00> : vector<8x8xf32>
    %77 = tpu.matmul %76, %58, %cst_28 {dimension_numbers = #tpu.dot_dimension_numbers<[1], [0], [0], [1], [0, 0, 1, 1], [], []>} : vector<8x8xf32>, vector<8x8xf32>, vector<8x8xf32> -> vector<8x8xf32>
    %78 = tpu.transpose %59, [1, 0] : vector<8x8xf32> -> vector<8x8xf32>
    %cst_29 = arith.constant dense<0.000000e+00> : vector<8x8xf32>
    %79 = tpu.matmul %56, %78, %cst_29 {dimension_numbers = #tpu.dot_dimension_numbers<[1], [0], [0], [1], [0, 0, 1, 1], [], []>} : vector<8x8xf32>, vector<8x8xf32>, vector<8x8xf32> -> vector<8x8xf32>
    %cst_30 = arith.constant 0.353553385 : f32
    %80 = vector.broadcast %cst_30 : f32 to vector<8x8xf32>
    %81 = arith.mulf %79, %80 : vector<8x8xf32>
    %cst_31 = arith.constant dense<0xFF800000> : vector<8xf32>
    %82 = vector.multi_reduction <maximumf>, %81, %cst_31 [1] : vector<8x8xf32> to vector<8xf32>
    %83 = vector.shape_cast %82 : vector<8xf32> to vector<8x1xf32>
    %84 = vector.broadcast %83 : vector<8x1xf32> to vector<8x8xf32>
    %85 = arith.subf %81, %84 : vector<8x8xf32>
    %86 = math.exp %85 : vector<8x8xf32>
    %cst_32 = arith.constant dense<0.000000e+00> : vector<8xf32>
    %87 = vector.multi_reduction <add>, %86, %cst_32 [1] : vector<8x8xf32> to vector<8xf32>
    %88 = vector.shape_cast %87 : vector<8xf32> to vector<8x1xf32>
    %89 = tpu.reciprocal %88 {approx = true} : vector<8x1xf32> -> vector<8x1xf32>
    %90 = vector.broadcast %89 : vector<8x1xf32> to vector<8x8xf32>
    %91 = arith.mulf %86, %90 : vector<8x8xf32>
    %cst_33 = arith.constant dense<0.000000e+00> : vector<8x8xf32>
    %92 = tpu.matmul %91, %60, %cst_33 {dimension_numbers = #tpu.dot_dimension_numbers<[1], [0], [0], [1], [0, 0, 1, 1], [], []>} : vector<8x8xf32>, vector<8x8xf32>, vector<8x8xf32> -> vector<8x8xf32>
    %93 = vector.extract_strided_slice %13 {offsets = [0, 8], sizes = [1, 8], strides = [1, 1]} : vector<1x32xf32> to vector<1x8xf32>
    %94 = vector.broadcast %93 : vector<1x8xf32> to vector<8x8xf32>
    %95 = arith.mulf %92, %94 : vector<8x8xf32>
    %96 = arith.addf %77, %95 : vector<8x8xf32>
    %c0_34 = arith.constant 0 : index
    %c8 = arith.constant 8 : index
    %97 = vector.load %arg8[%c0_34, %c8] : memref<16x32xf32, #tpu.memory_space<vmem>>, vector<8x8xf32>
    tpu.vector_store %arg8[%c0_34, %c8], %96 {strides = array<i32>} : memref<16x32xf32, #tpu.memory_space<vmem>>, vector<8x8xf32>,
    %98 = vector.extract_strided_slice %5 {offsets = [0, 16], sizes = [8, 8], strides = [1, 1]} : vector<16x96xf32> to vector<8x8xf32>
    %99 = vector.extract_strided_slice %5 {offsets = [0, 48], sizes = [8, 8], strides = [1, 1]} : vector<16x96xf32> to vector<8x8xf32>
    %100 = vector.extract_strided_slice %5 {offsets = [0, 80], sizes = [8, 8], strides = [1, 1]} : vector<16x96xf32> to vector<8x8xf32>
    %101 = vector.extract_strided_slice %9 {offsets = [0, 48], sizes = [8, 8], strides = [1, 1]} : vector<8x96xf32> to vector<8x8xf32>
    %102 = vector.extract_strided_slice %9 {offsets = [0, 80], sizes = [8, 8], strides = [1, 1]} : vector<8x96xf32> to vector<8x8xf32>
    %103 = tpu.transpose %99, [1, 0] : vector<8x8xf32> -> vector<8x8xf32>
    %cst_35 = arith.constant dense<0.000000e+00> : vector<8x8xf32>
    %104 = tpu.matmul %98, %103, %cst_35 {dimension_numbers = #tpu.dot_dimension_numbers<[1], [0], [0], [1], [0, 0, 1, 1], [], []>} : vector<8x8xf32>, vector<8x8xf32>, vector<8x8xf32> -> vector<8x8xf32>
    %cst_36 = arith.constant 0.353553385 : f32
    %105 = vector.broadcast %cst_36 : f32 to vector<8x8xf32>
    %106 = arith.mulf %104, %105 : vector<8x8xf32>
    %cst_37 = arith.constant -1.000000e+04 : f32
    %107 = vector.broadcast %cst_37 : f32 to vector<8x8xf32>
    %108 = arith.select %12, %106, %107 : vector<8x8xi1>, vector<8x8xf32>
    %cst_38 = arith.constant dense<0xFF800000> : vector<8xf32>
    %109 = vector.multi_reduction <maximumf>, %108, %cst_38 [1] : vector<8x8xf32> to vector<8xf32>
    %110 = vector.shape_cast %109 : vector<8xf32> to vector<8x1xf32>
    %111 = vector.broadcast %110 : vector<8x1xf32> to vector<8x8xf32>
    %112 = arith.subf %108, %111 : vector<8x8xf32>
    %113 = math.exp %112 : vector<8x8xf32>
    %cst_39 = arith.constant dense<0.000000e+00> : vector<8xf32>
    %114 = vector.multi_reduction <add>, %113, %cst_39 [1] : vector<8x8xf32> to vector<8xf32>
    %115 = vector.shape_cast %114 : vector<8xf32> to vector<8x1xf32>
    %116 = tpu.reciprocal %115 {approx = true} : vector<8x1xf32> -> vector<8x1xf32>
    %117 = vector.broadcast %116 : vector<8x1xf32> to vector<8x8xf32>
    %118 = arith.mulf %113, %117 : vector<8x8xf32>
    %cst_40 = arith.constant dense<0.000000e+00> : vector<8x8xf32>
    %119 = tpu.matmul %118, %100, %cst_40 {dimension_numbers = #tpu.dot_dimension_numbers<[1], [0], [0], [1], [0, 0, 1, 1], [], []>} : vector<8x8xf32>, vector<8x8xf32>, vector<8x8xf32> -> vector<8x8xf32>
    %120 = tpu.transpose %101, [1, 0] : vector<8x8xf32> -> vector<8x8xf32>
    %cst_41 = arith.constant dense<0.000000e+00> : vector<8x8xf32>
    %121 = tpu.matmul %98, %120, %cst_41 {dimension_numbers = #tpu.dot_dimension_numbers<[1], [0], [0], [1], [0, 0, 1, 1], [], []>} : vector<8x8xf32>, vector<8x8xf32>, vector<8x8xf32> -> vector<8x8xf32>
    %cst_42 = arith.constant 0.353553385 : f32
    %122 = vector.broadcast %cst_42 : f32 to vector<8x8xf32>
    %123 = arith.mulf %121, %122 : vector<8x8xf32>
    %cst_43 = arith.constant dense<0xFF800000> : vector<8xf32>
    %124 = vector.multi_reduction <maximumf>, %123, %cst_43 [1] : vector<8x8xf32> to vector<8xf32>
    %125 = vector.shape_cast %124 : vector<8xf32> to vector<8x1xf32>
    %126 = vector.broadcast %125 : vector<8x1xf32> to vector<8x8xf32>
    %127 = arith.subf %123, %126 : vector<8x8xf32>
    %128 = math.exp %127 : vector<8x8xf32>
    %cst_44 = arith.constant dense<0.000000e+00> : vector<8xf32>
    %129 = vector.multi_reduction <add>, %128, %cst_44 [1] : vector<8x8xf32> to vector<8xf32>
    %130 = vector.shape_cast %129 : vector<8xf32> to vector<8x1xf32>
    %131 = tpu.reciprocal %130 {approx = true} : vector<8x1xf32> -> vector<8x1xf32>
    %132 = vector.broadcast %131 : vector<8x1xf32> to vector<8x8xf32>
    %133 = arith.mulf %128, %132 : vector<8x8xf32>
    %cst_45 = arith.constant dense<0.000000e+00> : vector<8x8xf32>
    %134 = tpu.matmul %133, %102, %cst_45 {dimension_numbers = #tpu.dot_dimension_numbers<[1], [0], [0], [1], [0, 0, 1, 1], [], []>} : vector<8x8xf32>, vector<8x8xf32>, vector<8x8xf32> -> vector<8x8xf32>
    %135 = vector.extract_strided_slice %13 {offsets = [0, 16], sizes = [1, 8], strides = [1, 1]} : vector<1x32xf32> to vector<1x8xf32>
    %136 = vector.broadcast %135 : vector<1x8xf32> to vector<8x8xf32>
    %137 = arith.mulf %134, %136 : vector<8x8xf32>
    %138 = arith.addf %119, %137 : vector<8x8xf32>
    %c0_46 = arith.constant 0 : index
    %c16 = arith.constant 16 : index
    %139 = vector.load %arg8[%c0_46, %c16] : memref<16x32xf32, #tpu.memory_space<vmem>>, vector<8x8xf32>
    tpu.vector_store %arg8[%c0_46, %c16], %138 {strides = array<i32>} : memref<16x32xf32, #tpu.memory_space<vmem>>, vector<8x8xf32>,
    %140 = vector.extract_strided_slice %5 {offsets = [0, 24], sizes = [8, 8], strides = [1, 1]} : vector<16x96xf32> to vector<8x8xf32>
    %141 = vector.extract_strided_slice %5 {offsets = [0, 56], sizes = [8, 8], strides = [1, 1]} : vector<16x96xf32> to vector<8x8xf32>
    %142 = vector.extract_strided_slice %5 {offsets = [0, 88], sizes = [8, 8], strides = [1, 1]} : vector<16x96xf32> to vector<8x8xf32>
    %143 = vector.extract_strided_slice %9 {offsets = [0, 56], sizes = [8, 8], strides = [1, 1]} : vector<8x96xf32> to vector<8x8xf32>
    %144 = vector.extract_strided_slice %9 {offsets = [0, 88], sizes = [8, 8], strides = [1, 1]} : vector<8x96xf32> to vector<8x8xf32>
    %145 = tpu.transpose %141, [1, 0] : vector<8x8xf32> -> vector<8x8xf32>
    %cst_47 = arith.constant dense<0.000000e+00> : vector<8x8xf32>
    %146 = tpu.matmul %140, %145, %cst_47 {dimension_numbers = #tpu.dot_dimension_numbers<[1], [0], [0], [1], [0, 0, 1, 1], [], []>} : vector<8x8xf32>, vector<8x8xf32>, vector<8x8xf32> -> vector<8x8xf32>
    %cst_48 = arith.constant 0.353553385 : f32
    %147 = vector.broadcast %cst_48 : f32 to vector<8x8xf32>
    %148 = arith.mulf %146, %147 : vector<8x8xf32>
    %cst_49 = arith.constant -1.000000e+04 : f32
    %149 = vector.broadcast %cst_49 : f32 to vector<8x8xf32>
    %150 = arith.select %12, %148, %149 : vector<8x8xi1>, vector<8x8xf32>
    %cst_50 = arith.constant dense<0xFF800000> : vector<8xf32>
    %151 = vector.multi_reduction <maximumf>, %150, %cst_50 [1] : vector<8x8xf32> to vector<8xf32>
    %152 = vector.shape_cast %151 : vector<8xf32> to vector<8x1xf32>
    %153 = vector.broadcast %152 : vector<8x1xf32> to vector<8x8xf32>
    %154 = arith.subf %150, %153 : vector<8x8xf32>
    %155 = math.exp %154 : vector<8x8xf32>
    %cst_51 = arith.constant dense<0.000000e+00> : vector<8xf32>
    %156 = vector.multi_reduction <add>, %155, %cst_51 [1] : vector<8x8xf32> to vector<8xf32>
    %157 = vector.shape_cast %156 : vector<8xf32> to vector<8x1xf32>
    %158 = tpu.reciprocal %157 {approx = true} : vector<8x1xf32> -> vector<8x1xf32>
    %159 = vector.broadcast %158 : vector<8x1xf32> to vector<8x8xf32>
    %160 = arith.mulf %155, %159 : vector<8x8xf32>
    %cst_52 = arith.constant dense<0.000000e+00> : vector<8x8xf32>
    %161 = tpu.matmul %160, %142, %cst_52 {dimension_numbers = #tpu.dot_dimension_numbers<[1], [0], [0], [1], [0, 0, 1, 1], [], []>} : vector<8x8xf32>, vector<8x8xf32>, vector<8x8xf32> -> vector<8x8xf32>
    %162 = tpu.transpose %143, [1, 0] : vector<8x8xf32> -> vector<8x8xf32>
    %cst_53 = arith.constant dense<0.000000e+00> : vector<8x8xf32>
    %163 = tpu.matmul %140, %162, %cst_53 {dimension_numbers = #tpu.dot_dimension_numbers<[1], [0], [0], [1], [0, 0, 1, 1], [], []>} : vector<8x8xf32>, vector<8x8xf32>, vector<8x8xf32> -> vector<8x8xf32>
    %cst_54 = arith.constant 0.353553385 : f32
    %164 = vector.broadcast %cst_54 : f32 to vector<8x8xf32>
    %165 = arith.mulf %163, %164 : vector<8x8xf32>
    %cst_55 = arith.constant dense<0xFF800000> : vector<8xf32>
    %166 = vector.multi_reduction <maximumf>, %165, %cst_55 [1] : vector<8x8xf32> to vector<8xf32>
    %167 = vector.shape_cast %166 : vector<8xf32> to vector<8x1xf32>
    %168 = vector.broadcast %167 : vector<8x1xf32> to vector<8x8xf32>
    %169 = arith.subf %165, %168 : vector<8x8xf32>
    %170 = math.exp %169 : vector<8x8xf32>
    %cst_56 = arith.constant dense<0.000000e+00> : vector<8xf32>
    %171 = vector.multi_reduction <add>, %170, %cst_56 [1] : vector<8x8xf32> to vector<8xf32>
    %172 = vector.shape_cast %171 : vector<8xf32> to vector<8x1xf32>
    %173 = tpu.reciprocal %172 {approx = true} : vector<8x1xf32> -> vector<8x1xf32>
    %174 = vector.broadcast %173 : vector<8x1xf32> to vector<8x8xf32>
    %175 = arith.mulf %170, %174 : vector<8x8xf32>
    %cst_57 = arith.constant dense<0.000000e+00> : vector<8x8xf32>
    %176 = tpu.matmul %175, %144, %cst_57 {dimension_numbers = #tpu.dot_dimension_numbers<[1], [0], [0], [1], [0, 0, 1, 1], [], []>} : vector<8x8xf32>, vector<8x8xf32>, vector<8x8xf32> -> vector<8x8xf32>
    %177 = vector.extract_strided_slice %13 {offsets = [0, 24], sizes = [1, 8], strides = [1, 1]} : vector<1x32xf32> to vector<1x8xf32>
    %178 = vector.broadcast %177 : vector<1x8xf32> to vector<8x8xf32>
    %179 = arith.mulf %176, %178 : vector<8x8xf32>
    %180 = arith.addf %161, %179 : vector<8x8xf32>
    %c0_58 = arith.constant 0 : index
    %c24 = arith.constant 24 : index
    %181 = vector.load %arg8[%c0_58, %c24] : memref<16x32xf32, #tpu.memory_space<vmem>>, vector<8x8xf32>
    tpu.vector_store %arg8[%c0_58, %c24], %180 {strides = array<i32>} : memref<16x32xf32, #tpu.memory_space<vmem>>, vector<8x8xf32>,
    %182 = vector.extract_strided_slice %5 {offsets = [8, 0], sizes = [8, 8], strides = [1, 1]} : vector<16x96xf32> to vector<8x8xf32>
    %183 = vector.extract_strided_slice %5 {offsets = [8, 32], sizes = [8, 8], strides = [1, 1]} : vector<16x96xf32> to vector<8x8xf32>
    %184 = vector.extract_strided_slice %5 {offsets = [8, 64], sizes = [8, 8], strides = [1, 1]} : vector<16x96xf32> to vector<8x8xf32>
    %185 = vector.extract_strided_slice %9 {offsets = [0, 32], sizes = [8, 8], strides = [1, 1]} : vector<8x96xf32> to vector<8x8xf32>
    %186 = vector.extract_strided_slice %9 {offsets = [0, 64], sizes = [8, 8], strides = [1, 1]} : vector<8x96xf32> to vector<8x8xf32>
    %187 = tpu.transpose %183, [1, 0] : vector<8x8xf32> -> vector<8x8xf32>
    %cst_59 = arith.constant dense<0.000000e+00> : vector<8x8xf32>
    %188 = tpu.matmul %182, %187, %cst_59 {dimension_numbers = #tpu.dot_dimension_numbers<[1], [0], [0], [1], [0, 0, 1, 1], [], []>} : vector<8x8xf32>, vector<8x8xf32>, vector<8x8xf32> -> vector<8x8xf32>
    %cst_60 = arith.constant 0.353553385 : f32
    %189 = vector.broadcast %cst_60 : f32 to vector<8x8xf32>
    %190 = arith.mulf %188, %189 : vector<8x8xf32>
    %cst_61 = arith.constant -1.000000e+04 : f32
    %191 = vector.broadcast %cst_61 : f32 to vector<8x8xf32>
    %192 = arith.select %12, %190, %191 : vector<8x8xi1>, vector<8x8xf32>
    %cst_62 = arith.constant dense<0xFF800000> : vector<8xf32>
    %193 = vector.multi_reduction <maximumf>, %192, %cst_62 [1] : vector<8x8xf32> to vector<8xf32>
    %194 = vector.shape_cast %193 : vector<8xf32> to vector<8x1xf32>
    %195 = vector.broadcast %194 : vector<8x1xf32> to vector<8x8xf32>
    %196 = arith.subf %192, %195 : vector<8x8xf32>
    %197 = math.exp %196 : vector<8x8xf32>
    %cst_63 = arith.constant dense<0.000000e+00> : vector<8xf32>
    %198 = vector.multi_reduction <add>, %197, %cst_63 [1] : vector<8x8xf32> to vector<8xf32>
    %199 = vector.shape_cast %198 : vector<8xf32> to vector<8x1xf32>
    %200 = tpu.reciprocal %199 {approx = true} : vector<8x1xf32> -> vector<8x1xf32>
    %201 = vector.broadcast %200 : vector<8x1xf32> to vector<8x8xf32>
    %202 = arith.mulf %197, %201 : vector<8x8xf32>
    %cst_64 = arith.constant dense<0.000000e+00> : vector<8x8xf32>
    %203 = tpu.matmul %202, %184, %cst_64 {dimension_numbers = #tpu.dot_dimension_numbers<[1], [0], [0], [1], [0, 0, 1, 1], [], []>} : vector<8x8xf32>, vector<8x8xf32>, vector<8x8xf32> -> vector<8x8xf32>
    %204 = tpu.transpose %185, [1, 0] : vector<8x8xf32> -> vector<8x8xf32>
    %cst_65 = arith.constant dense<0.000000e+00> : vector<8x8xf32>
    %205 = tpu.matmul %182, %204, %cst_65 {dimension_numbers = #tpu.dot_dimension_numbers<[1], [0], [0], [1], [0, 0, 1, 1], [], []>} : vector<8x8xf32>, vector<8x8xf32>, vector<8x8xf32> -> vector<8x8xf32>
    %cst_66 = arith.constant 0.353553385 : f32
    %206 = vector.broadcast %cst_66 : f32 to vector<8x8xf32>
    %207 = arith.mulf %205, %206 : vector<8x8xf32>
    %cst_67 = arith.constant dense<0xFF800000> : vector<8xf32>
    %208 = vector.multi_reduction <maximumf>, %207, %cst_67 [1] : vector<8x8xf32> to vector<8xf32>
    %209 = vector.shape_cast %208 : vector<8xf32> to vector<8x1xf32>
    %210 = vector.broadcast %209 : vector<8x1xf32> to vector<8x8xf32>
    %211 = arith.subf %207, %210 : vector<8x8xf32>
    %212 = math.exp %211 : vector<8x8xf32>
    %cst_68 = arith.constant dense<0.000000e+00> : vector<8xf32>
    %213 = vector.multi_reduction <add>, %212, %cst_68 [1] : vector<8x8xf32> to vector<8xf32>
    %214 = vector.shape_cast %213 : vector<8xf32> to vector<8x1xf32>
    %215 = tpu.reciprocal %214 {approx = true} : vector<8x1xf32> -> vector<8x1xf32>
    %216 = vector.broadcast %215 : vector<8x1xf32> to vector<8x8xf32>
    %217 = arith.mulf %212, %216 : vector<8x8xf32>
    %cst_69 = arith.constant dense<0.000000e+00> : vector<8x8xf32>
    %218 = tpu.matmul %217, %186, %cst_69 {dimension_numbers = #tpu.dot_dimension_numbers<[1], [0], [0], [1], [0, 0, 1, 1], [], []>} : vector<8x8xf32>, vector<8x8xf32>, vector<8x8xf32> -> vector<8x8xf32>
    %219 = vector.extract_strided_slice %13 {offsets = [0, 0], sizes = [1, 8], strides = [1, 1]} : vector<1x32xf32> to vector<1x8xf32>
    %220 = vector.broadcast %219 : vector<1x8xf32> to vector<8x8xf32>
    %221 = arith.mulf %218, %220 : vector<8x8xf32>
    %222 = arith.addf %203, %221 : vector<8x8xf32>
    %c8_70 = arith.constant 8 : index
    %c0_71 = arith.constant 0 : index
    %223 = vector.load %arg8[%c8_70, %c0_71] : memref<16x32xf32, #tpu.memory_space<vmem>>, vector<8x8xf32>
    tpu.vector_store %arg8[%c8_70, %c0_71], %222 {strides = array<i32>} : memref<16x32xf32, #tpu.memory_space<vmem>>, vector<8x8xf32>,
    %224 = vector.extract_strided_slice %5 {offsets = [8, 8], sizes = [8, 8], strides = [1, 1]} : vector<16x96xf32> to vector<8x8xf32>
    %225 = vector.extract_strided_slice %5 {offsets = [8, 40], sizes = [8, 8], strides = [1, 1]} : vector<16x96xf32> to vector<8x8xf32>
    %226 = vector.extract_strided_slice %5 {offsets = [8, 72], sizes = [8, 8], strides = [1, 1]} : vector<16x96xf32> to vector<8x8xf32>
    %227 = vector.extract_strided_slice %9 {offsets = [0, 40], sizes = [8, 8], strides = [1, 1]} : vector<8x96xf32> to vector<8x8xf32>
    %228 = vector.extract_strided_slice %9 {offsets = [0, 72], sizes = [8, 8], strides = [1, 1]} : vector<8x96xf32> to vector<8x8xf32>
    %229 = tpu.transpose %225, [1, 0] : vector<8x8xf32> -> vector<8x8xf32>
    %cst_72 = arith.constant dense<0.000000e+00> : vector<8x8xf32>
    %230 = tpu.matmul %224, %229, %cst_72 {dimension_numbers = #tpu.dot_dimension_numbers<[1], [0], [0], [1], [0, 0, 1, 1], [], []>} : vector<8x8xf32>, vector<8x8xf32>, vector<8x8xf32> -> vector<8x8xf32>
    %cst_73 = arith.constant 0.353553385 : f32
    %231 = vector.broadcast %cst_73 : f32 to vector<8x8xf32>
    %232 = arith.mulf %230, %231 : vector<8x8xf32>
    %cst_74 = arith.constant -1.000000e+04 : f32
    %233 = vector.broadcast %cst_74 : f32 to vector<8x8xf32>
    %234 = arith.select %12, %232, %233 : vector<8x8xi1>, vector<8x8xf32>
    %cst_75 = arith.constant dense<0xFF800000> : vector<8xf32>
    %235 = vector.multi_reduction <maximumf>, %234, %cst_75 [1] : vector<8x8xf32> to vector<8xf32>
    %236 = vector.shape_cast %235 : vector<8xf32> to vector<8x1xf32>
    %237 = vector.broadcast %236 : vector<8x1xf32> to vector<8x8xf32>
    %238 = arith.subf %234, %237 : vector<8x8xf32>
    %239 = math.exp %238 : vector<8x8xf32>
    %cst_76 = arith.constant dense<0.000000e+00> : vector<8xf32>
    %240 = vector.multi_reduction <add>, %239, %cst_76 [1] : vector<8x8xf32> to vector<8xf32>
    %241 = vector.shape_cast %240 : vector<8xf32> to vector<8x1xf32>
    %242 = tpu.reciprocal %241 {approx = true} : vector<8x1xf32> -> vector<8x1xf32>
    %243 = vector.broadcast %242 : vector<8x1xf32> to vector<8x8xf32>
    %244 = arith.mulf %239, %243 : vector<8x8xf32>
    %cst_77 = arith.constant dense<0.000000e+00> : vector<8x8xf32>
    %245 = tpu.matmul %244, %226, %cst_77 {dimension_numbers = #tpu.dot_dimension_numbers<[1], [0], [0], [1], [0, 0, 1, 1], [], []>} : vector<8x8xf32>, vector<8x8xf32>, vector<8x8xf32> -> vector<8x8xf32>
    %246 = tpu.transpose %227, [1, 0] : vector<8x8xf32> -> vector<8x8xf32>
    %cst_78 = arith.constant dense<0.000000e+00> : vector<8x8xf32>
    %247 = tpu.matmul %224, %246, %cst_78 {dimension_numbers = #tpu.dot_dimension_numbers<[1], [0], [0], [1], [0, 0, 1, 1], [], []>} : vector<8x8xf32>, vector<8x8xf32>, vector<8x8xf32> -> vector<8x8xf32>
    %cst_79 = arith.constant 0.353553385 : f32
    %248 = vector.broadcast %cst_79 : f32 to vector<8x8xf32>
    %249 = arith.mulf %247, %248 : vector<8x8xf32>
    %cst_80 = arith.constant dense<0xFF800000> : vector<8xf32>
    %250 = vector.multi_reduction <maximumf>, %249, %cst_80 [1] : vector<8x8xf32> to vector<8xf32>
    %251 = vector.shape_cast %250 : vector<8xf32> to vector<8x1xf32>
    %252 = vector.broadcast %251 : vector<8x1xf32> to vector<8x8xf32>
    %253 = arith.subf %249, %252 : vector<8x8xf32>
    %254 = math.exp %253 : vector<8x8xf32>
    %cst_81 = arith.constant dense<0.000000e+00> : vector<8xf32>
    %255 = vector.multi_reduction <add>, %254, %cst_81 [1] : vector<8x8xf32> to vector<8xf32>
    %256 = vector.shape_cast %255 : vector<8xf32> to vector<8x1xf32>
    %257 = tpu.reciprocal %256 {approx = true} : vector<8x1xf32> -> vector<8x1xf32>
    %258 = vector.broadcast %257 : vector<8x1xf32> to vector<8x8xf32>
    %259 = arith.mulf %254, %258 : vector<8x8xf32>
    %cst_82 = arith.constant dense<0.000000e+00> : vector<8x8xf32>
    %260 = tpu.matmul %259, %228, %cst_82 {dimension_numbers = #tpu.dot_dimension_numbers<[1], [0], [0], [1], [0, 0, 1, 1], [], []>} : vector<8x8xf32>, vector<8x8xf32>, vector<8x8xf32> -> vector<8x8xf32>
    %261 = vector.extract_strided_slice %13 {offsets = [0, 8], sizes = [1, 8], strides = [1, 1]} : vector<1x32xf32> to vector<1x8xf32>
    %262 = vector.broadcast %261 : vector<1x8xf32> to vector<8x8xf32>
    %263 = arith.mulf %260, %262 : vector<8x8xf32>
    %264 = arith.addf %245, %263 : vector<8x8xf32>
    %c8_83 = arith.constant 8 : index
    %c8_84 = arith.constant 8 : index
    %265 = vector.load %arg8[%c8_83, %c8_84] : memref<16x32xf32, #tpu.memory_space<vmem>>, vector<8x8xf32>
    tpu.vector_store %arg8[%c8_83, %c8_84], %264 {strides = array<i32>} : memref<16x32xf32, #tpu.memory_space<vmem>>, vector<8x8xf32>,
    %266 = vector.extract_strided_slice %5 {offsets = [8, 16], sizes = [8, 8], strides = [1, 1]} : vector<16x96xf32> to vector<8x8xf32>
    %267 = vector.extract_strided_slice %5 {offsets = [8, 48], sizes = [8, 8], strides = [1, 1]} : vector<16x96xf32> to vector<8x8xf32>
    %268 = vector.extract_strided_slice %5 {offsets = [8, 80], sizes = [8, 8], strides = [1, 1]} : vector<16x96xf32> to vector<8x8xf32>
    %269 = vector.extract_strided_slice %9 {offsets = [0, 48], sizes = [8, 8], strides = [1, 1]} : vector<8x96xf32> to vector<8x8xf32>
    %270 = vector.extract_strided_slice %9 {offsets = [0, 80], sizes = [8, 8], strides = [1, 1]} : vector<8x96xf32> to vector<8x8xf32>
    %271 = tpu.transpose %267, [1, 0] : vector<8x8xf32> -> vector<8x8xf32>
    %cst_85 = arith.constant dense<0.000000e+00> : vector<8x8xf32>
    %272 = tpu.matmul %266, %271, %cst_85 {dimension_numbers = #tpu.dot_dimension_numbers<[1], [0], [0], [1], [0, 0, 1, 1], [], []>} : vector<8x8xf32>, vector<8x8xf32>, vector<8x8xf32> -> vector<8x8xf32>
    %cst_86 = arith.constant 0.353553385 : f32
    %273 = vector.broadcast %cst_86 : f32 to vector<8x8xf32>
    %274 = arith.mulf %272, %273 : vector<8x8xf32>
    %cst_87 = arith.constant -1.000000e+04 : f32
    %275 = vector.broadcast %cst_87 : f32 to vector<8x8xf32>
    %276 = arith.select %12, %274, %275 : vector<8x8xi1>, vector<8x8xf32>
    %cst_88 = arith.constant dense<0xFF800000> : vector<8xf32>
    %277 = vector.multi_reduction <maximumf>, %276, %cst_88 [1] : vector<8x8xf32> to vector<8xf32>
    %278 = vector.shape_cast %277 : vector<8xf32> to vector<8x1xf32>
    %279 = vector.broadcast %278 : vector<8x1xf32> to vector<8x8xf32>
    %280 = arith.subf %276, %279 : vector<8x8xf32>
    %281 = math.exp %280 : vector<8x8xf32>
    %cst_89 = arith.constant dense<0.000000e+00> : vector<8xf32>
    %282 = vector.multi_reduction <add>, %281, %cst_89 [1] : vector<8x8xf32> to vector<8xf32>
    %283 = vector.shape_cast %282 : vector<8xf32> to vector<8x1xf32>
    %284 = tpu.reciprocal %283 {approx = true} : vector<8x1xf32> -> vector<8x1xf32>
    %285 = vector.broadcast %284 : vector<8x1xf32> to vector<8x8xf32>
    %286 = arith.mulf %281, %285 : vector<8x8xf32>
    %cst_90 = arith.constant dense<0.000000e+00> : vector<8x8xf32>
    %287 = tpu.matmul %286, %268, %cst_90 {dimension_numbers = #tpu.dot_dimension_numbers<[1], [0], [0], [1], [0, 0, 1, 1], [], []>} : vector<8x8xf32>, vector<8x8xf32>, vector<8x8xf32> -> vector<8x8xf32>
    %288 = tpu.transpose %269, [1, 0] : vector<8x8xf32> -> vector<8x8xf32>
    %cst_91 = arith.constant dense<0.000000e+00> : vector<8x8xf32>
    %289 = tpu.matmul %266, %288, %cst_91 {dimension_numbers = #tpu.dot_dimension_numbers<[1], [0], [0], [1], [0, 0, 1, 1], [], []>} : vector<8x8xf32>, vector<8x8xf32>, vector<8x8xf32> -> vector<8x8xf32>
    %cst_92 = arith.constant 0.353553385 : f32
    %290 = vector.broadcast %cst_92 : f32 to vector<8x8xf32>
    %291 = arith.mulf %289, %290 : vector<8x8xf32>
    %cst_93 = arith.constant dense<0xFF800000> : vector<8xf32>
    %292 = vector.multi_reduction <maximumf>, %291, %cst_93 [1] : vector<8x8xf32> to vector<8xf32>
    %293 = vector.shape_cast %292 : vector<8xf32> to vector<8x1xf32>
    %294 = vector.broadcast %293 : vector<8x1xf32> to vector<8x8xf32>
    %295 = arith.subf %291, %294 : vector<8x8xf32>
    %296 = math.exp %295 : vector<8x8xf32>
    %cst_94 = arith.constant dense<0.000000e+00> : vector<8xf32>
    %297 = vector.multi_reduction <add>, %296, %cst_94 [1] : vector<8x8xf32> to vector<8xf32>
    %298 = vector.shape_cast %297 : vector<8xf32> to vector<8x1xf32>
    %299 = tpu.reciprocal %298 {approx = true} : vector<8x1xf32> -> vector<8x1xf32>
    %300 = vector.broadcast %299 : vector<8x1xf32> to vector<8x8xf32>
    %301 = arith.mulf %296, %300 : vector<8x8xf32>
    %cst_95 = arith.constant dense<0.000000e+00> : vector<8x8xf32>
    %302 = tpu.matmul %301, %270, %cst_95 {dimension_numbers = #tpu.dot_dimension_numbers<[1], [0], [0], [1], [0, 0, 1, 1], [], []>} : vector<8x8xf32>, vector<8x8xf32>, vector<8x8xf32> -> vector<8x8xf32>
    %303 = vector.extract_strided_slice %13 {offsets = [0, 16], sizes = [1, 8], strides = [1, 1]} : vector<1x32xf32> to vector<1x8xf32>
    %304 = vector.broadcast %303 : vector<1x8xf32> to vector<8x8xf32>
    %305 = arith.mulf %302, %304 : vector<8x8xf32>
    %306 = arith.addf %287, %305 : vector<8x8xf32>
    %c8_96 = arith.constant 8 : index
    %c16_97 = arith.constant 16 : index
    %307 = vector.load %arg8[%c8_96, %c16_97] : memref<16x32xf32, #tpu.memory_space<vmem>>, vector<8x8xf32>
    tpu.vector_store %arg8[%c8_96, %c16_97], %306 {strides = array<i32>} : memref<16x32xf32, #tpu.memory_space<vmem>>, vector<8x8xf32>,
    %308 = vector.extract_strided_slice %5 {offsets = [8, 24], sizes = [8, 8], strides = [1, 1]} : vector<16x96xf32> to vector<8x8xf32>
    %309 = vector.extract_strided_slice %5 {offsets = [8, 56], sizes = [8, 8], strides = [1, 1]} : vector<16x96xf32> to vector<8x8xf32>
    %310 = vector.extract_strided_slice %5 {offsets = [8, 88], sizes = [8, 8], strides = [1, 1]} : vector<16x96xf32> to vector<8x8xf32>
    %311 = vector.extract_strided_slice %9 {offsets = [0, 56], sizes = [8, 8], strides = [1, 1]} : vector<8x96xf32> to vector<8x8xf32>
    %312 = vector.extract_strided_slice %9 {offsets = [0, 88], sizes = [8, 8], strides = [1, 1]} : vector<8x96xf32> to vector<8x8xf32>
    %313 = tpu.transpose %309, [1, 0] : vector<8x8xf32> -> vector<8x8xf32>
    %cst_98 = arith.constant dense<0.000000e+00> : vector<8x8xf32>
    %314 = tpu.matmul %308, %313, %cst_98 {dimension_numbers = #tpu.dot_dimension_numbers<[1], [0], [0], [1], [0, 0, 1, 1], [], []>} : vector<8x8xf32>, vector<8x8xf32>, vector<8x8xf32> -> vector<8x8xf32>
    %cst_99 = arith.constant 0.353553385 : f32
    %315 = vector.broadcast %cst_99 : f32 to vector<8x8xf32>
    %316 = arith.mulf %314, %315 : vector<8x8xf32>
    %cst_100 = arith.constant -1.000000e+04 : f32
    %317 = vector.broadcast %cst_100 : f32 to vector<8x8xf32>
    %318 = arith.select %12, %316, %317 : vector<8x8xi1>, vector<8x8xf32>
    %cst_101 = arith.constant dense<0xFF800000> : vector<8xf32>
    %319 = vector.multi_reduction <maximumf>, %318, %cst_101 [1] : vector<8x8xf32> to vector<8xf32>
    %320 = vector.shape_cast %319 : vector<8xf32> to vector<8x1xf32>
    %321 = vector.broadcast %320 : vector<8x1xf32> to vector<8x8xf32>
    %322 = arith.subf %318, %321 : vector<8x8xf32>
    %323 = math.exp %322 : vector<8x8xf32>
    %cst_102 = arith.constant dense<0.000000e+00> : vector<8xf32>
    %324 = vector.multi_reduction <add>, %323, %cst_102 [1] : vector<8x8xf32> to vector<8xf32>
    %325 = vector.shape_cast %324 : vector<8xf32> to vector<8x1xf32>
    %326 = tpu.reciprocal %325 {approx = true} : vector<8x1xf32> -> vector<8x1xf32>
    %327 = vector.broadcast %326 : vector<8x1xf32> to vector<8x8xf32>
    %328 = arith.mulf %323, %327 : vector<8x8xf32>
    %cst_103 = arith.constant dense<0.000000e+00> : vector<8x8xf32>
    %329 = tpu.matmul %328, %310, %cst_103 {dimension_numbers = #tpu.dot_dimension_numbers<[1], [0], [0], [1], [0, 0, 1, 1], [], []>} : vector<8x8xf32>, vector<8x8xf32>, vector<8x8xf32> -> vector<8x8xf32>
    %330 = tpu.transpose %311, [1, 0] : vector<8x8xf32> -> vector<8x8xf32>
    %cst_104 = arith.constant dense<0.000000e+00> : vector<8x8xf32>
    %331 = tpu.matmul %308, %330, %cst_104 {dimension_numbers = #tpu.dot_dimension_numbers<[1], [0], [0], [1], [0, 0, 1, 1], [], []>} : vector<8x8xf32>, vector<8x8xf32>, vector<8x8xf32> -> vector<8x8xf32>
    %cst_105 = arith.constant 0.353553385 : f32
    %332 = vector.broadcast %cst_105 : f32 to vector<8x8xf32>
    %333 = arith.mulf %331, %332 : vector<8x8xf32>
    %cst_106 = arith.constant dense<0xFF800000> : vector<8xf32>
    %334 = vector.multi_reduction <maximumf>, %333, %cst_106 [1] : vector<8x8xf32> to vector<8xf32>
    %335 = vector.shape_cast %334 : vector<8xf32> to vector<8x1xf32>
    %336 = vector.broadcast %335 : vector<8x1xf32> to vector<8x8xf32>
    %337 = arith.subf %333, %336 : vector<8x8xf32>
    %338 = math.exp %337 : vector<8x8xf32>
    %cst_107 = arith.constant dense<0.000000e+00> : vector<8xf32>
    %339 = vector.multi_reduction <add>, %338, %cst_107 [1] : vector<8x8xf32> to vector<8xf32>
    %340 = vector.shape_cast %339 : vector<8xf32> to vector<8x1xf32>
    %341 = tpu.reciprocal %340 {approx = true} : vector<8x1xf32> -> vector<8x1xf32>
    %342 = vector.broadcast %341 : vector<8x1xf32> to vector<8x8xf32>
    %343 = arith.mulf %338, %342 : vector<8x8xf32>
    %cst_108 = arith.constant dense<0.000000e+00> : vector<8x8xf32>
    %344 = tpu.matmul %343, %312, %cst_108 {dimension_numbers = #tpu.dot_dimension_numbers<[1], [0], [0], [1], [0, 0, 1, 1], [], []>} : vector<8x8xf32>, vector<8x8xf32>, vector<8x8xf32> -> vector<8x8xf32>
    %345 = vector.extract_strided_slice %13 {offsets = [0, 24], sizes = [1, 8], strides = [1, 1]} : vector<1x32xf32> to vector<1x8xf32>
    %346 = vector.broadcast %345 : vector<1x8xf32> to vector<8x8xf32>
    %347 = arith.mulf %344, %346 : vector<8x8xf32>
    %348 = arith.addf %329, %347 : vector<8x8xf32>
    %c8_109 = arith.constant 8 : index
    %c24_110 = arith.constant 24 : index
    %349 = vector.load %arg8[%c8_109, %c24_110] : memref<16x32xf32, #tpu.memory_space<vmem>>, vector<8x8xf32>
    tpu.vector_store %arg8[%c8_109, %c24_110], %348 {strides = array<i32>} : memref<16x32xf32, #tpu.memory_space<vmem>>, vector<8x8xf32>,
    %c0_111 = arith.constant 0 : index
    %c0_112 = arith.constant 0 : index
    %350 = vector.load %arg8[%c0_111, %c0_112] : memref<16x32xf32, #tpu.memory_space<vmem>>, vector<16x32xf32>
    %c0_113 = arith.constant 0 : index
    %c0_114 = arith.constant 0 : index
    %351 = vector.load %arg4[%c0_113, %c0_114] : memref<32x32xf32, #tpu.memory_space<vmem>>, vector<32x32xf32>
    %cst_115 = arith.constant dense<0.000000e+00> : vector<16x32xf32>
    %352 = tpu.matmul %350, %351, %cst_115 {dimension_numbers = #tpu.dot_dimension_numbers<[1], [0], [0], [1], [0, 0, 1, 1], [], []>} : vector<16x32xf32>, vector<32x32xf32>, vector<16x32xf32> -> vector<16x32xf32>
    %c0_116 = arith.constant 0 : index
    %c0_117 = arith.constant 0 : index
    %353 = vector.load %arg5[%c0_116, %c0_117] : memref<1x32xf32, #tpu.memory_space<vmem>>, vector<1x32xf32>
    %354 = vector.broadcast %353 : vector<1x32xf32> to vector<16x32xf32>
    %355 = arith.addf %352, %354 : vector<16x32xf32>
    %c0_118 = arith.constant 0 : index
    %c0_119 = arith.constant 0 : index
    %356 = vector.load %arg7[%c0_118, %c0_119] : memref<16x32xf32, #tpu.memory_space<vmem>>, vector<16x32xf32>
    tpu.vector_store %arg7[%c0_118, %c0_119], %355 {strides = array<i32>} : memref<16x32xf32, #tpu.memory_space<vmem>>, vector<16x32xf32>,
    return
  }
}

</mosaic_0001>

<llo_original>
// kernel: tpu_custom_call.1
$region0: #{tpu_custom_call.1}
  #allocation0 [shape = 'u32[]', space=smem, size = 0x4, offset = 0x4, fixed_abs, tag = 'smem constant byte address 0x4 - core index']
  #allocation1 [shape = 'u32[144,128]{1,0:T(1,128)}', space=vmem, size = 0x12000, scoped, tag = 'internal scratch']
  #allocation2 [shape = 'f32[16,32]{1,0:T(8,128)}', space=vmem, size = 0x2000, scoped, tag = 'scratch operand']
  %s0 = inlined_call_operand.hbm [shape: f32[16,32], index: 0, kind: input, shape index: {}]
  %s1 = inlined_call_operand.hbm [shape: f32[8,32], index: 1, kind: input, shape index: {}]
  %s2 = inlined_call_operand.hbm [shape: f32[32,96], index: 2, kind: input, shape index: {}]
  %s3 = inlined_call_operand.vmem [shape: f32[1,96], index: 3, kind: input, shape index: {}]
  %s4 = inlined_call_operand.hbm [shape: f32[32,32], index: 4, kind: input, shape index: {}]
  %s5 = inlined_call_operand.vmem [shape: f32[1,32], index: 5, kind: input, shape index: {}]
  %s6 = inlined_call_operand.vmem [shape: f32[1,32], index: 6, kind: input, shape index: {}]
  %s7 = inlined_call_operand.hbm [shape: f32[16,32], index: 7, kind: output, shape index: {}]
  %s8 = sld [smem:[#allocation0]]
  $region54: #{tpu_custom_call.1} parent=0
    _
  %s10 = ssub.s32 1, %s8
  %s11 = scalar_select 0, %s10, %s8
  $region1: #{tpu_custom_call.1} parent=0
    #allocation3 [shape = 'u8[8192]{0}', space=vmem, size = 0x2000, scoped, tag = 'input window, operand 0, single buffered']
    #allocation4 [shape = 's32[1]{0}', space=sflag, size = 0x4, scoped, tag = 'scoped memory for tpu_custom_call.1']
    #allocation5 [shape = 's32[1]{0}', space=sflag, size = 0x4, scoped, tag = 'scoped memory for tpu_custom_call.1']
    #allocation6 [shape = 'u8[4096]{0}', space=vmem, size = 0x1000, scoped, tag = 'input window, operand 1, single buffered']
    #allocation7 [shape = 's32[1]{0}', space=sflag, size = 0x4, scoped, tag = 'scoped memory for tpu_custom_call.1']
    #allocation8 [shape = 'u8[16384]{0}', space=vmem, size = 0x4000, scoped, tag = 'input window, operand 2, single buffered']
    #allocation9 [shape = 'u8[16384]{0}', space=vmem, size = 0x4000, scoped, tag = 'input window, operand 4, single buffered']
    #allocation10 [shape = 's32[1]{0}', space=sflag, size = 0x4, scoped, tag = 'scoped memory for tpu_custom_call.1']
    #allocation11 [shape = 'u8[8192]{0}', space=vmem, size = 0x2000, scoped, tag = 'output window, operand 0, single buffered']
    %12 = vsyncpa [#allocation4], 0
    %13 = vsyncpa [#allocation7], 0
    %14 = vsyncpa [#allocation10], 0
    %15 = vsyncpa [#allocation5], 0
    // Predicated region
    $region2: #{tpu_custom_call.1} parent=1 // pred_check
      _
    $region3: #{tpu_custom_call.1} parent=1 // pred_check_branch
      %17 = sbr.rel (0) target = $region5
    $region4: #{tpu_custom_call.1} parent=1 // pred_region
      %s19 = ssub.s32 256, 256
      %20 = vsyncadd [#allocation4], %s19
      %s21 = sshll.u32 [#allocation3], 4
      %s22 = int_to_ptr.vmem [resolvable:$true] %s21
      %27 = dma.hbm_to_vmem [thread:$0]  %s0, 256, %s22, [#allocation4], 128, 128, 8
    $region5: #{tpu_custom_call.1} parent=1 // pred_fallthru
      _
    // Predicated region
    $region6: #{tpu_custom_call.1} parent=1 // pred_check
      _
    $region7: #{tpu_custom_call.1} parent=1 // pred_check_branch
      %29 = sbr.rel (0) target = $region9
    $region8: #{tpu_custom_call.1} parent=1 // pred_region
      %s31 = ssub.s32 128, 128
      %32 = vsyncadd [#allocation7], %s31
      %s34 = sshll.u32 [#allocation6], 4
      %s35 = int_to_ptr.vmem [resolvable:$true] %s34
      %37 = dma.hbm_to_vmem [thread:$0]  %s1, 128, %s35, [#allocation7]
    $region9: #{tpu_custom_call.1} parent=1 // pred_fallthru
      _
    // Predicated region
    $region10: #{tpu_custom_call.1} parent=1 // pred_check
      _
    $region11: #{tpu_custom_call.1} parent=1 // pred_check_branch
      %39 = sbr.rel (0) target = $region13
    $region12: #{tpu_custom_call.1} parent=1 // pred_region
      %s41 = ssub.s32 512, 512
      %42 = vsyncadd [#allocation7], %s41
      %s43 = sshll.u32 [#allocation8], 4
      %s44 = int_to_ptr.vmem [resolvable:$true] %s43
      %49 = dma.hbm_to_vmem [thread:$0]  %s2, 512, %s44, [#allocation7], 128, 128, 8
    $region13: #{tpu_custom_call.1} parent=1 // pred_fallthru
      _
    // Predicated region
    $region14: #{tpu_custom_call.1} parent=1 // pred_check
      _
    $region15: #{tpu_custom_call.1} parent=1 // pred_check_branch
      %51 = sbr.rel (0) target = $region17
    $region16: #{tpu_custom_call.1} parent=1 // pred_region
      _
    $region17: #{tpu_custom_call.1} parent=1 // pred_fallthru
      _
    // Predicated region
    $region18: #{tpu_custom_call.1} parent=1 // pred_check
      _
    $region19: #{tpu_custom_call.1} parent=1 // pred_check_branch
      %53 = sbr.rel (0) target = $region21
    $region20: #{tpu_custom_call.1} parent=1 // pred_region
      %s55 = ssub.s32 512, 512
      %56 = vsyncadd [#allocation10], %s55
      %s57 = sshll.u32 [#allocation9], 4
      %s58 = int_to_ptr.vmem [resolvable:$true] %s57
      %63 = dma.hbm_to_vmem [thread:$0]  %s4, 512, %s58, [#allocation10], 128, 128, 8
    $region21: #{tpu_custom_call.1} parent=1 // pred_fallthru
      _
    // Predicated region
    $region22: #{tpu_custom_call.1} parent=1 // pred_check
      _
    $region23: #{tpu_custom_call.1} parent=1 // pred_check_branch
      %65 = sbr.rel (0) target = $region25
    $region24: #{tpu_custom_call.1} parent=1 // pred_region
      _
    $region25: #{tpu_custom_call.1} parent=1 // pred_fallthru
      _
    // Predicated region
    $region26: #{tpu_custom_call.1} parent=1 // pred_check
      _
    $region27: #{tpu_custom_call.1} parent=1 // pred_check_branch
      %67 = sbr.rel (0) target = $region29
    $region28: #{tpu_custom_call.1} parent=1 // pred_region
      _
    $region29: #{tpu_custom_call.1} parent=1 // pred_fallthru
      _
    // Predicated region
    $region30: #{tpu_custom_call.1} parent=1 // pred_check
      _
    $region31: #{tpu_custom_call.1} parent=1 // pred_check_branch
      %69 = sbr.rel (0) target = $region33
    $region32: #{tpu_custom_call.1} parent=1 // pred_region
      %70 = dma.done [#allocation4], 256
    $region33: #{tpu_custom_call.1} parent=1 // pred_fallthru
      _
    // Predicated region
    $region34: #{tpu_custom_call.1} parent=1 // pred_check
      _
    $region35: #{tpu_custom_call.1} parent=1 // pred_check_branch
      %72 = sbr.rel (0) target = $region37
    $region36: #{tpu_custom_call.1} parent=1 // pred_region
      %73 = dma.done [#allocation7], 128
    $region37: #{tpu_custom_call.1} parent=1 // pred_fallthru
      _
    // Predicated region
    $region38: #{tpu_custom_call.1} parent=1 // pred_check
      _
    $region39: #{tpu_custom_call.1} parent=1 // pred_check_branch
      %75 = sbr.rel (0) target = $region41
    $region40: #{tpu_custom_call.1} parent=1 // pred_region
      %76 = dma.done [#allocation7], 512
    $region41: #{tpu_custom_call.1} parent=1 // pred_fallthru
      _
    // Predicated region
    $region42: #{tpu_custom_call.1} parent=1 // pred_check
      _
    $region43: #{tpu_custom_call.1} parent=1 // pred_check_branch
      %78 = sbr.rel (0) target = $region45
    $region44: #{tpu_custom_call.1} parent=1 // pred_region
      %79 = dma.done [#allocation10], 512
    $region45: #{tpu_custom_call.1} parent=1 // pred_fallthru
      _
    %v80 = vld [vmem:[#allocation8] sm:$0xff]
    %v81 = vld [vmem:[#allocation8 + $0x8] sm:$0xff]
    %v82 = vld [vmem:[#allocation8 + $0x10] sm:$0xff]
    %v83 = vld [vmem:[#allocation8 + $0x18] sm:$0xff]
    %v84 = vld [vmem:[%s3] sm:$0x1]
    %v85 = vld [vmem:[#allocation3] sm:$0xff]
    %v86 = vld [vmem:[#allocation3 + $0x8] sm:$0xff]
    %v88 = vlaneseq
    %v89 = vshrl.u32 %v88, 7
    %v90 = vsub.s32 0, %v89
    %v91 = vrot.slane %v84, %v90
    %vm93 = vcmask 261120
    %v95 = vsel %vm93, %v85, 0
    %v98 = vsel %vm93, %v86, 0
    %100 = vmatprep.subr.mxu0 0.0
    %101 = vmatpush1.msra.mxu0 %v80
    %102 = vmatprep.subr.mxu0 0.0
    %103 = vmatpush1.msra.mxu0 %v81
    %104 = vmatprep.subr.mxu0 0.0
    %105 = vmatpush1.msra.mxu0 %v82
    %106 = vmatprep.subr.mxu0 0.0
    %107 = vmatpush1.msra.mxu0 %v83
    %108 = vmatprep.subr.mxu0 0.0
    %109 = vmatpush1.msra.mxu0 0.0
    %110 = vmatprep.subr.mxu0 0.0
    %111 = vmatpush1.msra.mxu0 0.0
    %112 = vmatprep.subr.mxu0 0.0
    %113 = vmatpush1.msra.mxu0 0.0
    %114 = vmatprep.subr.mxu0 0.0
    %115 = vmatpush1.msra.mxu0 0.0
    %116 = vmatprep.subr.mxu0 0.0
    %117 = vmatpush1.msra.mxu0 0.0
    %118 = vmatprep.subr.mxu0 0.0
    %119 = vmatpush1.msra.mxu0 0.0
    %120 = vmatprep.subr.mxu0 0.0
    %121 = vmatpush1.msra.mxu0 0.0
    %122 = vmatprep.subr.mxu0 0.0
    %123 = vmatpush1.msra.mxu0 0.0
    %124 = vmatprep.subr.mxu0 0.0
    %125 = vmatpush1.msra.mxu0 0.0
    %126 = vmatprep.subr.mxu0 0.0
    %127 = vmatpush1.msra.mxu0 0.0
    %128 = vmatprep.subr.mxu0 0.0
    %129 = vmatpush1.msra.mxu0 0.0
    %130 = vmatprep.subr.mxu0 0.0
    %131 = vmatpush1.msra.mxu0 0.0
    %132 = vmatprep.subr.mxu0 0.0
    %133 = vmatpush1.msra.mxu0 0.0
    %134 = vmatprep.subr.mxu0 0.0
    %135 = vmatpush1.msra.mxu0 0.0
    %136 = vmatprep.subr.mxu0 0.0
    %137 = vmatpush1.msra.mxu0 0.0
    %138 = vmatprep.subr.mxu0 0.0
    %139 = vmatpush1.msra.mxu0 0.0
    %140 = vmatprep.subr.mxu0 0.0
    %141 = vmatpush1.msra.mxu0 0.0
    %142 = vmatprep.subr.mxu0 0.0
    %143 = vmatpush1.msra.mxu0 0.0
    %144 = vmatprep.subr.mxu0 0.0
    %145 = vmatpush1.msra.mxu0 0.0
    %146 = vmatprep.subr.mxu0 0.0
    %147 = vmatpush1.msra.mxu0 0.0
    %148 = vmatprep.subr.mxu0 0.0
    %149 = vmatpush1.msra.mxu0 0.0
    %150 = vmatprep.subr.mxu0 0.0
    %151 = vmatpush1.msra.mxu0 0.0
    %152 = vmatprep.subr.mxu0 0.0
    %153 = vmatpush1.msra.mxu0 0.0
    %154 = vmatprep.subr.mxu0 0.0
    %155 = vmatpush1.msra.mxu0 0.0
    %156 = vmatprep.subr.mxu0 0.0
    %157 = vmatpush1.msra.mxu0 0.0
    %158 = vmatprep.subr.mxu0 0.0
    %159 = vmatpush1.msra.mxu0 0.0
    %160 = vmatprep.subr.mxu0 0.0
    %161 = vmatpush1.msra.mxu0 0.0
    %162 = vmatprep.subr.mxu0 0.0
    %163 = vmatpush1.msra.mxu0 0.0
    %164 = vmatprep.mubr.f32.mxu0 0.0
    %165 = vmatmul.mubr.f32.gmra.mrb[0].mxu0 %v95
    %v166 = vpop.f32.mrb[0].mxu0
    %v167 = vadd.f32 %v91, %v166
    %v168 = vpop.f32.mrb[0].mxu0
    %169 = vmatprep.mubr.f32.mxu0 0.0
    %170 = vmatmul.mubr.f32.gmra.mrb[0].mxu0 %v98
    %v171 = vpop.f32.mrb[0].mxu0
    %v172 = vadd.f32 %v91, %v171
    %v173 = vpop.f32.mrb[0].mxu0
    %174 = vdwg.mxu0
    %v175 = vld [vmem:[#allocation6] sm:$0xff]
    %v177 = vsel %vm93, %v175, 0
    %179 = vmatprep.subr.mxu0 0.0
    %180 = vmatpush1.msra.mxu0 %v80
    %181 = vmatprep.subr.mxu0 0.0
    %182 = vmatpush1.msra.mxu0 %v81
    %183 = vmatprep.subr.mxu0 0.0
    %184 = vmatpush1.msra.mxu0 %v82
    %185 = vmatprep.subr.mxu0 0.0
    %186 = vmatpush1.msra.mxu0 %v83
    %187 = vmatprep.subr.mxu0 0.0
    %188 = vmatpush1.msra.mxu0 0.0
    %189 = vmatprep.subr.mxu0 0.0
    %190 = vmatpush1.msra.mxu0 0.0
    %191 = vmatprep.subr.mxu0 0.0
    %192 = vmatpush1.msra.mxu0 0.0
    %193 = vmatprep.subr.mxu0 0.0
    %194 = vmatpush1.msra.mxu0 0.0
    %195 = vmatprep.subr.mxu0 0.0
    %196 = vmatpush1.msra.mxu0 0.0
    %197 = vmatprep.subr.mxu0 0.0
    %198 = vmatpush1.msra.mxu0 0.0
    %199 = vmatprep.subr.mxu0 0.0
    %200 = vmatpush1.msra.mxu0 0.0
    %201 = vmatprep.subr.mxu0 0.0
    %202 = vmatpush1.msra.mxu0 0.0
    %203 = vmatprep.subr.mxu0 0.0
    %204 = vmatpush1.msra.mxu0 0.0
    %205 = vmatprep.subr.mxu0 0.0
    %206 = vmatpush1.msra.mxu0 0.0
    %207 = vmatprep.subr.mxu0 0.0
    %208 = vmatpush1.msra.mxu0 0.0
    %209 = vmatprep.subr.mxu0 0.0
    %210 = vmatpush1.msra.mxu0 0.0
    %211 = vmatprep.subr.mxu0 0.0
    %212 = vmatpush1.msra.mxu0 0.0
    %213 = vmatprep.subr.mxu0 0.0
    %214 = vmatpush1.msra.mxu0 0.0
    %215 = vmatprep.subr.mxu0 0.0
    %216 = vmatpush1.msra.mxu0 0.0
    %217 = vmatprep.subr.mxu0 0.0
    %218 = vmatpush1.msra.mxu0 0.0
    %219 = vmatprep.subr.mxu0 0.0
    %220 = vmatpush1.msra.mxu0 0.0
    %221 = vmatprep.subr.mxu0 0.0
    %222 = vmatpush1.msra.mxu0 0.0
    %223 = vmatprep.subr.mxu0 0.0
    %224 = vmatpush1.msra.mxu0 0.0
    %225 = vmatprep.subr.mxu0 0.0
    %226 = vmatpush1.msra.mxu0 0.0
    %227 = vmatprep.subr.mxu0 0.0
    %228 = vmatpush1.msra.mxu0 0.0
    %229 = vmatprep.subr.mxu0 0.0
    %230 = vmatpush1.msra.mxu0 0.0
    %231 = vmatprep.subr.mxu0 0.0
    %232 = vmatpush1.msra.mxu0 0.0
    %233 = vmatprep.subr.mxu0 0.0
    %234 = vmatpush1.msra.mxu0 0.0
    %235 = vmatprep.subr.mxu0 0.0
    %236 = vmatpush1.msra.mxu0 0.0
    %237 = vmatprep.subr.mxu0 0.0
    %238 = vmatpush1.msra.mxu0 0.0
    %239 = vmatprep.subr.mxu0 0.0
    %240 = vmatpush1.msra.mxu0 0.0
    %241 = vmatprep.subr.mxu0 0.0
    %242 = vmatpush1.msra.mxu0 0.0
    %243 = vmatprep.mubr.f32.mxu0 0.0
    %244 = vmatmul.mubr.f32.gmra.mrb[0].mxu0 %v177
    %v245 = vpop.f32.mrb[0].mxu0
    %v246 = vadd.f32 %v91, %v245
    %v247 = vpop.f32.mrb[0].mxu0
    %248 = vdwg.mxu0
    %v249 = vlaneseq
    %v250 = vshrl.u32 %v249, 7
    %v251 = vlaneseq
    %v252 = vand.u32 %v251, 127
    %vm253 = vcmp.le.s32.totalorder %v252, %v250
    %v254 = vld [vmem:[%s6] sm:$0x1]
    %256 = vrot.lane.b32.xlu0 %v167, 96
    %v257 = vpop.permute.xlu0 %256
    %vm258 = vcmask 64512
    %v259 = vsel %vm258, %v167, 0
    %v261 = vsel %vm258, %v257, 0
    %263 = vmatprep.subr.mxu0 0.0
    %264 = vmatpush1.xpose.msra.mxu0 %v261
    %265 = vmatprep.subr.mxu0 0.0
    %266 = vmatpush1.xpose.msra.mxu0 0.0
    %267 = vmatprep.subr.mxu0 0.0
    %268 = vmatpush1.xpose.msra.mxu0 0.0
    %269 = vmatprep.subr.mxu0 0.0
    %270 = vmatpush1.xpose.msra.mxu0 0.0
    %271 = vmatprep.subr.mxu0 0.0
    %272 = vmatpush1.xpose.msra.mxu0 0.0
    %273 = vmatprep.subr.mxu0 0.0
    %274 = vmatpush1.xpose.msra.mxu0 0.0
    %275 = vmatprep.subr.mxu0 0.0
    %276 = vmatpush1.xpose.msra.mxu0 0.0
    %277 = vmatprep.subr.mxu0 0.0
    %278 = vmatpush1.xpose.msra.mxu0 0.0
    %279 = vmatprep.subr.mxu0 0.0
    %280 = vmatpush1.xpose.msra.mxu0 0.0
    %281 = vmatprep.subr.mxu0 0.0
    %282 = vmatpush1.xpose.msra.mxu0 0.0
    %283 = vmatprep.subr.mxu0 0.0
    %284 = vmatpush1.xpose.msra.mxu0 0.0
    %285 = vmatprep.subr.mxu0 0.0
    %286 = vmatpush1.xpose.msra.mxu0 0.0
    %287 = vmatprep.subr.mxu0 0.0
    %288 = vmatpush1.xpose.msra.mxu0 0.0
    %289 = vmatprep.subr.mxu0 0.0
    %290 = vmatpush1.xpose.msra.mxu0 0.0
    %291 = vmatprep.subr.mxu0 0.0
    %292 = vmatpush1.xpose.msra.mxu0 0.0
    %293 = vmatprep.subr.mxu0 0.0
    %294 = vmatpush1.xpose.msra.mxu0 0.0
    %295 = vmatprep.subr.mxu0 0.0
    %296 = vmatpush1.xpose.msra.mxu0 0.0
    %297 = vmatprep.subr.mxu0 0.0
    %298 = vmatpush1.xpose.msra.mxu0 0.0
    %299 = vmatprep.subr.mxu0 0.0
    %300 = vmatpush1.xpose.msra.mxu0 0.0
    %301 = vmatprep.subr.mxu0 0.0
    %302 = vmatpush1.xpose.msra.mxu0 0.0
    %303 = vmatprep.subr.mxu0 0.0
    %304 = vmatpush1.xpose.msra.mxu0 0.0
    %305 = vmatprep.subr.mxu0 0.0
    %306 = vmatpush1.xpose.msra.mxu0 0.0
    %307 = vmatprep.subr.mxu0 0.0
    %308 = vmatpush1.xpose.msra.mxu0 0.0
    %309 = vmatprep.subr.mxu0 0.0
    %310 = vmatpush1.xpose.msra.mxu0 0.0
    %311 = vmatprep.subr.mxu0 0.0
    %312 = vmatpush1.xpose.msra.mxu0 0.0
    %313 = vmatprep.subr.mxu0 0.0
    %314 = vmatpush1.xpose.msra.mxu0 0.0
    %315 = vmatprep.subr.mxu0 0.0
    %316 = vmatpush1.xpose.msra.mxu0 0.0
    %317 = vmatprep.subr.mxu0 0.0
    %318 = vmatpush1.xpose.msra.mxu0 0.0
    %319 = vmatprep.subr.mxu0 0.0
    %320 = vmatpush1.xpose.msra.mxu0 0.0
    %321 = vmatprep.subr.mxu0 0.0
    %322 = vmatpush1.xpose.msra.mxu0 0.0
    %323 = vmatprep.subr.mxu0 0.0
    %324 = vmatpush1.xpose.msra.mxu0 0.0
    %325 = vmatprep.subr.mxu0 0.0
    %326 = vmatpush1.xpose.msra.mxu0 0.0
    %327 = vmatprep.mubr.f32.mxu0 0.0
    %328 = vmatmul.mubr.f32.gmra.mrb[0].mxu0 %v259
    %v329 = vpop.f32.mrb[0].mxu0
    %v330 = vadd.f32 0.0, %v329
    %v331 = vpop.f32.mrb[0].mxu0
    %332 = vdwg.mxu0
    %v333 = vmul.f32 %v330, 0.35355338
    %v334 = vsel %vm253, %v333, -10000.0
    %v335 = vsel %vm258, %v334, -inf
    %336 = vmax.xlane.f32.xlu0 %v335
    %v337 = vpop.xlane.xlu0 %336
    %v338 = vsub.f32 %v334, %v337
    %v339 = vmul.f32 %v338, 1.442695
    %v340 = vpow.pop %v339
    %v341 = vsel %vm258, %v340, 0.0
    %342 = vadd.xlane.f32.xlu0 %v341
    %v343 = vpop.xlane.xlu0 %342
    %v344 = vrcp.pop %v343
    %v345 = vmul.f32 %v340, %v344
    %347 = vrot.lane.b32.xlu0 %v246, 96
    %v348 = vpop.permute.xlu0 %347
    %v349 = vsel %vm258, %v348, 0
    %351 = vmatprep.subr.mxu0 0.0
    %352 = vmatpush1.xpose.msra.mxu0 %v349
    %353 = vmatprep.subr.mxu0 0.0
    %354 = vmatpush1.xpose.msra.mxu0 0.0
    %355 = vmatprep.subr.mxu0 0.0
    %356 = vmatpush1.xpose.msra.mxu0 0.0
    %357 = vmatprep.subr.mxu0 0.0
    %358 = vmatpush1.xpose.msra.mxu0 0.0
    %359 = vmatprep.subr.mxu0 0.0
    %360 = vmatpush1.xpose.msra.mxu0 0.0
    %361 = vmatprep.subr.mxu0 0.0
    %362 = vmatpush1.xpose.msra.mxu0 0.0
    %363 = vmatprep.subr.mxu0 0.0
    %364 = vmatpush1.xpose.msra.mxu0 0.0
    %365 = vmatprep.subr.mxu0 0.0
    %366 = vmatpush1.xpose.msra.mxu0 0.0
    %367 = vmatprep.subr.mxu0 0.0
    %368 = vmatpush1.xpose.msra.mxu0 0.0
    %369 = vmatprep.subr.mxu0 0.0
    %370 = vmatpush1.xpose.msra.mxu0 0.0
    %371 = vmatprep.subr.mxu0 0.0
    %372 = vmatpush1.xpose.msra.mxu0 0.0
    %373 = vmatprep.subr.mxu0 0.0
    %374 = vmatpush1.xpose.msra.mxu0 0.0
    %375 = vmatprep.subr.mxu0 0.0
    %376 = vmatpush1.xpose.msra.mxu0 0.0
    %377 = vmatprep.subr.mxu0 0.0
    %378 = vmatpush1.xpose.msra.mxu0 0.0
    %379 = vmatprep.subr.mxu0 0.0
    %380 = vmatpush1.xpose.msra.mxu0 0.0
    %381 = vmatprep.subr.mxu0 0.0
    %382 = vmatpush1.xpose.msra.mxu0 0.0
    %383 = vmatprep.subr.mxu0 0.0
    %384 = vmatpush1.xpose.msra.mxu0 0.0
    %385 = vmatprep.subr.mxu0 0.0
    %386 = vmatpush1.xpose.msra.mxu0 0.0
    %387 = vmatprep.subr.mxu0 0.0
    %388 = vmatpush1.xpose.msra.mxu0 0.0
    %389 = vmatprep.subr.mxu0 0.0
    %390 = vmatpush1.xpose.msra.mxu0 0.0
    %391 = vmatprep.subr.mxu0 0.0
    %392 = vmatpush1.xpose.msra.mxu0 0.0
    %393 = vmatprep.subr.mxu0 0.0
    %394 = vmatpush1.xpose.msra.mxu0 0.0
    %395 = vmatprep.subr.mxu0 0.0
    %396 = vmatpush1.xpose.msra.mxu0 0.0
    %397 = vmatprep.subr.mxu0 0.0
    %398 = vmatpush1.xpose.msra.mxu0 0.0
    %399 = vmatprep.subr.mxu0 0.0
    %400 = vmatpush1.xpose.msra.mxu0 0.0
    %401 = vmatprep.subr.mxu0 0.0
    %402 = vmatpush1.xpose.msra.mxu0 0.0
    %403 = vmatprep.subr.mxu0 0.0
    %404 = vmatpush1.xpose.msra.mxu0 0.0
    %405 = vmatprep.subr.mxu0 0.0
    %406 = vmatpush1.xpose.msra.mxu0 0.0
    %407 = vmatprep.subr.mxu0 0.0
    %408 = vmatpush1.xpose.msra.mxu0 0.0
    %409 = vmatprep.subr.mxu0 0.0
    %410 = vmatpush1.xpose.msra.mxu0 0.0
    %411 = vmatprep.subr.mxu0 0.0
    %412 = vmatpush1.xpose.msra.mxu0 0.0
    %413 = vmatprep.subr.mxu0 0.0
    %414 = vmatpush1.xpose.msra.mxu0 0.0
    %415 = vmatprep.mubr.f32.mxu0 0.0
    %416 = vmatmul.mubr.f32.gmra.mrb[0].mxu0 %v259
    %v417 = vpop.f32.mrb[0].mxu0
    %v418 = vadd.f32 0.0, %v417
    %v419 = vpop.f32.mrb[0].mxu0
    %420 = vdwg.mxu0
    %v421 = vmul.f32 %v418, 0.35355338
    %v422 = vsel %vm258, %v421, -inf
    %423 = vmax.xlane.f32.xlu0 %v422
    %v424 = vpop.xlane.xlu0 %423
    %v425 = vsub.f32 %v421, %v424
    %v426 = vmul.f32 %v425, 1.442695
    %v427 = vpow.pop %v426
    %v428 = vsel %vm258, %v427, 0.0
    %429 = vadd.xlane.f32.xlu0 %v428
    %v430 = vpop.xlane.xlu0 %429
    %v431 = vrcp.pop %v430
    %v432 = vmul.f32 %v427, %v431
    %433 = vrot.lane.b32.xlu0 %v246, 64
    %v434 = vpop.permute.xlu0 %433
    %v437 = vsel %vm258, %v432, 0
    %439 = vmatprep.subr.mxu0 0.0
    %440 = vmatpush1.msra.mxu0 %v434
    %441 = vmatprep.subr.mxu0 0.0
    %442 = vmatpush1.msra.mxu0 0.0
    %443 = vmatprep.subr.mxu0 0.0
    %444 = vmatpush1.msra.mxu0 0.0
    %445 = vmatprep.subr.mxu0 0.0
    %446 = vmatpush1.msra.mxu0 0.0
    %447 = vmatprep.subr.mxu0 0.0
    %448 = vmatpush1.msra.mxu0 0.0
    %449 = vmatprep.subr.mxu0 0.0
    %450 = vmatpush1.msra.mxu0 0.0
    %451 = vmatprep.subr.mxu0 0.0
    %452 = vmatpush1.msra.mxu0 0.0
    %453 = vmatprep.subr.mxu0 0.0
    %454 = vmatpush1.msra.mxu0 0.0
    %455 = vmatprep.subr.mxu0 0.0
    %456 = vmatpush1.msra.mxu0 0.0
    %457 = vmatprep.subr.mxu0 0.0
    %458 = vmatpush1.msra.mxu0 0.0
    %459 = vmatprep.subr.mxu0 0.0
    %460 = vmatpush1.msra.mxu0 0.0
    %461 = vmatprep.subr.mxu0 0.0
    %462 = vmatpush1.msra.mxu0 0.0
    %463 = vmatprep.subr.mxu0 0.0
    %464 = vmatpush1.msra.mxu0 0.0
    %465 = vmatprep.subr.mxu0 0.0
    %466 = vmatpush1.msra.mxu0 0.0
    %467 = vmatprep.subr.mxu0 0.0
    %468 = vmatpush1.msra.mxu0 0.0
    %469 = vmatprep.subr.mxu0 0.0
    %470 = vmatpush1.msra.mxu0 0.0
    %471 = vmatprep.subr.mxu0 0.0
    %472 = vmatpush1.msra.mxu0 0.0
    %473 = vmatprep.subr.mxu0 0.0
    %474 = vmatpush1.msra.mxu0 0.0
    %475 = vmatprep.subr.mxu0 0.0
    %476 = vmatpush1.msra.mxu0 0.0
    %477 = vmatprep.subr.mxu0 0.0
    %478 = vmatpush1.msra.mxu0 0.0
    %479 = vmatprep.subr.mxu0 0.0
    %480 = vmatpush1.msra.mxu0 0.0
    %481 = vmatprep.subr.mxu0 0.0
    %482 = vmatpush1.msra.mxu0 0.0
    %483 = vmatprep.subr.mxu0 0.0
    %484 = vmatpush1.msra.mxu0 0.0
    %485 = vmatprep.subr.mxu0 0.0
    %486 = vmatpush1.msra.mxu0 0.0
    %487 = vmatprep.subr.mxu0 0.0
    %488 = vmatpush1.msra.mxu0 0.0
    %489 = vmatprep.subr.mxu0 0.0
    %490 = vmatpush1.msra.mxu0 0.0
    %491 = vmatprep.subr.mxu0 0.0
    %492 = vmatpush1.msra.mxu0 0.0
    %493 = vmatprep.subr.mxu0 0.0
    %494 = vmatpush1.msra.mxu0 0.0
    %495 = vmatprep.subr.mxu0 0.0
    %496 = vmatpush1.msra.mxu0 0.0
    %497 = vmatprep.subr.mxu0 0.0
    %498 = vmatpush1.msra.mxu0 0.0
    %499 = vmatprep.subr.mxu0 0.0
    %500 = vmatpush1.msra.mxu0 0.0
    %501 = vmatprep.subr.mxu0 0.0
    %502 = vmatpush1.msra.mxu0 0.0
    %503 = vmatprep.mubr.f32.mxu0 0.0
    %504 = vmatmul.mubr.f32.gmra.mrb[0].mxu0 %v437
    %v505 = vpop.f32.mrb[0].mxu0
    %v506 = vadd.f32 0.0, %v505
    %v507 = vpop.f32.mrb[0].mxu0
    %508 = vdwg.mxu0
    %v510 = vlaneseq
    %v511 = vshrl.u32 %v510, 7
    %v512 = vsub.s32 0, %v511
    %v513 = vrot.slane %v254, %v512
    %v515 = vmul.f32 %v506, %v513
    %516 = vrot.lane.b32.xlu0 %v167, 64
    %v517 = vpop.permute.xlu0 %516
    %v520 = vsel %vm258, %v345, 0
    %522 = vmatprep.subr.mxu0 0.0
    %523 = vmatpush1.msra.mxu0 %v517
    %524 = vmatprep.subr.mxu0 0.0
    %525 = vmatpush1.msra.mxu0 0.0
    %526 = vmatprep.subr.mxu0 0.0
    %527 = vmatpush1.msra.mxu0 0.0
    %528 = vmatprep.subr.mxu0 0.0
    %529 = vmatpush1.msra.mxu0 0.0
    %530 = vmatprep.subr.mxu0 0.0
    %531 = vmatpush1.msra.mxu0 0.0
    %532 = vmatprep.subr.mxu0 0.0
    %533 = vmatpush1.msra.mxu0 0.0
    %534 = vmatprep.subr.mxu0 0.0
    %535 = vmatpush1.msra.mxu0 0.0
    %536 = vmatprep.subr.mxu0 0.0
    %537 = vmatpush1.msra.mxu0 0.0
    %538 = vmatprep.subr.mxu0 0.0
    %539 = vmatpush1.msra.mxu0 0.0
    %540 = vmatprep.subr.mxu0 0.0
    %541 = vmatpush1.msra.mxu0 0.0
    %542 = vmatprep.subr.mxu0 0.0
    %543 = vmatpush1.msra.mxu0 0.0
    %544 = vmatprep.subr.mxu0 0.0
    %545 = vmatpush1.msra.mxu0 0.0
    %546 = vmatprep.subr.mxu0 0.0
    %547 = vmatpush1.msra.mxu0 0.0
    %548 = vmatprep.subr.mxu0 0.0
    %549 = vmatpush1.msra.mxu0 0.0
    %550 = vmatprep.subr.mxu0 0.0
    %551 = vmatpush1.msra.mxu0 0.0
    %552 = vmatprep.subr.mxu0 0.0
    %553 = vmatpush1.msra.mxu0 0.0
    %554 = vmatprep.subr.mxu0 0.0
    %555 = vmatpush1.msra.mxu0 0.0
    %556 = vmatprep.subr.mxu0 0.0
    %557 = vmatpush1.msra.mxu0 0.0
    %558 = vmatprep.subr.mxu0 0.0
    %559 = vmatpush1.msra.mxu0 0.0
    %560 = vmatprep.subr.mxu0 0.0
    %561 = vmatpush1.msra.mxu0 0.0
    %562 = vmatprep.subr.mxu0 0.0
    %563 = vmatpush1.msra.mxu0 0.0
    %564 = vmatprep.subr.mxu0 0.0
    %565 = vmatpush1.msra.mxu0 0.0
    %566 = vmatprep.subr.mxu0 0.0
    %567 = vmatpush1.msra.mxu0 0.0
    %568 = vmatprep.subr.mxu0 0.0
    %569 = vmatpush1.msra.mxu0 0.0
    %570 = vmatprep.subr.mxu0 0.0
    %571 = vmatpush1.msra.mxu0 0.0
    %572 = vmatprep.subr.mxu0 0.0
    %573 = vmatpush1.msra.mxu0 0.0
    %574 = vmatprep.subr.mxu0 0.0
    %575 = vmatpush1.msra.mxu0 0.0
    %576 = vmatprep.subr.mxu0 0.0
    %577 = vmatpush1.msra.mxu0 0.0
    %578 = vmatprep.subr.mxu0 0.0
    %579 = vmatpush1.msra.mxu0 0.0
    %580 = vmatprep.subr.mxu0 0.0
    %581 = vmatpush1.msra.mxu0 0.0
    %582 = vmatprep.subr.mxu0 0.0
    %583 = vmatpush1.msra.mxu0 0.0
    %584 = vmatprep.subr.mxu0 0.0
    %585 = vmatpush1.msra.mxu0 0.0
    %586 = vmatprep.mubr.f32.mxu0 0.0
    %587 = vmatmul.mubr.f32.gmra.mrb[0].mxu0 %v520
    %v588 = vpop.f32.mrb[0].mxu0
    %v589 = vadd.f32 %v515, %v588
    %v590 = vpop.f32.mrb[0].mxu0
    %591 = vdwg.mxu0
    %592 = vst.msk [vmem:[#allocation2] sm:$0xff] %vm258, %v589
    %593 = vrot.lane.b32.xlu0 %v167, 120
    %v594 = vpop.permute.xlu0 %593
    %595 = vrot.lane.b32.xlu0 %v167, 88
    %v596 = vpop.permute.xlu0 %595
    %v597 = vsel %vm258, %v594, 0
    %v599 = vsel %vm258, %v596, 0
    %601 = vmatprep.subr.mxu0 0.0
    %602 = vmatpush1.xpose.msra.mxu0 %v599
    %603 = vmatprep.subr.mxu0 0.0
    %604 = vmatpush1.xpose.msra.mxu0 0.0
    %605 = vmatprep.subr.mxu0 0.0
    %606 = vmatpush1.xpose.msra.mxu0 0.0
    %607 = vmatprep.subr.mxu0 0.0
    %608 = vmatpush1.xpose.msra.mxu0 0.0
    %609 = vmatprep.subr.mxu0 0.0
    %610 = vmatpush1.xpose.msra.mxu0 0.0
    %611 = vmatprep.subr.mxu0 0.0
    %612 = vmatpush1.xpose.msra.mxu0 0.0
    %613 = vmatprep.subr.mxu0 0.0
    %614 = vmatpush1.xpose.msra.mxu0 0.0
    %615 = vmatprep.subr.mxu0 0.0
    %616 = vmatpush1.xpose.msra.mxu0 0.0
    %617 = vmatprep.subr.mxu0 0.0
    %618 = vmatpush1.xpose.msra.mxu0 0.0
    %619 = vmatprep.subr.mxu0 0.0
    %620 = vmatpush1.xpose.msra.mxu0 0.0
    %621 = vmatprep.subr.mxu0 0.0
    %622 = vmatpush1.xpose.msra.mxu0 0.0
    %623 = vmatprep.subr.mxu0 0.0
    %624 = vmatpush1.xpose.msra.mxu0 0.0
    %625 = vmatprep.subr.mxu0 0.0
    %626 = vmatpush1.xpose.msra.mxu0 0.0
    %627 = vmatprep.subr.mxu0 0.0
    %628 = vmatpush1.xpose.msra.mxu0 0.0
    %629 = vmatprep.subr.mxu0 0.0
    %630 = vmatpush1.xpose.msra.mxu0 0.0
    %631 = vmatprep.subr.mxu0 0.0
    %632 = vmatpush1.xpose.msra.mxu0 0.0
    %633 = vmatprep.subr.mxu0 0.0
    %634 = vmatpush1.xpose.msra.mxu0 0.0
    %635 = vmatprep.subr.mxu0 0.0
    %636 = vmatpush1.xpose.msra.mxu0 0.0
    %637 = vmatprep.subr.mxu0 0.0
    %638 = vmatpush1.xpose.msra.mxu0 0.0
    %639 = vmatprep.subr.mxu0 0.0
    %640 = vmatpush1.xpose.msra.mxu0 0.0
    %641 = vmatprep.subr.mxu0 0.0
    %642 = vmatpush1.xpose.msra.mxu0 0.0
    %643 = vmatprep.subr.mxu0 0.0
    %644 = vmatpush1.xpose.msra.mxu0 0.0
    %645 = vmatprep.subr.mxu0 0.0
    %646 = vmatpush1.xpose.msra.mxu0 0.0
    %647 = vmatprep.subr.mxu0 0.0
    %648 = vmatpush1.xpose.msra.mxu0 0.0
    %649 = vmatprep.subr.mxu0 0.0
    %650 = vmatpush1.xpose.msra.mxu0 0.0
    %651 = vmatprep.subr.mxu0 0.0
    %652 = vmatpush1.xpose.msra.mxu0 0.0
    %653 = vmatprep.subr.mxu0 0.0
    %654 = vmatpush1.xpose.msra.mxu0 0.0
    %655 = vmatprep.subr.mxu0 0.0
    %656 = vmatpush1.xpose.msra.mxu0 0.0
    %657 = vmatprep.subr.mxu0 0.0
    %658 = vmatpush1.xpose.msra.mxu0 0.0
    %659 = vmatprep.subr.mxu0 0.0
    %660 = vmatpush1.xpose.msra.mxu0 0.0
    %661 = vmatprep.subr.mxu0 0.0
    %662 = vmatpush1.xpose.msra.mxu0 0.0
    %663 = vmatprep.subr.mxu0 0.0
    %664 = vmatpush1.xpose.msra.mxu0 0.0
    %665 = vmatprep.mubr.f32.mxu0 0.0
    %666 = vmatmul.mubr.f32.gmra.mrb[0].mxu0 %v597
    %v667 = vpop.f32.mrb[0].mxu0
    %v668 = vadd.f32 0.0, %v667
    %v669 = vpop.f32.mrb[0].mxu0
    %670 = vdwg.mxu0
    %v671 = vmul.f32 %v668, 0.35355338
    %v672 = vsel %vm253, %v671, -10000.0
    %v673 = vsel %vm258, %v672, -inf
    %674 = vmax.xlane.f32.xlu0 %v673
    %v675 = vpop.xlane.xlu0 %674
    %v676 = vsub.f32 %v672, %v675
    %v677 = vmul.f32 %v676, 1.442695
    %v678 = vpow.pop %v677
    %v679 = vsel %vm258, %v678, 0.0
    %680 = vadd.xlane.f32.xlu0 %v679
    %v681 = vpop.xlane.xlu0 %680
    %v682 = vrcp.pop %v681
    %v683 = vmul.f32 %v678, %v682
    %684 = vrot.lane.b32.xlu0 %v246, 88
    %v685 = vpop.permute.xlu0 %684
    %v686 = vsel %vm258, %v685, 0
    %688 = vmatprep.subr.mxu0 0.0
    %689 = vmatpush1.xpose.msra.mxu0 %v686
    %690 = vmatprep.subr.mxu0 0.0
    %691 = vmatpush1.xpose.msra.mxu0 0.0
    %692 = vmatprep.subr.mxu0 0.0
    %693 = vmatpush1.xpose.msra.mxu0 0.0
    %694 = vmatprep.subr.mxu0 0.0
    %695 = vmatpush1.xpose.msra.mxu0 0.0
    %696 = vmatprep.subr.mxu0 0.0
    %697 = vmatpush1.xpose.msra.mxu0 0.0
    %698 = vmatprep.subr.mxu0 0.0
    %699 = vmatpush1.xpose.msra.mxu0 0.0
    %700 = vmatprep.subr.mxu0 0.0
    %701 = vmatpush1.xpose.msra.mxu0 0.0
    %702 = vmatprep.subr.mxu0 0.0
    %703 = vmatpush1.xpose.msra.mxu0 0.0
    %704 = vmatprep.subr.mxu0 0.0
    %705 = vmatpush1.xpose.msra.mxu0 0.0
    %706 = vmatprep.subr.mxu0 0.0
    %707 = vmatpush1.xpose.msra.mxu0 0.0
    %708 = vmatprep.subr.mxu0 0.0
    %709 = vmatpush1.xpose.msra.mxu0 0.0
    %710 = vmatprep.subr.mxu0 0.0
    %711 = vmatpush1.xpose.msra.mxu0 0.0
    %712 = vmatprep.subr.mxu0 0.0
    %713 = vmatpush1.xpose.msra.mxu0 0.0
    %714 = vmatprep.subr.mxu0 0.0
    %715 = vmatpush1.xpose.msra.mxu0 0.0
    %716 = vmatprep.subr.mxu0 0.0
    %717 = vmatpush1.xpose.msra.mxu0 0.0
    %718 = vmatprep.subr.mxu0 0.0
    %719 = vmatpush1.xpose.msra.mxu0 0.0
    %720 = vmatprep.subr.mxu0 0.0
    %721 = vmatpush1.xpose.msra.mxu0 0.0
    %722 = vmatprep.subr.mxu0 0.0
    %723 = vmatpush1.xpose.msra.mxu0 0.0
    %724 = vmatprep.subr.mxu0 0.0
    %725 = vmatpush1.xpose.msra.mxu0 0.0
    %726 = vmatprep.subr.mxu0 0.0
    %727 = vmatpush1.xpose.msra.mxu0 0.0
    %728 = vmatprep.subr.mxu0 0.0
    %729 = vmatpush1.xpose.msra.mxu0 0.0
    %730 = vmatprep.subr.mxu0 0.0
    %731 = vmatpush1.xpose.msra.mxu0 0.0
    %732 = vmatprep.subr.mxu0 0.0
    %733 = vmatpush1.xpose.msra.mxu0 0.0
    %734 = vmatprep.subr.mxu0 0.0
    %735 = vmatpush1.xpose.msra.mxu0 0.0
    %736 = vmatprep.subr.mxu0 0.0
    %737 = vmatpush1.xpose.msra.mxu0 0.0
    %738 = vmatprep.subr.mxu0 0.0
    %739 = vmatpush1.xpose.msra.mxu0 0.0
    %740 = vmatprep.subr.mxu0 0.0
    %741 = vmatpush1.xpose.msra.mxu0 0.0
    %742 = vmatprep.subr.mxu0 0.0
    %743 = vmatpush1.xpose.msra.mxu0 0.0
    %744 = vmatprep.subr.mxu0 0.0
    %745 = vmatpush1.xpose.msra.mxu0 0.0
    %746 = vmatprep.subr.mxu0 0.0
    %747 = vmatpush1.xpose.msra.mxu0 0.0
    %748 = vmatprep.subr.mxu0 0.0
    %749 = vmatpush1.xpose.msra.mxu0 0.0
    %750 = vmatprep.subr.mxu0 0.0
    %751 = vmatpush1.xpose.msra.mxu0 0.0
    %752 = vmatprep.mubr.f32.mxu0 0.0
    %753 = vmatmul.mubr.f32.gmra.mrb[0].mxu0 %v597
    %v754 = vpop.f32.mrb[0].mxu0
    %v755 = vadd.f32 0.0, %v754
    %v756 = vpop.f32.mrb[0].mxu0
    %757 = vdwg.mxu0
    %v758 = vmul.f32 %v755, 0.35355338
    %v759 = vsel %vm258, %v758, -inf
    %760 = vmax.xlane.f32.xlu0 %v759
    %v761 = vpop.xlane.xlu0 %760
    %v762 = vsub.f32 %v758, %v761
    %v763 = vmul.f32 %v762, 1.442695
    %v764 = vpow.pop %v763
    %v765 = vsel %vm258, %v764, 0.0
    %766 = vadd.xlane.f32.xlu0 %v765
    %v767 = vpop.xlane.xlu0 %766
    %v768 = vrcp.pop %v767
    %v769 = vmul.f32 %v764, %v768
    %770 = vrot.lane.b32.xlu0 %v246, 56
    %v771 = vpop.permute.xlu0 %770
    %v774 = vsel %vm258, %v769, 0
    %776 = vmatprep.subr.mxu0 0.0
    %777 = vmatpush1.msra.mxu0 %v771
    %778 = vmatprep.subr.mxu0 0.0
    %779 = vmatpush1.msra.mxu0 0.0
    %780 = vmatprep.subr.mxu0 0.0
    %781 = vmatpush1.msra.mxu0 0.0
    %782 = vmatprep.subr.mxu0 0.0
    %783 = vmatpush1.msra.mxu0 0.0
    %784 = vmatprep.subr.mxu0 0.0
    %785 = vmatpush1.msra.mxu0 0.0
    %786 = vmatprep.subr.mxu0 0.0
    %787 = vmatpush1.msra.mxu0 0.0
    %788 = vmatprep.subr.mxu0 0.0
    %789 = vmatpush1.msra.mxu0 0.0
    %790 = vmatprep.subr.mxu0 0.0
    %791 = vmatpush1.msra.mxu0 0.0
    %792 = vmatprep.subr.mxu0 0.0
    %793 = vmatpush1.msra.mxu0 0.0
    %794 = vmatprep.subr.mxu0 0.0
    %795 = vmatpush1.msra.mxu0 0.0
    %796 = vmatprep.subr.mxu0 0.0
    %797 = vmatpush1.msra.mxu0 0.0
    %798 = vmatprep.subr.mxu0 0.0
    %799 = vmatpush1.msra.mxu0 0.0
    %800 = vmatprep.subr.mxu0 0.0
    %801 = vmatpush1.msra.mxu0 0.0
    %802 = vmatprep.subr.mxu0 0.0
    %803 = vmatpush1.msra.mxu0 0.0
    %804 = vmatprep.subr.mxu0 0.0
    %805 = vmatpush1.msra.mxu0 0.0
    %806 = vmatprep.subr.mxu0 0.0
    %807 = vmatpush1.msra.mxu0 0.0
    %808 = vmatprep.subr.mxu0 0.0
    %809 = vmatpush1.msra.mxu0 0.0
    %810 = vmatprep.subr.mxu0 0.0
    %811 = vmatpush1.msra.mxu0 0.0
    %812 = vmatprep.subr.mxu0 0.0
    %813 = vmatpush1.msra.mxu0 0.0
    %814 = vmatprep.subr.mxu0 0.0
    %815 = vmatpush1.msra.mxu0 0.0
    %816 = vmatprep.subr.mxu0 0.0
    %817 = vmatpush1.msra.mxu0 0.0
    %818 = vmatprep.subr.mxu0 0.0
    %819 = vmatpush1.msra.mxu0 0.0
    %820 = vmatprep.subr.mxu0 0.0
    %821 = vmatpush1.msra.mxu0 0.0
    %822 = vmatprep.subr.mxu0 0.0
    %823 = vmatpush1.msra.mxu0 0.0
    %824 = vmatprep.subr.mxu0 0.0
    %825 = vmatpush1.msra.mxu0 0.0
    %826 = vmatprep.subr.mxu0 0.0
    %827 = vmatpush1.msra.mxu0 0.0
    %828 = vmatprep.subr.mxu0 0.0
    %829 = vmatpush1.msra.mxu0 0.0
    %830 = vmatprep.subr.mxu0 0.0
    %831 = vmatpush1.msra.mxu0 0.0
    %832 = vmatprep.subr.mxu0 0.0
    %833 = vmatpush1.msra.mxu0 0.0
    %834 = vmatprep.subr.mxu0 0.0
    %835 = vmatpush1.msra.mxu0 0.0
    %836 = vmatprep.subr.mxu0 0.0
    %837 = vmatpush1.msra.mxu0 0.0
    %838 = vmatprep.subr.mxu0 0.0
    %839 = vmatpush1.msra.mxu0 0.0
    %840 = vmatprep.mubr.f32.mxu0 0.0
    %841 = vmatmul.mubr.f32.gmra.mrb[0].mxu0 %v774
    %v842 = vpop.f32.mrb[0].mxu0
    %v843 = vadd.f32 0.0, %v842
    %v844 = vpop.f32.mrb[0].mxu0
    %845 = vdwg.mxu0
    %846 = vrot.lane.b32.xlu0 %v513, 120
    %v847 = vpop.permute.xlu0 %846
    %v849 = vmul.f32 %v843, %v847
    %850 = vrot.lane.b32.xlu0 %v167, 56
    %v851 = vpop.permute.xlu0 %850
    %v854 = vsel %vm258, %v683, 0
    %856 = vmatprep.subr.mxu0 0.0
    %857 = vmatpush1.msra.mxu0 %v851
    %858 = vmatprep.subr.mxu0 0.0
    %859 = vmatpush1.msra.mxu0 0.0
    %860 = vmatprep.subr.mxu0 0.0
    %861 = vmatpush1.msra.mxu0 0.0
    %862 = vmatprep.subr.mxu0 0.0
    %863 = vmatpush1.msra.mxu0 0.0
    %864 = vmatprep.subr.mxu0 0.0
    %865 = vmatpush1.msra.mxu0 0.0
    %866 = vmatprep.subr.mxu0 0.0
    %867 = vmatpush1.msra.mxu0 0.0
    %868 = vmatprep.subr.mxu0 0.0
    %869 = vmatpush1.msra.mxu0 0.0
    %870 = vmatprep.subr.mxu0 0.0
    %871 = vmatpush1.msra.mxu0 0.0
    %872 = vmatprep.subr.mxu0 0.0
    %873 = vmatpush1.msra.mxu0 0.0
    %874 = vmatprep.subr.mxu0 0.0
    %875 = vmatpush1.msra.mxu0 0.0
    %876 = vmatprep.subr.mxu0 0.0
    %877 = vmatpush1.msra.mxu0 0.0
    %878 = vmatprep.subr.mxu0 0.0
    %879 = vmatpush1.msra.mxu0 0.0
    %880 = vmatprep.subr.mxu0 0.0
    %881 = vmatpush1.msra.mxu0 0.0
    %882 = vmatprep.subr.mxu0 0.0
    %883 = vmatpush1.msra.mxu0 0.0
    %884 = vmatprep.subr.mxu0 0.0
    %885 = vmatpush1.msra.mxu0 0.0
    %886 = vmatprep.subr.mxu0 0.0
    %887 = vmatpush1.msra.mxu0 0.0
    %888 = vmatprep.subr.mxu0 0.0
    %889 = vmatpush1.msra.mxu0 0.0
    %890 = vmatprep.subr.mxu0 0.0
    %891 = vmatpush1.msra.mxu0 0.0
    %892 = vmatprep.subr.mxu0 0.0
    %893 = vmatpush1.msra.mxu0 0.0
    %894 = vmatprep.subr.mxu0 0.0
    %895 = vmatpush1.msra.mxu0 0.0
    %896 = vmatprep.subr.mxu0 0.0
    %897 = vmatpush1.msra.mxu0 0.0
    %898 = vmatprep.subr.mxu0 0.0
    %899 = vmatpush1.msra.mxu0 0.0
    %900 = vmatprep.subr.mxu0 0.0
    %901 = vmatpush1.msra.mxu0 0.0
    %902 = vmatprep.subr.mxu0 0.0
    %903 = vmatpush1.msra.mxu0 0.0
    %904 = vmatprep.subr.mxu0 0.0
    %905 = vmatpush1.msra.mxu0 0.0
    %906 = vmatprep.subr.mxu0 0.0
    %907 = vmatpush1.msra.mxu0 0.0
    %908 = vmatprep.subr.mxu0 0.0
    %909 = vmatpush1.msra.mxu0 0.0
    %910 = vmatprep.subr.mxu0 0.0
    %911 = vmatpush1.msra.mxu0 0.0
    %912 = vmatprep.subr.mxu0 0.0
    %913 = vmatpush1.msra.mxu0 0.0
    %914 = vmatprep.subr.mxu0 0.0
    %915 = vmatpush1.msra.mxu0 0.0
    %916 = vmatprep.subr.mxu0 0.0
    %917 = vmatpush1.msra.mxu0 0.0
    %918 = vmatprep.subr.mxu0 0.0
    %919 = vmatpush1.msra.mxu0 0.0
    %920 = vmatprep.mubr.f32.mxu0 0.0
    %921 = vmatmul.mubr.f32.gmra.mrb[0].mxu0 %v854
    %v922 = vpop.f32.mrb[0].mxu0
    %v923 = vadd.f32 %v849, %v922
    %v924 = vpop.f32.mrb[0].mxu0
    %925 = vdwg.mxu0
    %927 = vrot.lane.b32.xlu0 %v923, 8
    %v928 = vpop.permute.xlu0 %927
    %vm930 = vcmask 130112
    %931 = vst.msk [vmem:[#allocation2] sm:$0xff] %vm930, %v928
    %932 = vrot.lane.b32.xlu0 %v167, 112
    %v933 = vpop.permute.xlu0 %932
    %934 = vrot.lane.b32.xlu0 %v167, 80
    %v935 = vpop.permute.xlu0 %934
    %v936 = vsel %vm258, %v933, 0
    %v938 = vsel %vm258, %v935, 0
    %940 = vmatprep.subr.mxu0 0.0
    %941 = vmatpush1.xpose.msra.mxu0 %v938
    %942 = vmatprep.subr.mxu0 0.0
    %943 = vmatpush1.xpose.msra.mxu0 0.0
    %944 = vmatprep.subr.mxu0 0.0
    %945 = vmatpush1.xpose.msra.mxu0 0.0
    %946 = vmatprep.subr.mxu0 0.0
    %947 = vmatpush1.xpose.msra.mxu0 0.0
    %948 = vmatprep.subr.mxu0 0.0
    %949 = vmatpush1.xpose.msra.mxu0 0.0
    %950 = vmatprep.subr.mxu0 0.0
    %951 = vmatpush1.xpose.msra.mxu0 0.0
    %952 = vmatprep.subr.mxu0 0.0
    %953 = vmatpush1.xpose.msra.mxu0 0.0
    %954 = vmatprep.subr.mxu0 0.0
    %955 = vmatpush1.xpose.msra.mxu0 0.0
    %956 = vmatprep.subr.mxu0 0.0
    %957 = vmatpush1.xpose.msra.mxu0 0.0
    %958 = vmatprep.subr.mxu0 0.0
    %959 = vmatpush1.xpose.msra.mxu0 0.0
    %960 = vmatprep.subr.mxu0 0.0
    %961 = vmatpush1.xpose.msra.mxu0 0.0
    %962 = vmatprep.subr.mxu0 0.0
    %963 = vmatpush1.xpose.msra.mxu0 0.0
    %964 = vmatprep.subr.mxu0 0.0
    %965 = vmatpush1.xpose.msra.mxu0 0.0
    %966 = vmatprep.subr.mxu0 0.0
    %967 = vmatpush1.xpose.msra.mxu0 0.0
    %968 = vmatprep.subr.mxu0 0.0
    %969 = vmatpush1.xpose.msra.mxu0 0.0
    %970 = vmatprep.subr.mxu0 0.0
    %971 = vmatpush1.xpose.msra.mxu0 0.0
    %972 = vmatprep.subr.mxu0 0.0
    %973 = vmatpush1.xpose.msra.mxu0 0.0
    %974 = vmatprep.subr.mxu0 0.0
    %975 = vmatpush1.xpose.msra.mxu0 0.0
    %976 = vmatprep.subr.mxu0 0.0
    %977 = vmatpush1.xpose.msra.mxu0 0.0
    %978 = vmatprep.subr.mxu0 0.0
    %979 = vmatpush1.xpose.msra.mxu0 0.0
    %980 = vmatprep.subr.mxu0 0.0
    %981 = vmatpush1.xpose.msra.mxu0 0.0
    %982 = vmatprep.subr.mxu0 0.0
    %983 = vmatpush1.xpose.msra.mxu0 0.0
    %984 = vmatprep.subr.mxu0 0.0
    %985 = vmatpush1.xpose.msra.mxu0 0.0
    %986 = vmatprep.subr.mxu0 0.0
    %987 = vmatpush1.xpose.msra.mxu0 0.0
    %988 = vmatprep.subr.mxu0 0.0
    %989 = vmatpush1.xpose.msra.mxu0 0.0
    %990 = vmatprep.subr.mxu0 0.0
    %991 = vmatpush1.xpose.msra.mxu0 0.0
    %992 = vmatprep.subr.mxu0 0.0
    %993 = vmatpush1.xpose.msra.mxu0 0.0
    %994 = vmatprep.subr.mxu0 0.0
    %995 = vmatpush1.xpose.msra.mxu0 0.0
    %996 = vmatprep.subr.mxu0 0.0
    %997 = vmatpush1.xpose.msra.mxu0 0.0
    %998 = vmatprep.subr.mxu0 0.0
    %999 = vmatpush1.xpose.msra.mxu0 0.0
    %1000 = vmatprep.subr.mxu0 0.0
    %1001 = vmatpush1.xpose.msra.mxu0 0.0
    %1002 = vmatprep.subr.mxu0 0.0
    %1003 = vmatpush1.xpose.msra.mxu0 0.0
    %1004 = vmatprep.mubr.f32.mxu0 0.0
    %1005 = vmatmul.mubr.f32.gmra.mrb[0].mxu0 %v936
    %v1006 = vpop.f32.mrb[0].mxu0
    %v1007 = vadd.f32 0.0, %v1006
    %v1008 = vpop.f32.mrb[0].mxu0
    %1009 = vdwg.mxu0
    %v1010 = vmul.f32 %v1007, 0.35355338
    %v1011 = vsel %vm253, %v1010, -10000.0
    %v1012 = vsel %vm258, %v1011, -inf
    %1013 = vmax.xlane.f32.xlu0 %v1012
    %v1014 = vpop.xlane.xlu0 %1013
    %v1015 = vsub.f32 %v1011, %v1014
    %v1016 = vmul.f32 %v1015, 1.442695
    %v1017 = vpow.pop %v1016
    %v1018 = vsel %vm258, %v1017, 0.0
    %1019 = vadd.xlane.f32.xlu0 %v1018
    %v1020 = vpop.xlane.xlu0 %1019
    %v1021 = vrcp.pop %v1020
    %v1022 = vmul.f32 %v1017, %v1021
    %1023 = vrot.lane.b32.xlu0 %v246, 80
    %v1024 = vpop.permute.xlu0 %1023
    %v1025 = vsel %vm258, %v1024, 0
    %1027 = vmatprep.subr.mxu0 0.0
    %1028 = vmatpush1.xpose.msra.mxu0 %v1025
    %1029 = vmatprep.subr.mxu0 0.0
    %1030 = vmatpush1.xpose.msra.mxu0 0.0
    %1031 = vmatprep.subr.mxu0 0.0
    %1032 = vmatpush1.xpose.msra.mxu0 0.0
    %1033 = vmatprep.subr.mxu0 0.0
    %1034 = vmatpush1.xpose.msra.mxu0 0.0
    %1035 = vmatprep.subr.mxu0 0.0
    %1036 = vmatpush1.xpose.msra.mxu0 0.0
    %1037 = vmatprep.subr.mxu0 0.0
    %1038 = vmatpush1.xpose.msra.mxu0 0.0
    %1039 = vmatprep.subr.mxu0 0.0
    %1040 = vmatpush1.xpose.msra.mxu0 0.0
    %1041 = vmatprep.subr.mxu0 0.0
    %1042 = vmatpush1.xpose.msra.mxu0 0.0
    %1043 = vmatprep.subr.mxu0 0.0
    %1044 = vmatpush1.xpose.msra.mxu0 0.0
    %1045 = vmatprep.subr.mxu0 0.0
    %1046 = vmatpush1.xpose.msra.mxu0 0.0
    %1047 = vmatprep.subr.mxu0 0.0
    %1048 = vmatpush1.xpose.msra.mxu0 0.0
    %1049 = vmatprep.subr.mxu0 0.0
    %1050 = vmatpush1.xpose.msra.mxu0 0.0
    %1051 = vmatprep.subr.mxu0 0.0
    %1052 = vmatpush1.xpose.msra.mxu0 0.0
    %1053 = vmatprep.subr.mxu0 0.0
    %1054 = vmatpush1.xpose.msra.mxu0 0.0
    %1055 = vmatprep.subr.mxu0 0.0
    %1056 = vmatpush1.xpose.msra.mxu0 0.0
    %1057 = vmatprep.subr.mxu0 0.0
    %1058 = vmatpush1.xpose.msra.mxu0 0.0
    %1059 = vmatprep.subr.mxu0 0.0
    %1060 = vmatpush1.xpose.msra.mxu0 0.0
    %1061 = vmatprep.subr.mxu0 0.0
    %1062 = vmatpush1.xpose.msra.mxu0 0.0
    %1063 = vmatprep.subr.mxu0 0.0
    %1064 = vmatpush1.xpose.msra.mxu0 0.0
    %1065 = vmatprep.subr.mxu0 0.0
    %1066 = vmatpush1.xpose.msra.mxu0 0.0
    %1067 = vmatprep.subr.mxu0 0.0
    %1068 = vmatpush1.xpose.msra.mxu0 0.0
    %1069 = vmatprep.subr.mxu0 0.0
    %1070 = vmatpush1.xpose.msra.mxu0 0.0
    %1071 = vmatprep.subr.mxu0 0.0
    %1072 = vmatpush1.xpose.msra.mxu0 0.0
    %1073 = vmatprep.subr.mxu0 0.0
    %1074 = vmatpush1.xpose.msra.mxu0 0.0
    %1075 = vmatprep.subr.mxu0 0.0
    %1076 = vmatpush1.xpose.msra.mxu0 0.0
    %1077 = vmatprep.subr.mxu0 0.0
    %1078 = vmatpush1.xpose.msra.mxu0 0.0
    %1079 = vmatprep.subr.mxu0 0.0
    %1080 = vmatpush1.xpose.msra.mxu0 0.0
    %1081 = vmatprep.subr.mxu0 0.0
    %1082 = vmatpush1.xpose.msra.mxu0 0.0
    %1083 = vmatprep.subr.mxu0 0.0
    %1084 = vmatpush1.xpose.msra.mxu0 0.0
    %1085 = vmatprep.subr.mxu0 0.0
    %1086 = vmatpush1.xpose.msra.mxu0 0.0
    %1087 = vmatprep.subr.mxu0 0.0
    %1088 = vmatpush1.xpose.msra.mxu0 0.0
    %1089 = vmatprep.subr.mxu0 0.0
    %1090 = vmatpush1.xpose.msra.mxu0 0.0
    %1091 = vmatprep.mubr.f32.mxu0 0.0
    %1092 = vmatmul.mubr.f32.gmra.mrb[0].mxu0 %v936
    %v1093 = vpop.f32.mrb[0].mxu0
    %v1094 = vadd.f32 0.0, %v1093
    %v1095 = vpop.f32.mrb[0].mxu0
    %1096 = vdwg.mxu0
    %v1097 = vmul.f32 %v1094, 0.35355338
    %v1098 = vsel %vm258, %v1097, -inf
    %1099 = vmax.xlane.f32.xlu0 %v1098
    %v1100 = vpop.xlane.xlu0 %1099
    %v1101 = vsub.f32 %v1097, %v1100
    %v1102 = vmul.f32 %v1101, 1.442695
    %v1103 = vpow.pop %v1102
    %v1104 = vsel %vm258, %v1103, 0.0
    %1105 = vadd.xlane.f32.xlu0 %v1104
    %v1106 = vpop.xlane.xlu0 %1105
    %v1107 = vrcp.pop %v1106
    %v1108 = vmul.f32 %v1103, %v1107
    %1109 = vrot.lane.b32.xlu0 %v246, 48
    %v1110 = vpop.permute.xlu0 %1109
    %v1113 = vsel %vm258, %v1108, 0
    %1115 = vmatprep.subr.mxu0 0.0
    %1116 = vmatpush1.msra.mxu0 %v1110
    %1117 = vmatprep.subr.mxu0 0.0
    %1118 = vmatpush1.msra.mxu0 0.0
    %1119 = vmatprep.subr.mxu0 0.0
    %1120 = vmatpush1.msra.mxu0 0.0
    %1121 = vmatprep.subr.mxu0 0.0
    %1122 = vmatpush1.msra.mxu0 0.0
    %1123 = vmatprep.subr.mxu0 0.0
    %1124 = vmatpush1.msra.mxu0 0.0
    %1125 = vmatprep.subr.mxu0 0.0
    %1126 = vmatpush1.msra.mxu0 0.0
    %1127 = vmatprep.subr.mxu0 0.0
    %1128 = vmatpush1.msra.mxu0 0.0
    %1129 = vmatprep.subr.mxu0 0.0
    %1130 = vmatpush1.msra.mxu0 0.0
    %1131 = vmatprep.subr.mxu0 0.0
    %1132 = vmatpush1.msra.mxu0 0.0
    %1133 = vmatprep.subr.mxu0 0.0
    %1134 = vmatpush1.msra.mxu0 0.0
    %1135 = vmatprep.subr.mxu0 0.0
    %1136 = vmatpush1.msra.mxu0 0.0
    %1137 = vmatprep.subr.mxu0 0.0
    %1138 = vmatpush1.msra.mxu0 0.0
    %1139 = vmatprep.subr.mxu0 0.0
    %1140 = vmatpush1.msra.mxu0 0.0
    %1141 = vmatprep.subr.mxu0 0.0
    %1142 = vmatpush1.msra.mxu0 0.0
    %1143 = vmatprep.subr.mxu0 0.0
    %1144 = vmatpush1.msra.mxu0 0.0
    %1145 = vmatprep.subr.mxu0 0.0
    %1146 = vmatpush1.msra.mxu0 0.0
    %1147 = vmatprep.subr.mxu0 0.0
    %1148 = vmatpush1.msra.mxu0 0.0
    %1149 = vmatprep.subr.mxu0 0.0
    %1150 = vmatpush1.msra.mxu0 0.0
    %1151 = vmatprep.subr.mxu0 0.0
    %1152 = vmatpush1.msra.mxu0 0.0
    %1153 = vmatprep.subr.mxu0 0.0
    %1154 = vmatpush1.msra.mxu0 0.0
    %1155 = vmatprep.subr.mxu0 0.0
    %1156 = vmatpush1.msra.mxu0 0.0
    %1157 = vmatprep.subr.mxu0 0.0
    %1158 = vmatpush1.msra.mxu0 0.0
    %1159 = vmatprep.subr.mxu0 0.0
    %1160 = vmatpush1.msra.mxu0 0.0
    %1161 = vmatprep.subr.mxu0 0.0
    %1162 = vmatpush1.msra.mxu0 0.0
    %1163 = vmatprep.subr.mxu0 0.0
    %1164 = vmatpush1.msra.mxu0 0.0
    %1165 = vmatprep.subr.mxu0 0.0
    %1166 = vmatpush1.msra.mxu0 0.0
    %1167 = vmatprep.subr.mxu0 0.0
    %1168 = vmatpush1.msra.mxu0 0.0
    %1169 = vmatprep.subr.mxu0 0.0
    %1170 = vmatpush1.msra.mxu0 0.0
    %1171 = vmatprep.subr.mxu0 0.0
    %1172 = vmatpush1.msra.mxu0 0.0
    %1173 = vmatprep.subr.mxu0 0.0
    %1174 = vmatpush1.msra.mxu0 0.0
    %1175 = vmatprep.subr.mxu0 0.0
    %1176 = vmatpush1.msra.mxu0 0.0
    %1177 = vmatprep.subr.mxu0 0.0
    %1178 = vmatpush1.msra.mxu0 0.0
    %1179 = vmatprep.mubr.f32.mxu0 0.0
    %1180 = vmatmul.mubr.f32.gmra.mrb[0].mxu0 %v1113
    %v1181 = vpop.f32.mrb[0].mxu0
    %v1182 = vadd.f32 0.0, %v1181
    %v1183 = vpop.f32.mrb[0].mxu0
    %1184 = vdwg.mxu0
    %1185 = vrot.lane.b32.xlu0 %v513, 112
    %v1186 = vpop.permute.xlu0 %1185
    %v1188 = vmul.f32 %v1182, %v1186
    %1189 = vrot.lane.b32.xlu0 %v167, 48
    %v1190 = vpop.permute.xlu0 %1189
    %v1193 = vsel %vm258, %v1022, 0
    %1195 = vmatprep.subr.mxu0 0.0
    %1196 = vmatpush1.msra.mxu0 %v1190
    %1197 = vmatprep.subr.mxu0 0.0
    %1198 = vmatpush1.msra.mxu0 0.0
    %1199 = vmatprep.subr.mxu0 0.0
    %1200 = vmatpush1.msra.mxu0 0.0
    %1201 = vmatprep.subr.mxu0 0.0
    %1202 = vmatpush1.msra.mxu0 0.0
    %1203 = vmatprep.subr.mxu0 0.0
    %1204 = vmatpush1.msra.mxu0 0.0
    %1205 = vmatprep.subr.mxu0 0.0
    %1206 = vmatpush1.msra.mxu0 0.0
    %1207 = vmatprep.subr.mxu0 0.0
    %1208 = vmatpush1.msra.mxu0 0.0
    %1209 = vmatprep.subr.mxu0 0.0
    %1210 = vmatpush1.msra.mxu0 0.0
    %1211 = vmatprep.subr.mxu0 0.0
    %1212 = vmatpush1.msra.mxu0 0.0
    %1213 = vmatprep.subr.mxu0 0.0
    %1214 = vmatpush1.msra.mxu0 0.0
    %1215 = vmatprep.subr.mxu0 0.0
    %1216 = vmatpush1.msra.mxu0 0.0
    %1217 = vmatprep.subr.mxu0 0.0
    %1218 = vmatpush1.msra.mxu0 0.0
    %1219 = vmatprep.subr.mxu0 0.0
    %1220 = vmatpush1.msra.mxu0 0.0
    %1221 = vmatprep.subr.mxu0 0.0
    %1222 = vmatpush1.msra.mxu0 0.0
    %1223 = vmatprep.subr.mxu0 0.0
    %1224 = vmatpush1.msra.mxu0 0.0
    %1225 = vmatprep.subr.mxu0 0.0
    %1226 = vmatpush1.msra.mxu0 0.0
    %1227 = vmatprep.subr.mxu0 0.0
    %1228 = vmatpush1.msra.mxu0 0.0
    %1229 = vmatprep.subr.mxu0 0.0
    %1230 = vmatpush1.msra.mxu0 0.0
    %1231 = vmatprep.subr.mxu0 0.0
    %1232 = vmatpush1.msra.mxu0 0.0
    %1233 = vmatprep.subr.mxu0 0.0
    %1234 = vmatpush1.msra.mxu0 0.0
    %1235 = vmatprep.subr.mxu0 0.0
    %1236 = vmatpush1.msra.mxu0 0.0
    %1237 = vmatprep.subr.mxu0 0.0
    %1238 = vmatpush1.msra.mxu0 0.0
    %1239 = vmatprep.subr.mxu0 0.0
    %1240 = vmatpush1.msra.mxu0 0.0
    %1241 = vmatprep.subr.mxu0 0.0
    %1242 = vmatpush1.msra.mxu0 0.0
    %1243 = vmatprep.subr.mxu0 0.0
    %1244 = vmatpush1.msra.mxu0 0.0
    %1245 = vmatprep.subr.mxu0 0.0
    %1246 = vmatpush1.msra.mxu0 0.0
    %1247 = vmatprep.subr.mxu0 0.0
    %1248 = vmatpush1.msra.mxu0 0.0
    %1249 = vmatprep.subr.mxu0 0.0
    %1250 = vmatpush1.msra.mxu0 0.0
    %1251 = vmatprep.subr.mxu0 0.0
    %1252 = vmatpush1.msra.mxu0 0.0
    %1253 = vmatprep.subr.mxu0 0.0
    %1254 = vmatpush1.msra.mxu0 0.0
    %1255 = vmatprep.subr.mxu0 0.0
    %1256 = vmatpush1.msra.mxu0 0.0
    %1257 = vmatprep.subr.mxu0 0.0
    %1258 = vmatpush1.msra.mxu0 0.0
    %1259 = vmatprep.mubr.f32.mxu0 0.0
    %1260 = vmatmul.mubr.f32.gmra.mrb[0].mxu0 %v1193
    %v1261 = vpop.f32.mrb[0].mxu0
    %v1262 = vadd.f32 %v1188, %v1261
    %v1263 = vpop.f32.mrb[0].mxu0
    %1264 = vdwg.mxu0
    %1266 = vrot.lane.b32.xlu0 %v1262, 16
    %v1267 = vpop.permute.xlu0 %1266
    %vm1269 = vcmask 195712
    %1270 = vst.msk [vmem:[#allocation2] sm:$0xff] %vm1269, %v1267
    %1271 = vrot.lane.b32.xlu0 %v167, 104
    %v1272 = vpop.permute.xlu0 %1271
    %1273 = vrot.lane.b32.xlu0 %v167, 72
    %v1274 = vpop.permute.xlu0 %1273
    %v1275 = vsel %vm258, %v1272, 0
    %v1277 = vsel %vm258, %v1274, 0
    %1279 = vmatprep.subr.mxu0 0.0
    %1280 = vmatpush1.xpose.msra.mxu0 %v1277
    %1281 = vmatprep.subr.mxu0 0.0
    %1282 = vmatpush1.xpose.msra.mxu0 0.0
    %1283 = vmatprep.subr.mxu0 0.0
    %1284 = vmatpush1.xpose.msra.mxu0 0.0
    %1285 = vmatprep.subr.mxu0 0.0
    %1286 = vmatpush1.xpose.msra.mxu0 0.0
    %1287 = vmatprep.subr.mxu0 0.0
    %1288 = vmatpush1.xpose.msra.mxu0 0.0
    %1289 = vmatprep.subr.mxu0 0.0
    %1290 = vmatpush1.xpose.msra.mxu0 0.0
    %1291 = vmatprep.subr.mxu0 0.0
    %1292 = vmatpush1.xpose.msra.mxu0 0.0
    %1293 = vmatprep.subr.mxu0 0.0
    %1294 = vmatpush1.xpose.msra.mxu0 0.0
    %1295 = vmatprep.subr.mxu0 0.0
    %1296 = vmatpush1.xpose.msra.mxu0 0.0
    %1297 = vmatprep.subr.mxu0 0.0
    %1298 = vmatpush1.xpose.msra.mxu0 0.0
    %1299 = vmatprep.subr.mxu0 0.0
    %1300 = vmatpush1.xpose.msra.mxu0 0.0
    %1301 = vmatprep.subr.mxu0 0.0
    %1302 = vmatpush1.xpose.msra.mxu0 0.0
    %1303 = vmatprep.subr.mxu0 0.0
    %1304 = vmatpush1.xpose.msra.mxu0 0.0
    %1305 = vmatprep.subr.mxu0 0.0
    %1306 = vmatpush1.xpose.msra.mxu0 0.0
    %1307 = vmatprep.subr.mxu0 0.0
    %1308 = vmatpush1.xpose.msra.mxu0 0.0
    %1309 = vmatprep.subr.mxu0 0.0
    %1310 = vmatpush1.xpose.msra.mxu0 0.0
    %1311 = vmatprep.subr.mxu0 0.0
    %1312 = vmatpush1.xpose.msra.mxu0 0.0
    %1313 = vmatprep.subr.mxu0 0.0
    %1314 = vmatpush1.xpose.msra.mxu0 0.0
    %1315 = vmatprep.subr.mxu0 0.0
    %1316 = vmatpush1.xpose.msra.mxu0 0.0
    %1317 = vmatprep.subr.mxu0 0.0
    %1318 = vmatpush1.xpose.msra.mxu0 0.0
    %1319 = vmatprep.subr.mxu0 0.0
    %1320 = vmatpush1.xpose.msra.mxu0 0.0
    %1321 = vmatprep.subr.mxu0 0.0
    %1322 = vmatpush1.xpose.msra.mxu0 0.0
    %1323 = vmatprep.subr.mxu0 0.0
    %1324 = vmatpush1.xpose.msra.mxu0 0.0
    %1325 = vmatprep.subr.mxu0 0.0
    %1326 = vmatpush1.xpose.msra.mxu0 0.0
    %1327 = vmatprep.subr.mxu0 0.0
    %1328 = vmatpush1.xpose.msra.mxu0 0.0
    %1329 = vmatprep.subr.mxu0 0.0
    %1330 = vmatpush1.xpose.msra.mxu0 0.0
    %1331 = vmatprep.subr.mxu0 0.0
    %1332 = vmatpush1.xpose.msra.mxu0 0.0
    %1333 = vmatprep.subr.mxu0 0.0
    %1334 = vmatpush1.xpose.msra.mxu0 0.0
    %1335 = vmatprep.subr.mxu0 0.0
    %1336 = vmatpush1.xpose.msra.mxu0 0.0
    %1337 = vmatprep.subr.mxu0 0.0
    %1338 = vmatpush1.xpose.msra.mxu0 0.0
    %1339 = vmatprep.subr.mxu0 0.0
    %1340 = vmatpush1.xpose.msra.mxu0 0.0
    %1341 = vmatprep.subr.mxu0 0.0
    %1342 = vmatpush1.xpose.msra.mxu0 0.0
    %1343 = vmatprep.mubr.f32.mxu0 0.0
    %1344 = vmatmul.mubr.f32.gmra.mrb[0].mxu0 %v1275
    %v1345 = vpop.f32.mrb[0].mxu0
    %v1346 = vadd.f32 0.0, %v1345
    %v1347 = vpop.f32.mrb[0].mxu0
    %1348 = vdwg.mxu0
    %v1349 = vmul.f32 %v1346, 0.35355338
    %v1350 = vsel %vm253, %v1349, -10000.0
    %v1351 = vsel %vm258, %v1350, -inf
    %1352 = vmax.xlane.f32.xlu0 %v1351
    %v1353 = vpop.xlane.xlu0 %1352
    %v1354 = vsub.f32 %v1350, %v1353
    %v1355 = vmul.f32 %v1354, 1.442695
    %v1356 = vpow.pop %v1355
    %v1357 = vsel %vm258, %v1356, 0.0
    %1358 = vadd.xlane.f32.xlu0 %v1357
    %v1359 = vpop.xlane.xlu0 %1358
    %v1360 = vrcp.pop %v1359
    %v1361 = vmul.f32 %v1356, %v1360
    %1362 = vrot.lane.b32.xlu0 %v246, 72
    %v1363 = vpop.permute.xlu0 %1362
    %v1364 = vsel %vm258, %v1363, 0
    %1366 = vmatprep.subr.mxu0 0.0
    %1367 = vmatpush1.xpose.msra.mxu0 %v1364
    %1368 = vmatprep.subr.mxu0 0.0
    %1369 = vmatpush1.xpose.msra.mxu0 0.0
    %1370 = vmatprep.subr.mxu0 0.0
    %1371 = vmatpush1.xpose.msra.mxu0 0.0
    %1372 = vmatprep.subr.mxu0 0.0
    %1373 = vmatpush1.xpose.msra.mxu0 0.0
    %1374 = vmatprep.subr.mxu0 0.0
    %1375 = vmatpush1.xpose.msra.mxu0 0.0
    %1376 = vmatprep.subr.mxu0 0.0
    %1377 = vmatpush1.xpose.msra.mxu0 0.0
    %1378 = vmatprep.subr.mxu0 0.0
    %1379 = vmatpush1.xpose.msra.mxu0 0.0
    %1380 = vmatprep.subr.mxu0 0.0
    %1381 = vmatpush1.xpose.msra.mxu0 0.0
    %1382 = vmatprep.subr.mxu0 0.0
    %1383 = vmatpush1.xpose.msra.mxu0 0.0
    %1384 = vmatprep.subr.mxu0 0.0
    %1385 = vmatpush1.xpose.msra.mxu0 0.0
    %1386 = vmatprep.subr.mxu0 0.0
    %1387 = vmatpush1.xpose.msra.mxu0 0.0
    %1388 = vmatprep.subr.mxu0 0.0
    %1389 = vmatpush1.xpose.msra.mxu0 0.0
    %1390 = vmatprep.subr.mxu0 0.0
    %1391 = vmatpush1.xpose.msra.mxu0 0.0
    %1392 = vmatprep.subr.mxu0 0.0
    %1393 = vmatpush1.xpose.msra.mxu0 0.0
    %1394 = vmatprep.subr.mxu0 0.0
    %1395 = vmatpush1.xpose.msra.mxu0 0.0
    %1396 = vmatprep.subr.mxu0 0.0
    %1397 = vmatpush1.xpose.msra.mxu0 0.0
    %1398 = vmatprep.subr.mxu0 0.0
    %1399 = vmatpush1.xpose.msra.mxu0 0.0
    %1400 = vmatprep.subr.mxu0 0.0
    %1401 = vmatpush1.xpose.msra.mxu0 0.0
    %1402 = vmatprep.subr.mxu0 0.0
    %1403 = vmatpush1.xpose.msra.mxu0 0.0
    %1404 = vmatprep.subr.mxu0 0.0
    %1405 = vmatpush1.xpose.msra.mxu0 0.0
    %1406 = vmatprep.subr.mxu0 0.0
    %1407 = vmatpush1.xpose.msra.mxu0 0.0
    %1408 = vmatprep.subr.mxu0 0.0
    %1409 = vmatpush1.xpose.msra.mxu0 0.0
    %1410 = vmatprep.subr.mxu0 0.0
    %1411 = vmatpush1.xpose.msra.mxu0 0.0
    %1412 = vmatprep.subr.mxu0 0.0
    %1413 = vmatpush1.xpose.msra.mxu0 0.0
    %1414 = vmatprep.subr.mxu0 0.0
    %1415 = vmatpush1.xpose.msra.mxu0 0.0
    %1416 = vmatprep.subr.mxu0 0.0
    %1417 = vmatpush1.xpose.msra.mxu0 0.0
    %1418 = vmatprep.subr.mxu0 0.0
    %1419 = vmatpush1.xpose.msra.mxu0 0.0
    %1420 = vmatprep.subr.mxu0 0.0
    %1421 = vmatpush1.xpose.msra.mxu0 0.0
    %1422 = vmatprep.subr.mxu0 0.0
    %1423 = vmatpush1.xpose.msra.mxu0 0.0
    %1424 = vmatprep.subr.mxu0 0.0
    %1425 = vmatpush1.xpose.msra.mxu0 0.0
    %1426 = vmatprep.subr.mxu0 0.0
    %1427 = vmatpush1.xpose.msra.mxu0 0.0
    %1428 = vmatprep.subr.mxu0 0.0
    %1429 = vmatpush1.xpose.msra.mxu0 0.0
    %1430 = vmatprep.mubr.f32.mxu0 0.0
    %1431 = vmatmul.mubr.f32.gmra.mrb[0].mxu0 %v1275
    %v1432 = vpop.f32.mrb[0].mxu0
    %v1433 = vadd.f32 0.0, %v1432
    %v1434 = vpop.f32.mrb[0].mxu0
    %1435 = vdwg.mxu0
    %v1436 = vmul.f32 %v1433, 0.35355338
    %v1437 = vsel %vm258, %v1436, -inf
    %1438 = vmax.xlane.f32.xlu0 %v1437
    %v1439 = vpop.xlane.xlu0 %1438
    %v1440 = vsub.f32 %v1436, %v1439
    %v1441 = vmul.f32 %v1440, 1.442695
    %v1442 = vpow.pop %v1441
    %v1443 = vsel %vm258, %v1442, 0.0
    %1444 = vadd.xlane.f32.xlu0 %v1443
    %v1445 = vpop.xlane.xlu0 %1444
    %v1446 = vrcp.pop %v1445
    %v1447 = vmul.f32 %v1442, %v1446
    %1448 = vrot.lane.b32.xlu0 %v246, 40
    %v1449 = vpop.permute.xlu0 %1448
    %v1452 = vsel %vm258, %v1447, 0
    %1454 = vmatprep.subr.mxu0 0.0
    %1455 = vmatpush1.msra.mxu0 %v1449
    %1456 = vmatprep.subr.mxu0 0.0
    %1457 = vmatpush1.msra.mxu0 0.0
    %1458 = vmatprep.subr.mxu0 0.0
    %1459 = vmatpush1.msra.mxu0 0.0
    %1460 = vmatprep.subr.mxu0 0.0
    %1461 = vmatpush1.msra.mxu0 0.0
    %1462 = vmatprep.subr.mxu0 0.0
    %1463 = vmatpush1.msra.mxu0 0.0
    %1464 = vmatprep.subr.mxu0 0.0
    %1465 = vmatpush1.msra.mxu0 0.0
    %1466 = vmatprep.subr.mxu0 0.0
    %1467 = vmatpush1.msra.mxu0 0.0
    %1468 = vmatprep.subr.mxu0 0.0
    %1469 = vmatpush1.msra.mxu0 0.0
    %1470 = vmatprep.subr.mxu0 0.0
    %1471 = vmatpush1.msra.mxu0 0.0
    %1472 = vmatprep.subr.mxu0 0.0
    %1473 = vmatpush1.msra.mxu0 0.0
    %1474 = vmatprep.subr.mxu0 0.0
    %1475 = vmatpush1.msra.mxu0 0.0
    %1476 = vmatprep.subr.mxu0 0.0
    %1477 = vmatpush1.msra.mxu0 0.0
    %1478 = vmatprep.subr.mxu0 0.0
    %1479 = vmatpush1.msra.mxu0 0.0
    %1480 = vmatprep.subr.mxu0 0.0
    %1481 = vmatpush1.msra.mxu0 0.0
    %1482 = vmatprep.subr.mxu0 0.0
    %1483 = vmatpush1.msra.mxu0 0.0
    %1484 = vmatprep.subr.mxu0 0.0
    %1485 = vmatpush1.msra.mxu0 0.0
    %1486 = vmatprep.subr.mxu0 0.0
    %1487 = vmatpush1.msra.mxu0 0.0
    %1488 = vmatprep.subr.mxu0 0.0
    %1489 = vmatpush1.msra.mxu0 0.0
    %1490 = vmatprep.subr.mxu0 0.0
    %1491 = vmatpush1.msra.mxu0 0.0
    %1492 = vmatprep.subr.mxu0 0.0
    %1493 = vmatpush1.msra.mxu0 0.0
    %1494 = vmatprep.subr.mxu0 0.0
    %1495 = vmatpush1.msra.mxu0 0.0
    %1496 = vmatprep.subr.mxu0 0.0
    %1497 = vmatpush1.msra.mxu0 0.0
    %1498 = vmatprep.subr.mxu0 0.0
    %1499 = vmatpush1.msra.mxu0 0.0
    %1500 = vmatprep.subr.mxu0 0.0
    %1501 = vmatpush1.msra.mxu0 0.0
    %1502 = vmatprep.subr.mxu0 0.0
    %1503 = vmatpush1.msra.mxu0 0.0
    %1504 = vmatprep.subr.mxu0 0.0
    %1505 = vmatpush1.msra.mxu0 0.0
    %1506 = vmatprep.subr.mxu0 0.0
    %1507 = vmatpush1.msra.mxu0 0.0
    %1508 = vmatprep.subr.mxu0 0.0
    %1509 = vmatpush1.msra.mxu0 0.0
    %1510 = vmatprep.subr.mxu0 0.0
    %1511 = vmatpush1.msra.mxu0 0.0
    %1512 = vmatprep.subr.mxu0 0.0
    %1513 = vmatpush1.msra.mxu0 0.0
    %1514 = vmatprep.subr.mxu0 0.0
    %1515 = vmatpush1.msra.mxu0 0.0
    %1516 = vmatprep.subr.mxu0 0.0
    %1517 = vmatpush1.msra.mxu0 0.0
    %1518 = vmatprep.mubr.f32.mxu0 0.0
    %1519 = vmatmul.mubr.f32.gmra.mrb[0].mxu0 %v1452
    %v1520 = vpop.f32.mrb[0].mxu0
    %v1521 = vadd.f32 0.0, %v1520
    %v1522 = vpop.f32.mrb[0].mxu0
    %1523 = vdwg.mxu0
    %1524 = vrot.lane.b32.xlu0 %v513, 104
    %v1525 = vpop.permute.xlu0 %1524
    %v1527 = vmul.f32 %v1521, %v1525
    %1528 = vrot.lane.b32.xlu0 %v167, 40
    %v1529 = vpop.permute.xlu0 %1528
    %v1532 = vsel %vm258, %v1361, 0
    %1534 = vmatprep.subr.mxu0 0.0
    %1535 = vmatpush1.msra.mxu0 %v1529
    %1536 = vmatprep.subr.mxu0 0.0
    %1537 = vmatpush1.msra.mxu0 0.0
    %1538 = vmatprep.subr.mxu0 0.0
    %1539 = vmatpush1.msra.mxu0 0.0
    %1540 = vmatprep.subr.mxu0 0.0
    %1541 = vmatpush1.msra.mxu0 0.0
    %1542 = vmatprep.subr.mxu0 0.0
    %1543 = vmatpush1.msra.mxu0 0.0
    %1544 = vmatprep.subr.mxu0 0.0
    %1545 = vmatpush1.msra.mxu0 0.0
    %1546 = vmatprep.subr.mxu0 0.0
    %1547 = vmatpush1.msra.mxu0 0.0
    %1548 = vmatprep.subr.mxu0 0.0
    %1549 = vmatpush1.msra.mxu0 0.0
    %1550 = vmatprep.subr.mxu0 0.0
    %1551 = vmatpush1.msra.mxu0 0.0
    %1552 = vmatprep.subr.mxu0 0.0
    %1553 = vmatpush1.msra.mxu0 0.0
    %1554 = vmatprep.subr.mxu0 0.0
    %1555 = vmatpush1.msra.mxu0 0.0
    %1556 = vmatprep.subr.mxu0 0.0
    %1557 = vmatpush1.msra.mxu0 0.0
    %1558 = vmatprep.subr.mxu0 0.0
    %1559 = vmatpush1.msra.mxu0 0.0
    %1560 = vmatprep.subr.mxu0 0.0
    %1561 = vmatpush1.msra.mxu0 0.0
    %1562 = vmatprep.subr.mxu0 0.0
    %1563 = vmatpush1.msra.mxu0 0.0
    %1564 = vmatprep.subr.mxu0 0.0
    %1565 = vmatpush1.msra.mxu0 0.0
    %1566 = vmatprep.subr.mxu0 0.0
    %1567 = vmatpush1.msra.mxu0 0.0
    %1568 = vmatprep.subr.mxu0 0.0
    %1569 = vmatpush1.msra.mxu0 0.0
    %1570 = vmatprep.subr.mxu0 0.0
    %1571 = vmatpush1.msra.mxu0 0.0
    %1572 = vmatprep.subr.mxu0 0.0
    %1573 = vmatpush1.msra.mxu0 0.0
    %1574 = vmatprep.subr.mxu0 0.0
    %1575 = vmatpush1.msra.mxu0 0.0
    %1576 = vmatprep.subr.mxu0 0.0
    %1577 = vmatpush1.msra.mxu0 0.0
    %1578 = vmatprep.subr.mxu0 0.0
    %1579 = vmatpush1.msra.mxu0 0.0
    %1580 = vmatprep.subr.mxu0 0.0
    %1581 = vmatpush1.msra.mxu0 0.0
    %1582 = vmatprep.subr.mxu0 0.0
    %1583 = vmatpush1.msra.mxu0 0.0
    %1584 = vmatprep.subr.mxu0 0.0
    %1585 = vmatpush1.msra.mxu0 0.0
    %1586 = vmatprep.subr.mxu0 0.0
    %1587 = vmatpush1.msra.mxu0 0.0
    %1588 = vmatprep.subr.mxu0 0.0
    %1589 = vmatpush1.msra.mxu0 0.0
    %1590 = vmatprep.subr.mxu0 0.0
    %1591 = vmatpush1.msra.mxu0 0.0
    %1592 = vmatprep.subr.mxu0 0.0
    %1593 = vmatpush1.msra.mxu0 0.0
    %1594 = vmatprep.subr.mxu0 0.0
    %1595 = vmatpush1.msra.mxu0 0.0
    %1596 = vmatprep.subr.mxu0 0.0
    %1597 = vmatpush1.msra.mxu0 0.0
    %1598 = vmatprep.mubr.f32.mxu0 0.0
    %1599 = vmatmul.mubr.f32.gmra.mrb[0].mxu0 %v1532
    %v1600 = vpop.f32.mrb[0].mxu0
    %v1601 = vadd.f32 %v1527, %v1600
    %v1602 = vpop.f32.mrb[0].mxu0
    %1603 = vdwg.mxu0
    %1605 = vrot.lane.b32.xlu0 %v1601, 24
    %v1606 = vpop.permute.xlu0 %1605
    %vm1608 = vcmask 261312
    %1609 = vst.msk [vmem:[#allocation2] sm:$0xff] %vm1608, %v1606
    %1611 = vrot.lane.b32.xlu0 %v172, 96
    %v1612 = vpop.permute.xlu0 %1611
    %v1613 = vsel %vm258, %v172, 0
    %v1615 = vsel %vm258, %v1612, 0
    %1617 = vmatprep.subr.mxu0 0.0
    %1618 = vmatpush1.xpose.msra.mxu0 %v1615
    %1619 = vmatprep.subr.mxu0 0.0
    %1620 = vmatpush1.xpose.msra.mxu0 0.0
    %1621 = vmatprep.subr.mxu0 0.0
    %1622 = vmatpush1.xpose.msra.mxu0 0.0
    %1623 = vmatprep.subr.mxu0 0.0
    %1624 = vmatpush1.xpose.msra.mxu0 0.0
    %1625 = vmatprep.subr.mxu0 0.0
    %1626 = vmatpush1.xpose.msra.mxu0 0.0
    %1627 = vmatprep.subr.mxu0 0.0
    %1628 = vmatpush1.xpose.msra.mxu0 0.0
    %1629 = vmatprep.subr.mxu0 0.0
    %1630 = vmatpush1.xpose.msra.mxu0 0.0
    %1631 = vmatprep.subr.mxu0 0.0
    %1632 = vmatpush1.xpose.msra.mxu0 0.0
    %1633 = vmatprep.subr.mxu0 0.0
    %1634 = vmatpush1.xpose.msra.mxu0 0.0
    %1635 = vmatprep.subr.mxu0 0.0
    %1636 = vmatpush1.xpose.msra.mxu0 0.0
    %1637 = vmatprep.subr.mxu0 0.0
    %1638 = vmatpush1.xpose.msra.mxu0 0.0
    %1639 = vmatprep.subr.mxu0 0.0
    %1640 = vmatpush1.xpose.msra.mxu0 0.0
    %1641 = vmatprep.subr.mxu0 0.0
    %1642 = vmatpush1.xpose.msra.mxu0 0.0
    %1643 = vmatprep.subr.mxu0 0.0
    %1644 = vmatpush1.xpose.msra.mxu0 0.0
    %1645 = vmatprep.subr.mxu0 0.0
    %1646 = vmatpush1.xpose.msra.mxu0 0.0
    %1647 = vmatprep.subr.mxu0 0.0
    %1648 = vmatpush1.xpose.msra.mxu0 0.0
    %1649 = vmatprep.subr.mxu0 0.0
    %1650 = vmatpush1.xpose.msra.mxu0 0.0
    %1651 = vmatprep.subr.mxu0 0.0
    %1652 = vmatpush1.xpose.msra.mxu0 0.0
    %1653 = vmatprep.subr.mxu0 0.0
    %1654 = vmatpush1.xpose.msra.mxu0 0.0
    %1655 = vmatprep.subr.mxu0 0.0
    %1656 = vmatpush1.xpose.msra.mxu0 0.0
    %1657 = vmatprep.subr.mxu0 0.0
    %1658 = vmatpush1.xpose.msra.mxu0 0.0
    %1659 = vmatprep.subr.mxu0 0.0
    %1660 = vmatpush1.xpose.msra.mxu0 0.0
    %1661 = vmatprep.subr.mxu0 0.0
    %1662 = vmatpush1.xpose.msra.mxu0 0.0
    %1663 = vmatprep.subr.mxu0 0.0
    %1664 = vmatpush1.xpose.msra.mxu0 0.0
    %1665 = vmatprep.subr.mxu0 0.0
    %1666 = vmatpush1.xpose.msra.mxu0 0.0
    %1667 = vmatprep.subr.mxu0 0.0
    %1668 = vmatpush1.xpose.msra.mxu0 0.0
    %1669 = vmatprep.subr.mxu0 0.0
    %1670 = vmatpush1.xpose.msra.mxu0 0.0
    %1671 = vmatprep.subr.mxu0 0.0
    %1672 = vmatpush1.xpose.msra.mxu0 0.0
    %1673 = vmatprep.subr.mxu0 0.0
    %1674 = vmatpush1.xpose.msra.mxu0 0.0
    %1675 = vmatprep.subr.mxu0 0.0
    %1676 = vmatpush1.xpose.msra.mxu0 0.0
    %1677 = vmatprep.subr.mxu0 0.0
    %1678 = vmatpush1.xpose.msra.mxu0 0.0
    %1679 = vmatprep.subr.mxu0 0.0
    %1680 = vmatpush1.xpose.msra.mxu0 0.0
    %1681 = vmatprep.mubr.f32.mxu0 0.0
    %1682 = vmatmul.mubr.f32.gmra.mrb[0].mxu0 %v1613
    %v1683 = vpop.f32.mrb[0].mxu0
    %v1684 = vadd.f32 0.0, %v1683
    %v1685 = vpop.f32.mrb[0].mxu0
    %1686 = vdwg.mxu0
    %v1687 = vmul.f32 %v1684, 0.35355338
    %v1688 = vsel %vm253, %v1687, -10000.0
    %v1689 = vsel %vm258, %v1688, -inf
    %1690 = vmax.xlane.f32.xlu0 %v1689
    %v1691 = vpop.xlane.xlu0 %1690
    %v1692 = vsub.f32 %v1688, %v1691
    %v1693 = vmul.f32 %v1692, 1.442695
    %v1694 = vpow.pop %v1693
    %v1695 = vsel %vm258, %v1694, 0.0
    %1696 = vadd.xlane.f32.xlu0 %v1695
    %v1697 = vpop.xlane.xlu0 %1696
    %v1698 = vrcp.pop %v1697
    %v1699 = vmul.f32 %v1694, %v1698
    %1700 = vmatprep.subr.mxu0 0.0
    %1701 = vmatpush1.xpose.msra.mxu0 %v349
    %1702 = vmatprep.subr.mxu0 0.0
    %1703 = vmatpush1.xpose.msra.mxu0 0.0
    %1704 = vmatprep.subr.mxu0 0.0
    %1705 = vmatpush1.xpose.msra.mxu0 0.0
    %1706 = vmatprep.subr.mxu0 0.0
    %1707 = vmatpush1.xpose.msra.mxu0 0.0
    %1708 = vmatprep.subr.mxu0 0.0
    %1709 = vmatpush1.xpose.msra.mxu0 0.0
    %1710 = vmatprep.subr.mxu0 0.0
    %1711 = vmatpush1.xpose.msra.mxu0 0.0
    %1712 = vmatprep.subr.mxu0 0.0
    %1713 = vmatpush1.xpose.msra.mxu0 0.0
    %1714 = vmatprep.subr.mxu0 0.0
    %1715 = vmatpush1.xpose.msra.mxu0 0.0
    %1716 = vmatprep.subr.mxu0 0.0
    %1717 = vmatpush1.xpose.msra.mxu0 0.0
    %1718 = vmatprep.subr.mxu0 0.0
    %1719 = vmatpush1.xpose.msra.mxu0 0.0
    %1720 = vmatprep.subr.mxu0 0.0
    %1721 = vmatpush1.xpose.msra.mxu0 0.0
    %1722 = vmatprep.subr.mxu0 0.0
    %1723 = vmatpush1.xpose.msra.mxu0 0.0
    %1724 = vmatprep.subr.mxu0 0.0
    %1725 = vmatpush1.xpose.msra.mxu0 0.0
    %1726 = vmatprep.subr.mxu0 0.0
    %1727 = vmatpush1.xpose.msra.mxu0 0.0
    %1728 = vmatprep.subr.mxu0 0.0
    %1729 = vmatpush1.xpose.msra.mxu0 0.0
    %1730 = vmatprep.subr.mxu0 0.0
    %1731 = vmatpush1.xpose.msra.mxu0 0.0
    %1732 = vmatprep.subr.mxu0 0.0
    %1733 = vmatpush1.xpose.msra.mxu0 0.0
    %1734 = vmatprep.subr.mxu0 0.0
    %1735 = vmatpush1.xpose.msra.mxu0 0.0
    %1736 = vmatprep.subr.mxu0 0.0
    %1737 = vmatpush1.xpose.msra.mxu0 0.0
    %1738 = vmatprep.subr.mxu0 0.0
    %1739 = vmatpush1.xpose.msra.mxu0 0.0
    %1740 = vmatprep.subr.mxu0 0.0
    %1741 = vmatpush1.xpose.msra.mxu0 0.0
    %1742 = vmatprep.subr.mxu0 0.0
    %1743 = vmatpush1.xpose.msra.mxu0 0.0
    %1744 = vmatprep.subr.mxu0 0.0
    %1745 = vmatpush1.xpose.msra.mxu0 0.0
    %1746 = vmatprep.subr.mxu0 0.0
    %1747 = vmatpush1.xpose.msra.mxu0 0.0
    %1748 = vmatprep.subr.mxu0 0.0
    %1749 = vmatpush1.xpose.msra.mxu0 0.0
    %1750 = vmatprep.subr.mxu0 0.0
    %1751 = vmatpush1.xpose.msra.mxu0 0.0
    %1752 = vmatprep.subr.mxu0 0.0
    %1753 = vmatpush1.xpose.msra.mxu0 0.0
    %1754 = vmatprep.subr.mxu0 0.0
    %1755 = vmatpush1.xpose.msra.mxu0 0.0
    %1756 = vmatprep.subr.mxu0 0.0
    %1757 = vmatpush1.xpose.msra.mxu0 0.0
    %1758 = vmatprep.subr.mxu0 0.0
    %1759 = vmatpush1.xpose.msra.mxu0 0.0
    %1760 = vmatprep.subr.mxu0 0.0
    %1761 = vmatpush1.xpose.msra.mxu0 0.0
    %1762 = vmatprep.subr.mxu0 0.0
    %1763 = vmatpush1.xpose.msra.mxu0 0.0
    %1764 = vmatprep.mubr.f32.mxu0 0.0
    %1765 = vmatmul.mubr.f32.gmra.mrb[0].mxu0 %v1613
    %v1766 = vpop.f32.mrb[0].mxu0
    %v1767 = vadd.f32 0.0, %v1766
    %v1768 = vpop.f32.mrb[0].mxu0
    %1769 = vdwg.mxu0
    %v1770 = vmul.f32 %v1767, 0.35355338
    %v1771 = vsel %vm258, %v1770, -inf
    %1772 = vmax.xlane.f32.xlu0 %v1771
    %v1773 = vpop.xlane.xlu0 %1772
    %v1774 = vsub.f32 %v1770, %v1773
    %v1775 = vmul.f32 %v1774, 1.442695
    %v1776 = vpow.pop %v1775
    %v1777 = vsel %vm258, %v1776, 0.0
    %1778 = vadd.xlane.f32.xlu0 %v1777
    %v1779 = vpop.xlane.xlu0 %1778
    %v1780 = vrcp.pop %v1779
    %v1781 = vmul.f32 %v1776, %v1780
    %v1783 = vsel %vm258, %v1781, 0
    %1785 = vmatprep.subr.mxu0 0.0
    %1786 = vmatpush1.msra.mxu0 %v434
    %1787 = vmatprep.subr.mxu0 0.0
    %1788 = vmatpush1.msra.mxu0 0.0
    %1789 = vmatprep.subr.mxu0 0.0
    %1790 = vmatpush1.msra.mxu0 0.0
    %1791 = vmatprep.subr.mxu0 0.0
    %1792 = vmatpush1.msra.mxu0 0.0
    %1793 = vmatprep.subr.mxu0 0.0
    %1794 = vmatpush1.msra.mxu0 0.0
    %1795 = vmatprep.subr.mxu0 0.0
    %1796 = vmatpush1.msra.mxu0 0.0
    %1797 = vmatprep.subr.mxu0 0.0
    %1798 = vmatpush1.msra.mxu0 0.0
    %1799 = vmatprep.subr.mxu0 0.0
    %1800 = vmatpush1.msra.mxu0 0.0
    %1801 = vmatprep.subr.mxu0 0.0
    %1802 = vmatpush1.msra.mxu0 0.0
    %1803 = vmatprep.subr.mxu0 0.0
    %1804 = vmatpush1.msra.mxu0 0.0
    %1805 = vmatprep.subr.mxu0 0.0
    %1806 = vmatpush1.msra.mxu0 0.0
    %1807 = vmatprep.subr.mxu0 0.0
    %1808 = vmatpush1.msra.mxu0 0.0
    %1809 = vmatprep.subr.mxu0 0.0
    %1810 = vmatpush1.msra.mxu0 0.0
    %1811 = vmatprep.subr.mxu0 0.0
    %1812 = vmatpush1.msra.mxu0 0.0
    %1813 = vmatprep.subr.mxu0 0.0
    %1814 = vmatpush1.msra.mxu0 0.0
    %1815 = vmatprep.subr.mxu0 0.0
    %1816 = vmatpush1.msra.mxu0 0.0
    %1817 = vmatprep.subr.mxu0 0.0
    %1818 = vmatpush1.msra.mxu0 0.0
    %1819 = vmatprep.subr.mxu0 0.0
    %1820 = vmatpush1.msra.mxu0 0.0
    %1821 = vmatprep.subr.mxu0 0.0
    %1822 = vmatpush1.msra.mxu0 0.0
    %1823 = vmatprep.subr.mxu0 0.0
    %1824 = vmatpush1.msra.mxu0 0.0
    %1825 = vmatprep.subr.mxu0 0.0
    %1826 = vmatpush1.msra.mxu0 0.0
    %1827 = vmatprep.subr.mxu0 0.0
    %1828 = vmatpush1.msra.mxu0 0.0
    %1829 = vmatprep.subr.mxu0 0.0
    %1830 = vmatpush1.msra.mxu0 0.0
    %1831 = vmatprep.subr.mxu0 0.0
    %1832 = vmatpush1.msra.mxu0 0.0
    %1833 = vmatprep.subr.mxu0 0.0
    %1834 = vmatpush1.msra.mxu0 0.0
    %1835 = vmatprep.subr.mxu0 0.0
    %1836 = vmatpush1.msra.mxu0 0.0
    %1837 = vmatprep.subr.mxu0 0.0
    %1838 = vmatpush1.msra.mxu0 0.0
    %1839 = vmatprep.subr.mxu0 0.0
    %1840 = vmatpush1.msra.mxu0 0.0
    %1841 = vmatprep.subr.mxu0 0.0
    %1842 = vmatpush1.msra.mxu0 0.0
    %1843 = vmatprep.subr.mxu0 0.0
    %1844 = vmatpush1.msra.mxu0 0.0
    %1845 = vmatprep.subr.mxu0 0.0
    %1846 = vmatpush1.msra.mxu0 0.0
    %1847 = vmatprep.subr.mxu0 0.0
    %1848 = vmatpush1.msra.mxu0 0.0
    %1849 = vmatprep.mubr.f32.mxu0 0.0
    %1850 = vmatmul.mubr.f32.gmra.mrb[0].mxu0 %v1783
    %v1851 = vpop.f32.mrb[0].mxu0
    %v1852 = vadd.f32 0.0, %v1851
    %v1853 = vpop.f32.mrb[0].mxu0
    %1854 = vdwg.mxu0
    %v1855 = vmul.f32 %v1852, %v513
    %1856 = vrot.lane.b32.xlu0 %v172, 64
    %v1857 = vpop.permute.xlu0 %1856
    %v1860 = vsel %vm258, %v1699, 0
    %1862 = vmatprep.subr.mxu0 0.0
    %1863 = vmatpush1.msra.mxu0 %v1857
    %1864 = vmatprep.subr.mxu0 0.0
    %1865 = vmatpush1.msra.mxu0 0.0
    %1866 = vmatprep.subr.mxu0 0.0
    %1867 = vmatpush1.msra.mxu0 0.0
    %1868 = vmatprep.subr.mxu0 0.0
    %1869 = vmatpush1.msra.mxu0 0.0
    %1870 = vmatprep.subr.mxu0 0.0
    %1871 = vmatpush1.msra.mxu0 0.0
    %1872 = vmatprep.subr.mxu0 0.0
    %1873 = vmatpush1.msra.mxu0 0.0
    %1874 = vmatprep.subr.mxu0 0.0
    %1875 = vmatpush1.msra.mxu0 0.0
    %1876 = vmatprep.subr.mxu0 0.0
    %1877 = vmatpush1.msra.mxu0 0.0
    %1878 = vmatprep.subr.mxu0 0.0
    %1879 = vmatpush1.msra.mxu0 0.0
    %1880 = vmatprep.subr.mxu0 0.0
    %1881 = vmatpush1.msra.mxu0 0.0
    %1882 = vmatprep.subr.mxu0 0.0
    %1883 = vmatpush1.msra.mxu0 0.0
    %1884 = vmatprep.subr.mxu0 0.0
    %1885 = vmatpush1.msra.mxu0 0.0
    %1886 = vmatprep.subr.mxu0 0.0
    %1887 = vmatpush1.msra.mxu0 0.0
    %1888 = vmatprep.subr.mxu0 0.0
    %1889 = vmatpush1.msra.mxu0 0.0
    %1890 = vmatprep.subr.mxu0 0.0
    %1891 = vmatpush1.msra.mxu0 0.0
    %1892 = vmatprep.subr.mxu0 0.0
    %1893 = vmatpush1.msra.mxu0 0.0
    %1894 = vmatprep.subr.mxu0 0.0
    %1895 = vmatpush1.msra.mxu0 0.0
    %1896 = vmatprep.subr.mxu0 0.0
    %1897 = vmatpush1.msra.mxu0 0.0
    %1898 = vmatprep.subr.mxu0 0.0
    %1899 = vmatpush1.msra.mxu0 0.0
    %1900 = vmatprep.subr.mxu0 0.0
    %1901 = vmatpush1.msra.mxu0 0.0
    %1902 = vmatprep.subr.mxu0 0.0
    %1903 = vmatpush1.msra.mxu0 0.0
    %1904 = vmatprep.subr.mxu0 0.0
    %1905 = vmatpush1.msra.mxu0 0.0
    %1906 = vmatprep.subr.mxu0 0.0
    %1907 = vmatpush1.msra.mxu0 0.0
    %1908 = vmatprep.subr.mxu0 0.0
    %1909 = vmatpush1.msra.mxu0 0.0
    %1910 = vmatprep.subr.mxu0 0.0
    %1911 = vmatpush1.msra.mxu0 0.0
    %1912 = vmatprep.subr.mxu0 0.0
    %1913 = vmatpush1.msra.mxu0 0.0
    %1914 = vmatprep.subr.mxu0 0.0
    %1915 = vmatpush1.msra.mxu0 0.0
    %1916 = vmatprep.subr.mxu0 0.0
    %1917 = vmatpush1.msra.mxu0 0.0
    %1918 = vmatprep.subr.mxu0 0.0
    %1919 = vmatpush1.msra.mxu0 0.0
    %1920 = vmatprep.subr.mxu0 0.0
    %1921 = vmatpush1.msra.mxu0 0.0
    %1922 = vmatprep.subr.mxu0 0.0
    %1923 = vmatpush1.msra.mxu0 0.0
    %1924 = vmatprep.subr.mxu0 0.0
    %1925 = vmatpush1.msra.mxu0 0.0
    %1926 = vmatprep.mubr.f32.mxu0 0.0
    %1927 = vmatmul.mubr.f32.gmra.mrb[0].mxu0 %v1860
    %v1928 = vpop.f32.mrb[0].mxu0
    %v1929 = vadd.f32 %v1855, %v1928
    %v1930 = vpop.f32.mrb[0].mxu0
    %1931 = vdwg.mxu0
    %1932 = vst.msk [vmem:[#allocation2 + $0x8] sm:$0xff] %vm258, %v1929
    %1933 = vrot.lane.b32.xlu0 %v172, 120
    %v1934 = vpop.permute.xlu0 %1933
    %1935 = vrot.lane.b32.xlu0 %v172, 88
    %v1936 = vpop.permute.xlu0 %1935
    %v1937 = vsel %vm258, %v1934, 0
    %v1939 = vsel %vm258, %v1936, 0
    %1941 = vmatprep.subr.mxu0 0.0
    %1942 = vmatpush1.xpose.msra.mxu0 %v1939
    %1943 = vmatprep.subr.mxu0 0.0
    %1944 = vmatpush1.xpose.msra.mxu0 0.0
    %1945 = vmatprep.subr.mxu0 0.0
    %1946 = vmatpush1.xpose.msra.mxu0 0.0
    %1947 = vmatprep.subr.mxu0 0.0
    %1948 = vmatpush1.xpose.msra.mxu0 0.0
    %1949 = vmatprep.subr.mxu0 0.0
    %1950 = vmatpush1.xpose.msra.mxu0 0.0
    %1951 = vmatprep.subr.mxu0 0.0
    %1952 = vmatpush1.xpose.msra.mxu0 0.0
    %1953 = vmatprep.subr.mxu0 0.0
    %1954 = vmatpush1.xpose.msra.mxu0 0.0
    %1955 = vmatprep.subr.mxu0 0.0
    %1956 = vmatpush1.xpose.msra.mxu0 0.0
    %1957 = vmatprep.subr.mxu0 0.0
    %1958 = vmatpush1.xpose.msra.mxu0 0.0
    %1959 = vmatprep.subr.mxu0 0.0
    %1960 = vmatpush1.xpose.msra.mxu0 0.0
    %1961 = vmatprep.subr.mxu0 0.0
    %1962 = vmatpush1.xpose.msra.mxu0 0.0
    %1963 = vmatprep.subr.mxu0 0.0
    %1964 = vmatpush1.xpose.msra.mxu0 0.0
    %1965 = vmatprep.subr.mxu0 0.0
    %1966 = vmatpush1.xpose.msra.mxu0 0.0
    %1967 = vmatprep.subr.mxu0 0.0
    %1968 = vmatpush1.xpose.msra.mxu0 0.0
    %1969 = vmatprep.subr.mxu0 0.0
    %1970 = vmatpush1.xpose.msra.mxu0 0.0
    %1971 = vmatprep.subr.mxu0 0.0
    %1972 = vmatpush1.xpose.msra.mxu0 0.0
    %1973 = vmatprep.subr.mxu0 0.0
    %1974 = vmatpush1.xpose.msra.mxu0 0.0
    %1975 = vmatprep.subr.mxu0 0.0
    %1976 = vmatpush1.xpose.msra.mxu0 0.0
    %1977 = vmatprep.subr.mxu0 0.0
    %1978 = vmatpush1.xpose.msra.mxu0 0.0
    %1979 = vmatprep.subr.mxu0 0.0
    %1980 = vmatpush1.xpose.msra.mxu0 0.0
    %1981 = vmatprep.subr.mxu0 0.0
    %1982 = vmatpush1.xpose.msra.mxu0 0.0
    %1983 = vmatprep.subr.mxu0 0.0
    %1984 = vmatpush1.xpose.msra.mxu0 0.0
    %1985 = vmatprep.subr.mxu0 0.0
    %1986 = vmatpush1.xpose.msra.mxu0 0.0
    %1987 = vmatprep.subr.mxu0 0.0
    %1988 = vmatpush1.xpose.msra.mxu0 0.0
    %1989 = vmatprep.subr.mxu0 0.0
    %1990 = vmatpush1.xpose.msra.mxu0 0.0
    %1991 = vmatprep.subr.mxu0 0.0
    %1992 = vmatpush1.xpose.msra.mxu0 0.0
    %1993 = vmatprep.subr.mxu0 0.0
    %1994 = vmatpush1.xpose.msra.mxu0 0.0
    %1995 = vmatprep.subr.mxu0 0.0
    %1996 = vmatpush1.xpose.msra.mxu0 0.0
    %1997 = vmatprep.subr.mxu0 0.0
    %1998 = vmatpush1.xpose.msra.mxu0 0.0
    %1999 = vmatprep.subr.mxu0 0.0
    %2000 = vmatpush1.xpose.msra.mxu0 0.0
    %2001 = vmatprep.subr.mxu0 0.0
    %2002 = vmatpush1.xpose.msra.mxu0 0.0
    %2003 = vmatprep.subr.mxu0 0.0
    %2004 = vmatpush1.xpose.msra.mxu0 0.0
    %2005 = vmatprep.mubr.f32.mxu0 0.0
    %2006 = vmatmul.mubr.f32.gmra.mrb[0].mxu0 %v1937
    %v2007 = vpop.f32.mrb[0].mxu0
    %v2008 = vadd.f32 0.0, %v2007
    %v2009 = vpop.f32.mrb[0].mxu0
    %2010 = vdwg.mxu0
    %v2011 = vmul.f32 %v2008, 0.35355338
    %v2012 = vsel %vm253, %v2011, -10000.0
    %v2013 = vsel %vm258, %v2012, -inf
    %2014 = vmax.xlane.f32.xlu0 %v2013
    %v2015 = vpop.xlane.xlu0 %2014
    %v2016 = vsub.f32 %v2012, %v2015
    %v2017 = vmul.f32 %v2016, 1.442695
    %v2018 = vpow.pop %v2017
    %v2019 = vsel %vm258, %v2018, 0.0
    %2020 = vadd.xlane.f32.xlu0 %v2019
    %v2021 = vpop.xlane.xlu0 %2020
    %v2022 = vrcp.pop %v2021
    %v2023 = vmul.f32 %v2018, %v2022
    %2024 = vmatprep.subr.mxu0 0.0
    %2025 = vmatpush1.xpose.msra.mxu0 %v686
    %2026 = vmatprep.subr.mxu0 0.0
    %2027 = vmatpush1.xpose.msra.mxu0 0.0
    %2028 = vmatprep.subr.mxu0 0.0
    %2029 = vmatpush1.xpose.msra.mxu0 0.0
    %2030 = vmatprep.subr.mxu0 0.0
    %2031 = vmatpush1.xpose.msra.mxu0 0.0
    %2032 = vmatprep.subr.mxu0 0.0
    %2033 = vmatpush1.xpose.msra.mxu0 0.0
    %2034 = vmatprep.subr.mxu0 0.0
    %2035 = vmatpush1.xpose.msra.mxu0 0.0
    %2036 = vmatprep.subr.mxu0 0.0
    %2037 = vmatpush1.xpose.msra.mxu0 0.0
    %2038 = vmatprep.subr.mxu0 0.0
    %2039 = vmatpush1.xpose.msra.mxu0 0.0
    %2040 = vmatprep.subr.mxu0 0.0
    %2041 = vmatpush1.xpose.msra.mxu0 0.0
    %2042 = vmatprep.subr.mxu0 0.0
    %2043 = vmatpush1.xpose.msra.mxu0 0.0
    %2044 = vmatprep.subr.mxu0 0.0
    %2045 = vmatpush1.xpose.msra.mxu0 0.0
    %2046 = vmatprep.subr.mxu0 0.0
    %2047 = vmatpush1.xpose.msra.mxu0 0.0
    %2048 = vmatprep.subr.mxu0 0.0
    %2049 = vmatpush1.xpose.msra.mxu0 0.0
    %2050 = vmatprep.subr.mxu0 0.0
    %2051 = vmatpush1.xpose.msra.mxu0 0.0
    %2052 = vmatprep.subr.mxu0 0.0
    %2053 = vmatpush1.xpose.msra.mxu0 0.0
    %2054 = vmatprep.subr.mxu0 0.0
    %2055 = vmatpush1.xpose.msra.mxu0 0.0
    %2056 = vmatprep.subr.mxu0 0.0
    %2057 = vmatpush1.xpose.msra.mxu0 0.0
    %2058 = vmatprep.subr.mxu0 0.0
    %2059 = vmatpush1.xpose.msra.mxu0 0.0
    %2060 = vmatprep.subr.mxu0 0.0
    %2061 = vmatpush1.xpose.msra.mxu0 0.0
    %2062 = vmatprep.subr.mxu0 0.0
    %2063 = vmatpush1.xpose.msra.mxu0 0.0
    %2064 = vmatprep.subr.mxu0 0.0
    %2065 = vmatpush1.xpose.msra.mxu0 0.0
    %2066 = vmatprep.subr.mxu0 0.0
    %2067 = vmatpush1.xpose.msra.mxu0 0.0
    %2068 = vmatprep.subr.mxu0 0.0
    %2069 = vmatpush1.xpose.msra.mxu0 0.0
    %2070 = vmatprep.subr.mxu0 0.0
    %2071 = vmatpush1.xpose.msra.mxu0 0.0
    %2072 = vmatprep.subr.mxu0 0.0
    %2073 = vmatpush1.xpose.msra.mxu0 0.0
    %2074 = vmatprep.subr.mxu0 0.0
    %2075 = vmatpush1.xpose.msra.mxu0 0.0
    %2076 = vmatprep.subr.mxu0 0.0
    %2077 = vmatpush1.xpose.msra.mxu0 0.0
    %2078 = vmatprep.subr.mxu0 0.0
    %2079 = vmatpush1.xpose.msra.mxu0 0.0
    %2080 = vmatprep.subr.mxu0 0.0
    %2081 = vmatpush1.xpose.msra.mxu0 0.0
    %2082 = vmatprep.subr.mxu0 0.0
    %2083 = vmatpush1.xpose.msra.mxu0 0.0
    %2084 = vmatprep.subr.mxu0 0.0
    %2085 = vmatpush1.xpose.msra.mxu0 0.0
    %2086 = vmatprep.subr.mxu0 0.0
    %2087 = vmatpush1.xpose.msra.mxu0 0.0
    %2088 = vmatprep.mubr.f32.mxu0 0.0
    %2089 = vmatmul.mubr.f32.gmra.mrb[0].mxu0 %v1937
    %v2090 = vpop.f32.mrb[0].mxu0
    %v2091 = vadd.f32 0.0, %v2090
    %v2092 = vpop.f32.mrb[0].mxu0
    %2093 = vdwg.mxu0
    %v2094 = vmul.f32 %v2091, 0.35355338
    %v2095 = vsel %vm258, %v2094, -inf
    %2096 = vmax.xlane.f32.xlu0 %v2095
    %v2097 = vpop.xlane.xlu0 %2096
    %v2098 = vsub.f32 %v2094, %v2097
    %v2099 = vmul.f32 %v2098, 1.442695
    %v2100 = vpow.pop %v2099
    %v2101 = vsel %vm258, %v2100, 0.0
    %2102 = vadd.xlane.f32.xlu0 %v2101
    %v2103 = vpop.xlane.xlu0 %2102
    %v2104 = vrcp.pop %v2103
    %v2105 = vmul.f32 %v2100, %v2104
    %v2107 = vsel %vm258, %v2105, 0
    %2109 = vmatprep.subr.mxu0 0.0
    %2110 = vmatpush1.msra.mxu0 %v771
    %2111 = vmatprep.subr.mxu0 0.0
    %2112 = vmatpush1.msra.mxu0 0.0
    %2113 = vmatprep.subr.mxu0 0.0
    %2114 = vmatpush1.msra.mxu0 0.0
    %2115 = vmatprep.subr.mxu0 0.0
    %2116 = vmatpush1.msra.mxu0 0.0
    %2117 = vmatprep.subr.mxu0 0.0
    %2118 = vmatpush1.msra.mxu0 0.0
    %2119 = vmatprep.subr.mxu0 0.0
    %2120 = vmatpush1.msra.mxu0 0.0
    %2121 = vmatprep.subr.mxu0 0.0
    %2122 = vmatpush1.msra.mxu0 0.0
    %2123 = vmatprep.subr.mxu0 0.0
    %2124 = vmatpush1.msra.mxu0 0.0
    %2125 = vmatprep.subr.mxu0 0.0
    %2126 = vmatpush1.msra.mxu0 0.0
    %2127 = vmatprep.subr.mxu0 0.0
    %2128 = vmatpush1.msra.mxu0 0.0
    %2129 = vmatprep.subr.mxu0 0.0
    %2130 = vmatpush1.msra.mxu0 0.0
    %2131 = vmatprep.subr.mxu0 0.0
    %2132 = vmatpush1.msra.mxu0 0.0
    %2133 = vmatprep.subr.mxu0 0.0
    %2134 = vmatpush1.msra.mxu0 0.0
    %2135 = vmatprep.subr.mxu0 0.0
    %2136 = vmatpush1.msra.mxu0 0.0
    %2137 = vmatprep.subr.mxu0 0.0
    %2138 = vmatpush1.msra.mxu0 0.0
    %2139 = vmatprep.subr.mxu0 0.0
    %2140 = vmatpush1.msra.mxu0 0.0
    %2141 = vmatprep.subr.mxu0 0.0
    %2142 = vmatpush1.msra.mxu0 0.0
    %2143 = vmatprep.subr.mxu0 0.0
    %2144 = vmatpush1.msra.mxu0 0.0
    %2145 = vmatprep.subr.mxu0 0.0
    %2146 = vmatpush1.msra.mxu0 0.0
    %2147 = vmatprep.subr.mxu0 0.0
    %2148 = vmatpush1.msra.mxu0 0.0
    %2149 = vmatprep.subr.mxu0 0.0
    %2150 = vmatpush1.msra.mxu0 0.0
    %2151 = vmatprep.subr.mxu0 0.0
    %2152 = vmatpush1.msra.mxu0 0.0
    %2153 = vmatprep.subr.mxu0 0.0
    %2154 = vmatpush1.msra.mxu0 0.0
    %2155 = vmatprep.subr.mxu0 0.0
    %2156 = vmatpush1.msra.mxu0 0.0
    %2157 = vmatprep.subr.mxu0 0.0
    %2158 = vmatpush1.msra.mxu0 0.0
    %2159 = vmatprep.subr.mxu0 0.0
    %2160 = vmatpush1.msra.mxu0 0.0
    %2161 = vmatprep.subr.mxu0 0.0
    %2162 = vmatpush1.msra.mxu0 0.0
    %2163 = vmatprep.subr.mxu0 0.0
    %2164 = vmatpush1.msra.mxu0 0.0
    %2165 = vmatprep.subr.mxu0 0.0
    %2166 = vmatpush1.msra.mxu0 0.0
    %2167 = vmatprep.subr.mxu0 0.0
    %2168 = vmatpush1.msra.mxu0 0.0
    %2169 = vmatprep.subr.mxu0 0.0
    %2170 = vmatpush1.msra.mxu0 0.0
    %2171 = vmatprep.subr.mxu0 0.0
    %2172 = vmatpush1.msra.mxu0 0.0
    %2173 = vmatprep.mubr.f32.mxu0 0.0
    %2174 = vmatmul.mubr.f32.gmra.mrb[0].mxu0 %v2107
    %v2175 = vpop.f32.mrb[0].mxu0
    %v2176 = vadd.f32 0.0, %v2175
    %v2177 = vpop.f32.mrb[0].mxu0
    %2178 = vdwg.mxu0
    %v2179 = vmul.f32 %v2176, %v847
    %2180 = vrot.lane.b32.xlu0 %v172, 56
    %v2181 = vpop.permute.xlu0 %2180
    %v2184 = vsel %vm258, %v2023, 0
    %2186 = vmatprep.subr.mxu0 0.0
    %2187 = vmatpush1.msra.mxu0 %v2181
    %2188 = vmatprep.subr.mxu0 0.0
    %2189 = vmatpush1.msra.mxu0 0.0
    %2190 = vmatprep.subr.mxu0 0.0
    %2191 = vmatpush1.msra.mxu0 0.0
    %2192 = vmatprep.subr.mxu0 0.0
    %2193 = vmatpush1.msra.mxu0 0.0
    %2194 = vmatprep.subr.mxu0 0.0
    %2195 = vmatpush1.msra.mxu0 0.0
    %2196 = vmatprep.subr.mxu0 0.0
    %2197 = vmatpush1.msra.mxu0 0.0
    %2198 = vmatprep.subr.mxu0 0.0
    %2199 = vmatpush1.msra.mxu0 0.0
    %2200 = vmatprep.subr.mxu0 0.0
    %2201 = vmatpush1.msra.mxu0 0.0
    %2202 = vmatprep.subr.mxu0 0.0
    %2203 = vmatpush1.msra.mxu0 0.0
    %2204 = vmatprep.subr.mxu0 0.0
    %2205 = vmatpush1.msra.mxu0 0.0
    %2206 = vmatprep.subr.mxu0 0.0
    %2207 = vmatpush1.msra.mxu0 0.0
    %2208 = vmatprep.subr.mxu0 0.0
    %2209 = vmatpush1.msra.mxu0 0.0
    %2210 = vmatprep.subr.mxu0 0.0
    %2211 = vmatpush1.msra.mxu0 0.0
    %2212 = vmatprep.subr.mxu0 0.0
    %2213 = vmatpush1.msra.mxu0 0.0
    %2214 = vmatprep.subr.mxu0 0.0
    %2215 = vmatpush1.msra.mxu0 0.0
    %2216 = vmatprep.subr.mxu0 0.0
    %2217 = vmatpush1.msra.mxu0 0.0
    %2218 = vmatprep.subr.mxu0 0.0
    %2219 = vmatpush1.msra.mxu0 0.0
    %2220 = vmatprep.subr.mxu0 0.0
    %2221 = vmatpush1.msra.mxu0 0.0
    %2222 = vmatprep.subr.mxu0 0.0
    %2223 = vmatpush1.msra.mxu0 0.0
    %2224 = vmatprep.subr.mxu0 0.0
    %2225 = vmatpush1.msra.mxu0 0.0
    %2226 = vmatprep.subr.mxu0 0.0
    %2227 = vmatpush1.msra.mxu0 0.0
    %2228 = vmatprep.subr.mxu0 0.0
    %2229 = vmatpush1.msra.mxu0 0.0
    %2230 = vmatprep.subr.mxu0 0.0
    %2231 = vmatpush1.msra.mxu0 0.0
    %2232 = vmatprep.subr.mxu0 0.0
    %2233 = vmatpush1.msra.mxu0 0.0
    %2234 = vmatprep.subr.mxu0 0.0
    %2235 = vmatpush1.msra.mxu0 0.0
    %2236 = vmatprep.subr.mxu0 0.0
    %2237 = vmatpush1.msra.mxu0 0.0
    %2238 = vmatprep.subr.mxu0 0.0
    %2239 = vmatpush1.msra.mxu0 0.0
    %2240 = vmatprep.subr.mxu0 0.0
    %2241 = vmatpush1.msra.mxu0 0.0
    %2242 = vmatprep.subr.mxu0 0.0
    %2243 = vmatpush1.msra.mxu0 0.0
    %2244 = vmatprep.subr.mxu0 0.0
    %2245 = vmatpush1.msra.mxu0 0.0
    %2246 = vmatprep.subr.mxu0 0.0
    %2247 = vmatpush1.msra.mxu0 0.0
    %2248 = vmatprep.subr.mxu0 0.0
    %2249 = vmatpush1.msra.mxu0 0.0
    %2250 = vmatprep.mubr.f32.mxu0 0.0
    %2251 = vmatmul.mubr.f32.gmra.mrb[0].mxu0 %v2184
    %v2252 = vpop.f32.mrb[0].mxu0
    %v2253 = vadd.f32 %v2179, %v2252
    %v2254 = vpop.f32.mrb[0].mxu0
    %2255 = vdwg.mxu0
    %2257 = vrot.lane.b32.xlu0 %v2253, 8
    %v2258 = vpop.permute.xlu0 %2257
    %2260 = vst.msk [vmem:[#allocation2 + $0x8] sm:$0xff] %vm930, %v2258
    %2261 = vrot.lane.b32.xlu0 %v172, 112
    %v2262 = vpop.permute.xlu0 %2261
    %2263 = vrot.lane.b32.xlu0 %v172, 80
    %v2264 = vpop.permute.xlu0 %2263
    %v2265 = vsel %vm258, %v2262, 0
    %v2267 = vsel %vm258, %v2264, 0
    %2269 = vmatprep.subr.mxu0 0.0
    %2270 = vmatpush1.xpose.msra.mxu0 %v2267
    %2271 = vmatprep.subr.mxu0 0.0
    %2272 = vmatpush1.xpose.msra.mxu0 0.0
    %2273 = vmatprep.subr.mxu0 0.0
    %2274 = vmatpush1.xpose.msra.mxu0 0.0
    %2275 = vmatprep.subr.mxu0 0.0
    %2276 = vmatpush1.xpose.msra.mxu0 0.0
    %2277 = vmatprep.subr.mxu0 0.0
    %2278 = vmatpush1.xpose.msra.mxu0 0.0
    %2279 = vmatprep.subr.mxu0 0.0
    %2280 = vmatpush1.xpose.msra.mxu0 0.0
    %2281 = vmatprep.subr.mxu0 0.0
    %2282 = vmatpush1.xpose.msra.mxu0 0.0
    %2283 = vmatprep.subr.mxu0 0.0
    %2284 = vmatpush1.xpose.msra.mxu0 0.0
    %2285 = vmatprep.subr.mxu0 0.0
    %2286 = vmatpush1.xpose.msra.mxu0 0.0
    %2287 = vmatprep.subr.mxu0 0.0
    %2288 = vmatpush1.xpose.msra.mxu0 0.0
    %2289 = vmatprep.subr.mxu0 0.0
    %2290 = vmatpush1.xpose.msra.mxu0 0.0
    %2291 = vmatprep.subr.mxu0 0.0
    %2292 = vmatpush1.xpose.msra.mxu0 0.0
    %2293 = vmatprep.subr.mxu0 0.0
    %2294 = vmatpush1.xpose.msra.mxu0 0.0
    %2295 = vmatprep.subr.mxu0 0.0
    %2296 = vmatpush1.xpose.msra.mxu0 0.0
    %2297 = vmatprep.subr.mxu0 0.0
    %2298 = vmatpush1.xpose.msra.mxu0 0.0
    %2299 = vmatprep.subr.mxu0 0.0
    %2300 = vmatpush1.xpose.msra.mxu0 0.0
    %2301 = vmatprep.subr.mxu0 0.0
    %2302 = vmatpush1.xpose.msra.mxu0 0.0
    %2303 = vmatprep.subr.mxu0 0.0
    %2304 = vmatpush1.xpose.msra.mxu0 0.0
    %2305 = vmatprep.subr.mxu0 0.0
    %2306 = vmatpush1.xpose.msra.mxu0 0.0
    %2307 = vmatprep.subr.mxu0 0.0
    %2308 = vmatpush1.xpose.msra.mxu0 0.0
    %2309 = vmatprep.subr.mxu0 0.0
    %2310 = vmatpush1.xpose.msra.mxu0 0.0
    %2311 = vmatprep.subr.mxu0 0.0
    %2312 = vmatpush1.xpose.msra.mxu0 0.0
    %2313 = vmatprep.subr.mxu0 0.0
    %2314 = vmatpush1.xpose.msra.mxu0 0.0
    %2315 = vmatprep.subr.mxu0 0.0
    %2316 = vmatpush1.xpose.msra.mxu0 0.0
    %2317 = vmatprep.subr.mxu0 0.0
    %2318 = vmatpush1.xpose.msra.mxu0 0.0
    %2319 = vmatprep.subr.mxu0 0.0
    %2320 = vmatpush1.xpose.msra.mxu0 0.0
    %2321 = vmatprep.subr.mxu0 0.0
    %2322 = vmatpush1.xpose.msra.mxu0 0.0
    %2323 = vmatprep.subr.mxu0 0.0
    %2324 = vmatpush1.xpose.msra.mxu0 0.0
    %2325 = vmatprep.subr.mxu0 0.0
    %2326 = vmatpush1.xpose.msra.mxu0 0.0
    %2327 = vmatprep.subr.mxu0 0.0
    %2328 = vmatpush1.xpose.msra.mxu0 0.0
    %2329 = vmatprep.subr.mxu0 0.0
    %2330 = vmatpush1.xpose.msra.mxu0 0.0
    %2331 = vmatprep.subr.mxu0 0.0
    %2332 = vmatpush1.xpose.msra.mxu0 0.0
    %2333 = vmatprep.mubr.f32.mxu0 0.0
    %2334 = vmatmul.mubr.f32.gmra.mrb[0].mxu0 %v2265
    %v2335 = vpop.f32.mrb[0].mxu0
    %v2336 = vadd.f32 0.0, %v2335
    %v2337 = vpop.f32.mrb[0].mxu0
    %2338 = vdwg.mxu0
    %v2339 = vmul.f32 %v2336, 0.35355338
    %v2340 = vsel %vm253, %v2339, -10000.0
    %v2341 = vsel %vm258, %v2340, -inf
    %2342 = vmax.xlane.f32.xlu0 %v2341
    %v2343 = vpop.xlane.xlu0 %2342
    %v2344 = vsub.f32 %v2340, %v2343
    %v2345 = vmul.f32 %v2344, 1.442695
    %v2346 = vpow.pop %v2345
    %v2347 = vsel %vm258, %v2346, 0.0
    %2348 = vadd.xlane.f32.xlu0 %v2347
    %v2349 = vpop.xlane.xlu0 %2348
    %v2350 = vrcp.pop %v2349
    %v2351 = vmul.f32 %v2346, %v2350
    %2352 = vmatprep.subr.mxu0 0.0
    %2353 = vmatpush1.xpose.msra.mxu0 %v1025
    %2354 = vmatprep.subr.mxu0 0.0
    %2355 = vmatpush1.xpose.msra.mxu0 0.0
    %2356 = vmatprep.subr.mxu0 0.0
    %2357 = vmatpush1.xpose.msra.mxu0 0.0
    %2358 = vmatprep.subr.mxu0 0.0
    %2359 = vmatpush1.xpose.msra.mxu0 0.0
    %2360 = vmatprep.subr.mxu0 0.0
    %2361 = vmatpush1.xpose.msra.mxu0 0.0
    %2362 = vmatprep.subr.mxu0 0.0
    %2363 = vmatpush1.xpose.msra.mxu0 0.0
    %2364 = vmatprep.subr.mxu0 0.0
    %2365 = vmatpush1.xpose.msra.mxu0 0.0
    %2366 = vmatprep.subr.mxu0 0.0
    %2367 = vmatpush1.xpose.msra.mxu0 0.0
    %2368 = vmatprep.subr.mxu0 0.0
    %2369 = vmatpush1.xpose.msra.mxu0 0.0
    %2370 = vmatprep.subr.mxu0 0.0
    %2371 = vmatpush1.xpose.msra.mxu0 0.0
    %2372 = vmatprep.subr.mxu0 0.0
    %2373 = vmatpush1.xpose.msra.mxu0 0.0
    %2374 = vmatprep.subr.mxu0 0.0
    %2375 = vmatpush1.xpose.msra.mxu0 0.0
    %2376 = vmatprep.subr.mxu0 0.0
    %2377 = vmatpush1.xpose.msra.mxu0 0.0
    %2378 = vmatprep.subr.mxu0 0.0
    %2379 = vmatpush1.xpose.msra.mxu0 0.0
    %2380 = vmatprep.subr.mxu0 0.0
    %2381 = vmatpush1.xpose.msra.mxu0 0.0
    %2382 = vmatprep.subr.mxu0 0.0
    %2383 = vmatpush1.xpose.msra.mxu0 0.0
    %2384 = vmatprep.subr.mxu0 0.0
    %2385 = vmatpush1.xpose.msra.mxu0 0.0
    %2386 = vmatprep.subr.mxu0 0.0
    %2387 = vmatpush1.xpose.msra.mxu0 0.0
    %2388 = vmatprep.subr.mxu0 0.0
    %2389 = vmatpush1.xpose.msra.mxu0 0.0
    %2390 = vmatprep.subr.mxu0 0.0
    %2391 = vmatpush1.xpose.msra.mxu0 0.0
    %2392 = vmatprep.subr.mxu0 0.0
    %2393 = vmatpush1.xpose.msra.mxu0 0.0
    %2394 = vmatprep.subr.mxu0 0.0
    %2395 = vmatpush1.xpose.msra.mxu0 0.0
    %2396 = vmatprep.subr.mxu0 0.0
    %2397 = vmatpush1.xpose.msra.mxu0 0.0
    %2398 = vmatprep.subr.mxu0 0.0
    %2399 = vmatpush1.xpose.msra.mxu0 0.0
    %2400 = vmatprep.subr.mxu0 0.0
    %2401 = vmatpush1.xpose.msra.mxu0 0.0
    %2402 = vmatprep.subr.mxu0 0.0
    %2403 = vmatpush1.xpose.msra.mxu0 0.0
    %2404 = vmatprep.subr.mxu0 0.0
    %2405 = vmatpush1.xpose.msra.mxu0 0.0
    %2406 = vmatprep.subr.mxu0 0.0
    %2407 = vmatpush1.xpose.msra.mxu0 0.0
    %2408 = vmatprep.subr.mxu0 0.0
    %2409 = vmatpush1.xpose.msra.mxu0 0.0
    %2410 = vmatprep.subr.mxu0 0.0
    %2411 = vmatpush1.xpose.msra.mxu0 0.0
    %2412 = vmatprep.subr.mxu0 0.0
    %2413 = vmatpush1.xpose.msra.mxu0 0.0
    %2414 = vmatprep.subr.mxu0 0.0
    %2415 = vmatpush1.xpose.msra.mxu0 0.0
    %2416 = vmatprep.mubr.f32.mxu0 0.0
    %2417 = vmatmul.mubr.f32.gmra.mrb[0].mxu0 %v2265
    %v2418 = vpop.f32.mrb[0].mxu0
    %v2419 = vadd.f32 0.0, %v2418
    %v2420 = vpop.f32.mrb[0].mxu0
    %2421 = vdwg.mxu0
    %v2422 = vmul.f32 %v2419, 0.35355338
    %v2423 = vsel %vm258, %v2422, -inf
    %2424 = vmax.xlane.f32.xlu0 %v2423
    %v2425 = vpop.xlane.xlu0 %2424
    %v2426 = vsub.f32 %v2422, %v2425
    %v2427 = vmul.f32 %v2426, 1.442695
    %v2428 = vpow.pop %v2427
    %v2429 = vsel %vm258, %v2428, 0.0
    %2430 = vadd.xlane.f32.xlu0 %v2429
    %v2431 = vpop.xlane.xlu0 %2430
    %v2432 = vrcp.pop %v2431
    %v2433 = vmul.f32 %v2428, %v2432
    %v2435 = vsel %vm258, %v2433, 0
    %2437 = vmatprep.subr.mxu0 0.0
    %2438 = vmatpush1.msra.mxu0 %v1110
    %2439 = vmatprep.subr.mxu0 0.0
    %2440 = vmatpush1.msra.mxu0 0.0
    %2441 = vmatprep.subr.mxu0 0.0
    %2442 = vmatpush1.msra.mxu0 0.0
    %2443 = vmatprep.subr.mxu0 0.0
    %2444 = vmatpush1.msra.mxu0 0.0
    %2445 = vmatprep.subr.mxu0 0.0
    %2446 = vmatpush1.msra.mxu0 0.0
    %2447 = vmatprep.subr.mxu0 0.0
    %2448 = vmatpush1.msra.mxu0 0.0
    %2449 = vmatprep.subr.mxu0 0.0
    %2450 = vmatpush1.msra.mxu0 0.0
    %2451 = vmatprep.subr.mxu0 0.0
    %2452 = vmatpush1.msra.mxu0 0.0
    %2453 = vmatprep.subr.mxu0 0.0
    %2454 = vmatpush1.msra.mxu0 0.0
    %2455 = vmatprep.subr.mxu0 0.0
    %2456 = vmatpush1.msra.mxu0 0.0
    %2457 = vmatprep.subr.mxu0 0.0
    %2458 = vmatpush1.msra.mxu0 0.0
    %2459 = vmatprep.subr.mxu0 0.0
    %2460 = vmatpush1.msra.mxu0 0.0
    %2461 = vmatprep.subr.mxu0 0.0
    %2462 = vmatpush1.msra.mxu0 0.0
    %2463 = vmatprep.subr.mxu0 0.0
    %2464 = vmatpush1.msra.mxu0 0.0
    %2465 = vmatprep.subr.mxu0 0.0
    %2466 = vmatpush1.msra.mxu0 0.0
    %2467 = vmatprep.subr.mxu0 0.0
    %2468 = vmatpush1.msra.mxu0 0.0
    %2469 = vmatprep.subr.mxu0 0.0
    %2470 = vmatpush1.msra.mxu0 0.0
    %2471 = vmatprep.subr.mxu0 0.0
    %2472 = vmatpush1.msra.mxu0 0.0
    %2473 = vmatprep.subr.mxu0 0.0
    %2474 = vmatpush1.msra.mxu0 0.0
    %2475 = vmatprep.subr.mxu0 0.0
    %2476 = vmatpush1.msra.mxu0 0.0
    %2477 = vmatprep.subr.mxu0 0.0
    %2478 = vmatpush1.msra.mxu0 0.0
    %2479 = vmatprep.subr.mxu0 0.0
    %2480 = vmatpush1.msra.mxu0 0.0
    %2481 = vmatprep.subr.mxu0 0.0
    %2482 = vmatpush1.msra.mxu0 0.0
    %2483 = vmatprep.subr.mxu0 0.0
    %2484 = vmatpush1.msra.mxu0 0.0
    %2485 = vmatprep.subr.mxu0 0.0
    %2486 = vmatpush1.msra.mxu0 0.0
    %2487 = vmatprep.subr.mxu0 0.0
    %2488 = vmatpush1.msra.mxu0 0.0
    %2489 = vmatprep.subr.mxu0 0.0
    %2490 = vmatpush1.msra.mxu0 0.0
    %2491 = vmatprep.subr.mxu0 0.0
    %2492 = vmatpush1.msra.mxu0 0.0
    %2493 = vmatprep.subr.mxu0 0.0
    %2494 = vmatpush1.msra.mxu0 0.0
    %2495 = vmatprep.subr.mxu0 0.0
    %2496 = vmatpush1.msra.mxu0 0.0
    %2497 = vmatprep.subr.mxu0 0.0
    %2498 = vmatpush1.msra.mxu0 0.0
    %2499 = vmatprep.subr.mxu0 0.0
    %2500 = vmatpush1.msra.mxu0 0.0
    %2501 = vmatprep.mubr.f32.mxu0 0.0
    %2502 = vmatmul.mubr.f32.gmra.mrb[0].mxu0 %v2435
    %v2503 = vpop.f32.mrb[0].mxu0
    %v2504 = vadd.f32 0.0, %v2503
    %v2505 = vpop.f32.mrb[0].mxu0
    %2506 = vdwg.mxu0
    %v2507 = vmul.f32 %v2504, %v1186
    %2508 = vrot.lane.b32.xlu0 %v172, 48
    %v2509 = vpop.permute.xlu0 %2508
    %v2512 = vsel %vm258, %v2351, 0
    %2514 = vmatprep.subr.mxu0 0.0
    %2515 = vmatpush1.msra.mxu0 %v2509
    %2516 = vmatprep.subr.mxu0 0.0
    %2517 = vmatpush1.msra.mxu0 0.0
    %2518 = vmatprep.subr.mxu0 0.0
    %2519 = vmatpush1.msra.mxu0 0.0
    %2520 = vmatprep.subr.mxu0 0.0
    %2521 = vmatpush1.msra.mxu0 0.0
    %2522 = vmatprep.subr.mxu0 0.0
    %2523 = vmatpush1.msra.mxu0 0.0
    %2524 = vmatprep.subr.mxu0 0.0
    %2525 = vmatpush1.msra.mxu0 0.0
    %2526 = vmatprep.subr.mxu0 0.0
    %2527 = vmatpush1.msra.mxu0 0.0
    %2528 = vmatprep.subr.mxu0 0.0
    %2529 = vmatpush1.msra.mxu0 0.0
    %2530 = vmatprep.subr.mxu0 0.0
    %2531 = vmatpush1.msra.mxu0 0.0
    %2532 = vmatprep.subr.mxu0 0.0
    %2533 = vmatpush1.msra.mxu0 0.0
    %2534 = vmatprep.subr.mxu0 0.0
    %2535 = vmatpush1.msra.mxu0 0.0
    %2536 = vmatprep.subr.mxu0 0.0
    %2537 = vmatpush1.msra.mxu0 0.0
    %2538 = vmatprep.subr.mxu0 0.0
    %2539 = vmatpush1.msra.mxu0 0.0
    %2540 = vmatprep.subr.mxu0 0.0
    %2541 = vmatpush1.msra.mxu0 0.0
    %2542 = vmatprep.subr.mxu0 0.0
    %2543 = vmatpush1.msra.mxu0 0.0
    %2544 = vmatprep.subr.mxu0 0.0
    %2545 = vmatpush1.msra.mxu0 0.0
    %2546 = vmatprep.subr.mxu0 0.0
    %2547 = vmatpush1.msra.mxu0 0.0
    %2548 = vmatprep.subr.mxu0 0.0
    %2549 = vmatpush1.msra.mxu0 0.0
    %2550 = vmatprep.subr.mxu0 0.0
    %2551 = vmatpush1.msra.mxu0 0.0
    %2552 = vmatprep.subr.mxu0 0.0
    %2553 = vmatpush1.msra.mxu0 0.0
    %2554 = vmatprep.subr.mxu0 0.0
    %2555 = vmatpush1.msra.mxu0 0.0
    %2556 = vmatprep.subr.mxu0 0.0
    %2557 = vmatpush1.msra.mxu0 0.0
    %2558 = vmatprep.subr.mxu0 0.0
    %2559 = vmatpush1.msra.mxu0 0.0
    %2560 = vmatprep.subr.mxu0 0.0
    %2561 = vmatpush1.msra.mxu0 0.0
    %2562 = vmatprep.subr.mxu0 0.0
    %2563 = vmatpush1.msra.mxu0 0.0
    %2564 = vmatprep.subr.mxu0 0.0
    %2565 = vmatpush1.msra.mxu0 0.0
    %2566 = vmatprep.subr.mxu0 0.0
    %2567 = vmatpush1.msra.mxu0 0.0
    %2568 = vmatprep.subr.mxu0 0.0
    %2569 = vmatpush1.msra.mxu0 0.0
    %2570 = vmatprep.subr.mxu0 0.0
    %2571 = vmatpush1.msra.mxu0 0.0
    %2572 = vmatprep.subr.mxu0 0.0
    %2573 = vmatpush1.msra.mxu0 0.0
    %2574 = vmatprep.subr.mxu0 0.0
    %2575 = vmatpush1.msra.mxu0 0.0
    %2576 = vmatprep.subr.mxu0 0.0
    %2577 = vmatpush1.msra.mxu0 0.0
    %2578 = vmatprep.mubr.f32.mxu0 0.0
    %2579 = vmatmul.mubr.f32.gmra.mrb[0].mxu0 %v2512
    %v2580 = vpop.f32.mrb[0].mxu0
    %v2581 = vadd.f32 %v2507, %v2580
    %v2582 = vpop.f32.mrb[0].mxu0
    %2583 = vdwg.mxu0
    %2585 = vrot.lane.b32.xlu0 %v2581, 16
    %v2586 = vpop.permute.xlu0 %2585
    %2588 = vst.msk [vmem:[#allocation2 + $0x8] sm:$0xff] %vm1269, %v2586
    %2589 = vrot.lane.b32.xlu0 %v172, 104
    %v2590 = vpop.permute.xlu0 %2589
    %2591 = vrot.lane.b32.xlu0 %v172, 72
    %v2592 = vpop.permute.xlu0 %2591
    %v2593 = vsel %vm258, %v2590, 0
    %v2595 = vsel %vm258, %v2592, 0
    %2597 = vmatprep.subr.mxu0 0.0
    %2598 = vmatpush1.xpose.msra.mxu0 %v2595
    %2599 = vmatprep.subr.mxu0 0.0
    %2600 = vmatpush1.xpose.msra.mxu0 0.0
    %2601 = vmatprep.subr.mxu0 0.0
    %2602 = vmatpush1.xpose.msra.mxu0 0.0
    %2603 = vmatprep.subr.mxu0 0.0
    %2604 = vmatpush1.xpose.msra.mxu0 0.0
    %2605 = vmatprep.subr.mxu0 0.0
    %2606 = vmatpush1.xpose.msra.mxu0 0.0
    %2607 = vmatprep.subr.mxu0 0.0
    %2608 = vmatpush1.xpose.msra.mxu0 0.0
    %2609 = vmatprep.subr.mxu0 0.0
    %2610 = vmatpush1.xpose.msra.mxu0 0.0
    %2611 = vmatprep.subr.mxu0 0.0
    %2612 = vmatpush1.xpose.msra.mxu0 0.0
    %2613 = vmatprep.subr.mxu0 0.0
    %2614 = vmatpush1.xpose.msra.mxu0 0.0
    %2615 = vmatprep.subr.mxu0 0.0
    %2616 = vmatpush1.xpose.msra.mxu0 0.0
    %2617 = vmatprep.subr.mxu0 0.0
    %2618 = vmatpush1.xpose.msra.mxu0 0.0
    %2619 = vmatprep.subr.mxu0 0.0
    %2620 = vmatpush1.xpose.msra.mxu0 0.0
    %2621 = vmatprep.subr.mxu0 0.0
    %2622 = vmatpush1.xpose.msra.mxu0 0.0
    %2623 = vmatprep.subr.mxu0 0.0
    %2624 = vmatpush1.xpose.msra.mxu0 0.0
    %2625 = vmatprep.subr.mxu0 0.0
    %2626 = vmatpush1.xpose.msra.mxu0 0.0
    %2627 = vmatprep.subr.mxu0 0.0
    %2628 = vmatpush1.xpose.msra.mxu0 0.0
    %2629 = vmatprep.subr.mxu0 0.0
    %2630 = vmatpush1.xpose.msra.mxu0 0.0
    %2631 = vmatprep.subr.mxu0 0.0
    %2632 = vmatpush1.xpose.msra.mxu0 0.0
    %2633 = vmatprep.subr.mxu0 0.0
    %2634 = vmatpush1.xpose.msra.mxu0 0.0
    %2635 = vmatprep.subr.mxu0 0.0
    %2636 = vmatpush1.xpose.msra.mxu0 0.0
    %2637 = vmatprep.subr.mxu0 0.0
    %2638 = vmatpush1.xpose.msra.mxu0 0.0
    %2639 = vmatprep.subr.mxu0 0.0
    %2640 = vmatpush1.xpose.msra.mxu0 0.0
    %2641 = vmatprep.subr.mxu0 0.0
    %2642 = vmatpush1.xpose.msra.mxu0 0.0
    %2643 = vmatprep.subr.mxu0 0.0
    %2644 = vmatpush1.xpose.msra.mxu0 0.0
    %2645 = vmatprep.subr.mxu0 0.0
    %2646 = vmatpush1.xpose.msra.mxu0 0.0
    %2647 = vmatprep.subr.mxu0 0.0
    %2648 = vmatpush1.xpose.msra.mxu0 0.0
    %2649 = vmatprep.subr.mxu0 0.0
    %2650 = vmatpush1.xpose.msra.mxu0 0.0
    %2651 = vmatprep.subr.mxu0 0.0
    %2652 = vmatpush1.xpose.msra.mxu0 0.0
    %2653 = vmatprep.subr.mxu0 0.0
    %2654 = vmatpush1.xpose.msra.mxu0 0.0
    %2655 = vmatprep.subr.mxu0 0.0
    %2656 = vmatpush1.xpose.msra.mxu0 0.0
    %2657 = vmatprep.subr.mxu0 0.0
    %2658 = vmatpush1.xpose.msra.mxu0 0.0
    %2659 = vmatprep.subr.mxu0 0.0
    %2660 = vmatpush1.xpose.msra.mxu0 0.0
    %2661 = vmatprep.mubr.f32.mxu0 0.0
    %2662 = vmatmul.mubr.f32.gmra.mrb[0].mxu0 %v2593
    %v2663 = vpop.f32.mrb[0].mxu0
    %v2664 = vadd.f32 0.0, %v2663
    %v2665 = vpop.f32.mrb[0].mxu0
    %2666 = vdwg.mxu0
    %v2667 = vmul.f32 %v2664, 0.35355338
    %v2668 = vsel %vm253, %v2667, -10000.0
    %v2669 = vsel %vm258, %v2668, -inf
    %2670 = vmax.xlane.f32.xlu0 %v2669
    %v2671 = vpop.xlane.xlu0 %2670
    %v2672 = vsub.f32 %v2668, %v2671
    %v2673 = vmul.f32 %v2672, 1.442695
    %v2674 = vpow.pop %v2673
    %v2675 = vsel %vm258, %v2674, 0.0
    %2676 = vadd.xlane.f32.xlu0 %v2675
    %v2677 = vpop.xlane.xlu0 %2676
    %v2678 = vrcp.pop %v2677
    %v2679 = vmul.f32 %v2674, %v2678
    %2680 = vmatprep.subr.mxu0 0.0
    %2681 = vmatpush1.xpose.msra.mxu0 %v1364
    %2682 = vmatprep.subr.mxu0 0.0
    %2683 = vmatpush1.xpose.msra.mxu0 0.0
    %2684 = vmatprep.subr.mxu0 0.0
    %2685 = vmatpush1.xpose.msra.mxu0 0.0
    %2686 = vmatprep.subr.mxu0 0.0
    %2687 = vmatpush1.xpose.msra.mxu0 0.0
    %2688 = vmatprep.subr.mxu0 0.0
    %2689 = vmatpush1.xpose.msra.mxu0 0.0
    %2690 = vmatprep.subr.mxu0 0.0
    %2691 = vmatpush1.xpose.msra.mxu0 0.0
    %2692 = vmatprep.subr.mxu0 0.0
    %2693 = vmatpush1.xpose.msra.mxu0 0.0
    %2694 = vmatprep.subr.mxu0 0.0
    %2695 = vmatpush1.xpose.msra.mxu0 0.0
    %2696 = vmatprep.subr.mxu0 0.0
    %2697 = vmatpush1.xpose.msra.mxu0 0.0
    %2698 = vmatprep.subr.mxu0 0.0
    %2699 = vmatpush1.xpose.msra.mxu0 0.0
    %2700 = vmatprep.subr.mxu0 0.0
    %2701 = vmatpush1.xpose.msra.mxu0 0.0
    %2702 = vmatprep.subr.mxu0 0.0
    %2703 = vmatpush1.xpose.msra.mxu0 0.0
    %2704 = vmatprep.subr.mxu0 0.0
    %2705 = vmatpush1.xpose.msra.mxu0 0.0
    %2706 = vmatprep.subr.mxu0 0.0
    %2707 = vmatpush1.xpose.msra.mxu0 0.0
    %2708 = vmatprep.subr.mxu0 0.0
    %2709 = vmatpush1.xpose.msra.mxu0 0.0
    %2710 = vmatprep.subr.mxu0 0.0
    %2711 = vmatpush1.xpose.msra.mxu0 0.0
    %2712 = vmatprep.subr.mxu0 0.0
    %2713 = vmatpush1.xpose.msra.mxu0 0.0
    %2714 = vmatprep.subr.mxu0 0.0
    %2715 = vmatpush1.xpose.msra.mxu0 0.0
    %2716 = vmatprep.subr.mxu0 0.0
    %2717 = vmatpush1.xpose.msra.mxu0 0.0
    %2718 = vmatprep.subr.mxu0 0.0
    %2719 = vmatpush1.xpose.msra.mxu0 0.0
    %2720 = vmatprep.subr.mxu0 0.0
    %2721 = vmatpush1.xpose.msra.mxu0 0.0
    %2722 = vmatprep.subr.mxu0 0.0
    %2723 = vmatpush1.xpose.msra.mxu0 0.0
    %2724 = vmatprep.subr.mxu0 0.0
    %2725 = vmatpush1.xpose.msra.mxu0 0.0
    %2726 = vmatprep.subr.mxu0 0.0
    %2727 = vmatpush1.xpose.msra.mxu0 0.0
    %2728 = vmatprep.subr.mxu0 0.0
    %2729 = vmatpush1.xpose.msra.mxu0 0.0
    %2730 = vmatprep.subr.mxu0 0.0
    %2731 = vmatpush1.xpose.msra.mxu0 0.0
    %2732 = vmatprep.subr.mxu0 0.0
    %2733 = vmatpush1.xpose.msra.mxu0 0.0
    %2734 = vmatprep.subr.mxu0 0.0
    %2735 = vmatpush1.xpose.msra.mxu0 0.0
    %2736 = vmatprep.subr.mxu0 0.0
    %2737 = vmatpush1.xpose.msra.mxu0 0.0
    %2738 = vmatprep.subr.mxu0 0.0
    %2739 = vmatpush1.xpose.msra.mxu0 0.0
    %2740 = vmatprep.subr.mxu0 0.0
    %2741 = vmatpush1.xpose.msra.mxu0 0.0
    %2742 = vmatprep.subr.mxu0 0.0
    %2743 = vmatpush1.xpose.msra.mxu0 0.0
    %2744 = vmatprep.mubr.f32.mxu0 0.0
    %2745 = vmatmul.mubr.f32.gmra.mrb[0].mxu0 %v2593
    %v2746 = vpop.f32.mrb[0].mxu0
    %v2747 = vadd.f32 0.0, %v2746
    %v2748 = vpop.f32.mrb[0].mxu0
    %2749 = vdwg.mxu0
    %v2750 = vmul.f32 %v2747, 0.35355338
    %v2751 = vsel %vm258, %v2750, -inf
    %2752 = vmax.xlane.f32.xlu0 %v2751
    %v2753 = vpop.xlane.xlu0 %2752
    %v2754 = vsub.f32 %v2750, %v2753
    %v2755 = vmul.f32 %v2754, 1.442695
    %v2756 = vpow.pop %v2755
    %v2757 = vsel %vm258, %v2756, 0.0
    %2758 = vadd.xlane.f32.xlu0 %v2757
    %v2759 = vpop.xlane.xlu0 %2758
    %v2760 = vrcp.pop %v2759
    %v2761 = vmul.f32 %v2756, %v2760
    %v2763 = vsel %vm258, %v2761, 0
    %2765 = vmatprep.subr.mxu0 0.0
    %2766 = vmatpush1.msra.mxu0 %v1449
    %2767 = vmatprep.subr.mxu0 0.0
    %2768 = vmatpush1.msra.mxu0 0.0
    %2769 = vmatprep.subr.mxu0 0.0
    %2770 = vmatpush1.msra.mxu0 0.0
    %2771 = vmatprep.subr.mxu0 0.0
    %2772 = vmatpush1.msra.mxu0 0.0
    %2773 = vmatprep.subr.mxu0 0.0
    %2774 = vmatpush1.msra.mxu0 0.0
    %2775 = vmatprep.subr.mxu0 0.0
    %2776 = vmatpush1.msra.mxu0 0.0
    %2777 = vmatprep.subr.mxu0 0.0
    %2778 = vmatpush1.msra.mxu0 0.0
    %2779 = vmatprep.subr.mxu0 0.0
    %2780 = vmatpush1.msra.mxu0 0.0
    %2781 = vmatprep.subr.mxu0 0.0
    %2782 = vmatpush1.msra.mxu0 0.0
    %2783 = vmatprep.subr.mxu0 0.0
    %2784 = vmatpush1.msra.mxu0 0.0
    %2785 = vmatprep.subr.mxu0 0.0
    %2786 = vmatpush1.msra.mxu0 0.0
    %2787 = vmatprep.subr.mxu0 0.0
    %2788 = vmatpush1.msra.mxu0 0.0
    %2789 = vmatprep.subr.mxu0 0.0
    %2790 = vmatpush1.msra.mxu0 0.0
    %2791 = vmatprep.subr.mxu0 0.0
    %2792 = vmatpush1.msra.mxu0 0.0
    %2793 = vmatprep.subr.mxu0 0.0
    %2794 = vmatpush1.msra.mxu0 0.0
    %2795 = vmatprep.subr.mxu0 0.0
    %2796 = vmatpush1.msra.mxu0 0.0
    %2797 = vmatprep.subr.mxu0 0.0
    %2798 = vmatpush1.msra.mxu0 0.0
    %2799 = vmatprep.subr.mxu0 0.0
    %2800 = vmatpush1.msra.mxu0 0.0
    %2801 = vmatprep.subr.mxu0 0.0
    %2802 = vmatpush1.msra.mxu0 0.0
    %2803 = vmatprep.subr.mxu0 0.0
    %2804 = vmatpush1.msra.mxu0 0.0
    %2805 = vmatprep.subr.mxu0 0.0
    %2806 = vmatpush1.msra.mxu0 0.0
    %2807 = vmatprep.subr.mxu0 0.0
    %2808 = vmatpush1.msra.mxu0 0.0
    %2809 = vmatprep.subr.mxu0 0.0
    %2810 = vmatpush1.msra.mxu0 0.0
    %2811 = vmatprep.subr.mxu0 0.0
    %2812 = vmatpush1.msra.mxu0 0.0
    %2813 = vmatprep.subr.mxu0 0.0
    %2814 = vmatpush1.msra.mxu0 0.0
    %2815 = vmatprep.subr.mxu0 0.0
    %2816 = vmatpush1.msra.mxu0 0.0
    %2817 = vmatprep.subr.mxu0 0.0
    %2818 = vmatpush1.msra.mxu0 0.0
    %2819 = vmatprep.subr.mxu0 0.0
    %2820 = vmatpush1.msra.mxu0 0.0
    %2821 = vmatprep.subr.mxu0 0.0
    %2822 = vmatpush1.msra.mxu0 0.0
    %2823 = vmatprep.subr.mxu0 0.0
    %2824 = vmatpush1.msra.mxu0 0.0
    %2825 = vmatprep.subr.mxu0 0.0
    %2826 = vmatpush1.msra.mxu0 0.0
    %2827 = vmatprep.subr.mxu0 0.0
    %2828 = vmatpush1.msra.mxu0 0.0
    %2829 = vmatprep.mubr.f32.mxu0 0.0
    %2830 = vmatmul.mubr.f32.gmra.mrb[0].mxu0 %v2763
    %v2831 = vpop.f32.mrb[0].mxu0
    %v2832 = vadd.f32 0.0, %v2831
    %v2833 = vpop.f32.mrb[0].mxu0
    %2834 = vdwg.mxu0
    %v2835 = vmul.f32 %v2832, %v1525
    %2836 = vrot.lane.b32.xlu0 %v172, 40
    %v2837 = vpop.permute.xlu0 %2836
    %v2840 = vsel %vm258, %v2679, 0
    %2842 = vmatprep.subr.mxu0 0.0
    %2843 = vmatpush1.msra.mxu0 %v2837
    %2844 = vmatprep.subr.mxu0 0.0
    %2845 = vmatpush1.msra.mxu0 0.0
    %2846 = vmatprep.subr.mxu0 0.0
    %2847 = vmatpush1.msra.mxu0 0.0
    %2848 = vmatprep.subr.mxu0 0.0
    %2849 = vmatpush1.msra.mxu0 0.0
    %2850 = vmatprep.subr.mxu0 0.0
    %2851 = vmatpush1.msra.mxu0 0.0
    %2852 = vmatprep.subr.mxu0 0.0
    %2853 = vmatpush1.msra.mxu0 0.0
    %2854 = vmatprep.subr.mxu0 0.0
    %2855 = vmatpush1.msra.mxu0 0.0
    %2856 = vmatprep.subr.mxu0 0.0
    %2857 = vmatpush1.msra.mxu0 0.0
    %2858 = vmatprep.subr.mxu0 0.0
    %2859 = vmatpush1.msra.mxu0 0.0
    %2860 = vmatprep.subr.mxu0 0.0
    %2861 = vmatpush1.msra.mxu0 0.0
    %2862 = vmatprep.subr.mxu0 0.0
    %2863 = vmatpush1.msra.mxu0 0.0
    %2864 = vmatprep.subr.mxu0 0.0
    %2865 = vmatpush1.msra.mxu0 0.0
    %2866 = vmatprep.subr.mxu0 0.0
    %2867 = vmatpush1.msra.mxu0 0.0
    %2868 = vmatprep.subr.mxu0 0.0
    %2869 = vmatpush1.msra.mxu0 0.0
    %2870 = vmatprep.subr.mxu0 0.0
    %2871 = vmatpush1.msra.mxu0 0.0
    %2872 = vmatprep.subr.mxu0 0.0
    %2873 = vmatpush1.msra.mxu0 0.0
    %2874 = vmatprep.subr.mxu0 0.0
    %2875 = vmatpush1.msra.mxu0 0.0
    %2876 = vmatprep.subr.mxu0 0.0
    %2877 = vmatpush1.msra.mxu0 0.0
    %2878 = vmatprep.subr.mxu0 0.0
    %2879 = vmatpush1.msra.mxu0 0.0
    %2880 = vmatprep.subr.mxu0 0.0
    %2881 = vmatpush1.msra.mxu0 0.0
    %2882 = vmatprep.subr.mxu0 0.0
    %2883 = vmatpush1.msra.mxu0 0.0
    %2884 = vmatprep.subr.mxu0 0.0
    %2885 = vmatpush1.msra.mxu0 0.0
    %2886 = vmatprep.subr.mxu0 0.0
    %2887 = vmatpush1.msra.mxu0 0.0
    %2888 = vmatprep.subr.mxu0 0.0
    %2889 = vmatpush1.msra.mxu0 0.0
    %2890 = vmatprep.subr.mxu0 0.0
    %2891 = vmatpush1.msra.mxu0 0.0
    %2892 = vmatprep.subr.mxu0 0.0
    %2893 = vmatpush1.msra.mxu0 0.0
    %2894 = vmatprep.subr.mxu0 0.0
    %2895 = vmatpush1.msra.mxu0 0.0
    %2896 = vmatprep.subr.mxu0 0.0
    %2897 = vmatpush1.msra.mxu0 0.0
    %2898 = vmatprep.subr.mxu0 0.0
    %2899 = vmatpush1.msra.mxu0 0.0
    %2900 = vmatprep.subr.mxu0 0.0
    %2901 = vmatpush1.msra.mxu0 0.0
    %2902 = vmatprep.subr.mxu0 0.0
    %2903 = vmatpush1.msra.mxu0 0.0
    %2904 = vmatprep.subr.mxu0 0.0
    %2905 = vmatpush1.msra.mxu0 0.0
    %2906 = vmatprep.mubr.f32.mxu0 0.0
    %2907 = vmatmul.mubr.f32.gmra.mrb[0].mxu0 %v2840
    %v2908 = vpop.f32.mrb[0].mxu0
    %v2909 = vadd.f32 %v2835, %v2908
    %v2910 = vpop.f32.mrb[0].mxu0
    %2911 = vdwg.mxu0
    %2913 = vrot.lane.b32.xlu0 %v2909, 24
    %v2914 = vpop.permute.xlu0 %2913
    %2916 = vst.msk [vmem:[#allocation2 + $0x8] sm:$0xff] %vm1608, %v2914
    %v2917 = vld [vmem:[#allocation2] sm:$0xff]
    %v2918 = vld [vmem:[#allocation2 + $0x8] sm:$0xff]
    %v2919 = vld [vmem:[#allocation9] sm:$0xff]
    %v2920 = vld [vmem:[#allocation9 + $0x8] sm:$0xff]
    %v2921 = vld [vmem:[#allocation9 + $0x10] sm:$0xff]
    %v2922 = vld [vmem:[#allocation9 + $0x18] sm:$0xff]
    %v2923 = vld [vmem:[%s5] sm:$0x1]
    %v2925 = vlaneseq
    %v2926 = vshrl.u32 %v2925, 7
    %v2927 = vsub.s32 0, %v2926
    %v2928 = vrot.slane %v2923, %v2927
    %v2931 = vsel %vm93, %v2917, 0
    %v2934 = vsel %vm93, %v2918, 0
    %2936 = vmatprep.subr.mxu0 0.0
    %2937 = vmatpush1.msra.mxu0 %v2919
    %2938 = vmatprep.subr.mxu0 0.0
    %2939 = vmatpush1.msra.mxu0 %v2920
    %2940 = vmatprep.subr.mxu0 0.0
    %2941 = vmatpush1.msra.mxu0 %v2921
    %2942 = vmatprep.subr.mxu0 0.0
    %2943 = vmatpush1.msra.mxu0 %v2922
    %2944 = vmatprep.subr.mxu0 0.0
    %2945 = vmatpush1.msra.mxu0 0.0
    %2946 = vmatprep.subr.mxu0 0.0
    %2947 = vmatpush1.msra.mxu0 0.0
    %2948 = vmatprep.subr.mxu0 0.0
    %2949 = vmatpush1.msra.mxu0 0.0
    %2950 = vmatprep.subr.mxu0 0.0
    %2951 = vmatpush1.msra.mxu0 0.0
    %2952 = vmatprep.subr.mxu0 0.0
    %2953 = vmatpush1.msra.mxu0 0.0
    %2954 = vmatprep.subr.mxu0 0.0
    %2955 = vmatpush1.msra.mxu0 0.0
    %2956 = vmatprep.subr.mxu0 0.0
    %2957 = vmatpush1.msra.mxu0 0.0
    %2958 = vmatprep.subr.mxu0 0.0
    %2959 = vmatpush1.msra.mxu0 0.0
    %2960 = vmatprep.subr.mxu0 0.0
    %2961 = vmatpush1.msra.mxu0 0.0
    %2962 = vmatprep.subr.mxu0 0.0
    %2963 = vmatpush1.msra.mxu0 0.0
    %2964 = vmatprep.subr.mxu0 0.0
    %2965 = vmatpush1.msra.mxu0 0.0
    %2966 = vmatprep.subr.mxu0 0.0
    %2967 = vmatpush1.msra.mxu0 0.0
    %2968 = vmatprep.subr.mxu0 0.0
    %2969 = vmatpush1.msra.mxu0 0.0
    %2970 = vmatprep.subr.mxu0 0.0
    %2971 = vmatpush1.msra.mxu0 0.0
    %2972 = vmatprep.subr.mxu0 0.0
    %2973 = vmatpush1.msra.mxu0 0.0
    %2974 = vmatprep.subr.mxu0 0.0
    %2975 = vmatpush1.msra.mxu0 0.0
    %2976 = vmatprep.subr.mxu0 0.0
    %2977 = vmatpush1.msra.mxu0 0.0
    %2978 = vmatprep.subr.mxu0 0.0
    %2979 = vmatpush1.msra.mxu0 0.0
    %2980 = vmatprep.subr.mxu0 0.0
    %2981 = vmatpush1.msra.mxu0 0.0
    %2982 = vmatprep.subr.mxu0 0.0
    %2983 = vmatpush1.msra.mxu0 0.0
    %2984 = vmatprep.subr.mxu0 0.0
    %2985 = vmatpush1.msra.mxu0 0.0
    %2986 = vmatprep.subr.mxu0 0.0
    %2987 = vmatpush1.msra.mxu0 0.0
    %2988 = vmatprep.subr.mxu0 0.0
    %2989 = vmatpush1.msra.mxu0 0.0
    %2990 = vmatprep.subr.mxu0 0.0
    %2991 = vmatpush1.msra.mxu0 0.0
    %2992 = vmatprep.subr.mxu0 0.0
    %2993 = vmatpush1.msra.mxu0 0.0
    %2994 = vmatprep.subr.mxu0 0.0
    %2995 = vmatpush1.msra.mxu0 0.0
    %2996 = vmatprep.subr.mxu0 0.0
    %2997 = vmatpush1.msra.mxu0 0.0
    %2998 = vmatprep.subr.mxu0 0.0
    %2999 = vmatpush1.msra.mxu0 0.0
    %3000 = vmatprep.mubr.f32.mxu0 0.0
    %3001 = vmatmul.mubr.f32.gmra.mrb[0].mxu0 %v2931
    %v3002 = vpop.f32.mrb[0].mxu0
    %v3003 = vadd.f32 %v2928, %v3002
    %v3004 = vpop.f32.mrb[0].mxu0
    %3005 = vmatprep.mubr.f32.mxu0 0.0
    %3006 = vmatmul.mubr.f32.gmra.mrb[0].mxu0 %v2934
    %v3007 = vpop.f32.mrb[0].mxu0
    %v3008 = vadd.f32 %v2928, %v3007
    %v3009 = vpop.f32.mrb[0].mxu0
    %3010 = vdwg.mxu0
    %3011 = vst.msk [vmem:[#allocation11] sm:$0xff] %vm93, %v3003
    %3012 = vst.msk [vmem:[#allocation11 + $0x8] sm:$0xff] %vm93, %v3008
    // Predicated region
    $region46: #{tpu_custom_call.1} parent=1 // pred_check
      _
    $region47: #{tpu_custom_call.1} parent=1 // pred_check_branch
      %3014 = sbr.rel (0) target = $region49
    $region48: #{tpu_custom_call.1} parent=1 // pred_region
      %s3016 = ssub.s32 256, 256
      %3017 = vsyncadd [#allocation5], %s3016
      %s3018 = sshll.u32 [#allocation11], 4
      %s3019 = int_to_ptr.vmem [resolvable:$true] %s3018
      %3024 = dma.vmem_to_hbm [thread:$0]  %s3019, 256, %s7, [#allocation5], 128, 128, 8
    $region49: #{tpu_custom_call.1} parent=1 // pred_fallthru
      _
    // Predicated region
    $region50: #{tpu_custom_call.1} parent=1 // pred_check
      _
    $region51: #{tpu_custom_call.1} parent=1 // pred_check_branch
      %3026 = sbr.rel (0) target = $region53
    $region52: #{tpu_custom_call.1} parent=1 // pred_region
      %3027 = dma.done [#allocation5], 256
    $region53: #{tpu_custom_call.1} parent=1 // pred_fallthru
      _
    %3028 = vsyncpa [#allocation4], 1
    %3029 = vsyncpa [#allocation7], 1
    %3030 = vsyncpa [#allocation10], 1
    %3031 = vsyncpa [#allocation5], 1

</llo_original>
